<compile_context>
chip_gen: v5e
topology: v5e:2x2
jax: 0.10.0
libtpu: 0.0.40
codegen_flags: <defaults>
</compile_context>

<pallas_src>
import jax
import jax.numpy as jnp
from jax import lax
from jax.experimental import pallas as pl
from jax.experimental.pallas import tpu as pltpu

_BN_EPS = 1e-5
_VMEM_LIMIT = 32 * 1024 * 1024  # explicit scoped-VMEM budget (safe on v5e/v6e/v7x)


def _round_up(x, m):
    return -(-x // m) * m


def _pick_tile(padded, candidates):
    for c in candidates:
        if padded % c == 0:
            return c
    return padded


def _pad2d(x, rows, cols):
    return jnp.pad(x, ((0, rows - x.shape[0]), (0, cols - x.shape[1])))


# ----------------------------------------------------------------------------
# Pallas kernel: tiled bf16 matmul (f32 acc) + fused per-channel affine + ReLU
# ----------------------------------------------------------------------------
def matmul_affine(a, b, scale, shift, relu=True, out_dtype=jnp.bfloat16):
    """out = [relu]((a @ b) * scale + shift); scale/shift broadcast over rows."""
    M, K = a.shape
    K2, N = b.shape
    assert K == K2

    # Adaptive tiles: never pad a tiny-M layer up to 128 rows of zeros.
    tm = min(_round_up(M, 8), 128)
    Mp = _round_up(M, tm)
    Np = _round_up(N, 128)
    tn = _pick_tile(Np, (256, 128))
    Kp = _round_up(K, 128)
    if Kp <= 1024:
        tk = Kp                      # single reduction step
    else:
        Kp = _round_up(Kp, 512)
        tk = 512

    # bf16 MXU inputs (f32 accumulation happens in the kernel).
    a_p = _pad2d(a.astype(jnp.bfloat16), Mp, Kp)
    b_p = _pad2d(b.astype(jnp.bfloat16), Kp, Np)
    # scale/shift merged into one (2, Np) array -> a single extra input stream.
    ss = _pad2d(
        jnp.stack([scale.astype(jnp.float32), shift.astype(jnp.float32)]), 2, Np)

    grid = (Mp // tm, Np // tn, Kp // tk)

    def kernel(a_ref, b_ref, ss_ref, o_ref, acc_ref):
        @pl.when(pl.program_id(2) == 0)
        def _():
            acc_ref[...] = jnp.zeros_like(acc_ref)

        acc_ref[...] += jnp.dot(a_ref[...], b_ref[...],
                                preferred_element_type=jnp.float32)

        @pl.when(pl.program_id(2) == pl.num_programs(2) - 1)
        def _():
            y = acc_ref[...] * ss_ref[0:1, :] + ss_ref[1:2, :]
            if relu:
                y = jnp.maximum(y, 0.0)
            o_ref[...] = y.astype(o_ref.dtype)

    out = pl.pallas_call(
        kernel,
        out_shape=jax.ShapeDtypeStruct((Mp, Np), out_dtype),
        grid_spec=pltpu.PrefetchScalarGridSpec(
            num_scalar_prefetch=0,
            grid=grid,
            in_specs=[
                pl.BlockSpec((tm, tk), lambda i, j, k: (i, k)),
                pl.BlockSpec((tk, tn), lambda i, j, k: (k, j)),
                pl.BlockSpec((2, tn), lambda i, j, k: (0, j)),
            ],
            out_specs=pl.BlockSpec((tm, tn), lambda i, j, k: (i, j)),
            scratch_shapes=[pltpu.VMEM((tm, tn), jnp.float32)],
        ),
        compiler_params=pltpu.CompilerParams(
            dimension_semantics=("parallel", "parallel", "arbitrary"),
            vmem_limit_bytes=_VMEM_LIMIT),
    )(a_p, b_p, ss)
    return out[:M, :N]


# ----------------------------------------------------------------------------
# BasicConv2d: conv(no bias) -> BN(eval, folded) -> ReLU, on the Pallas kernel
# ----------------------------------------------------------------------------
def basic_conv(x, p, stride, pad, out_dtype=jnp.bfloat16):
    """x: NHWC; weight p['w']: (O, I, kh, kw) PyTorch layout."""
    w = p["w"]
    O, I, kh, kw = w.shape
    n = x.shape[0]
    x = x.astype(jnp.bfloat16)
    if kh == 1 and kw == 1 and stride == 1 and pad == 0:
        Ho, Wo = x.shape[1], x.shape[2]
        a = x.reshape(n * Ho * Wo, I)
    else:
        # XLA-fused patch extraction; feature ordering is (C_in outer, kh, kw).
        patches = lax.conv_general_dilated_patches(
            x, (kh, kw), (stride, stride), ((pad, pad), (pad, pad)),
            dimension_numbers=("NHWC", "HWIO", "NHWC"))
        _, Ho, Wo, KK = patches.shape
        a = patches.reshape(n * Ho * Wo, KK)
    b = jnp.transpose(w, (1, 2, 3, 0)).reshape(I * kh * kw, O)
    out = matmul_affine(a, b, p["scale"], p["shift"], relu=True,
                        out_dtype=out_dtype)
    return out.reshape(n, Ho, Wo, O)


# ----------------------------------------------------------------------------
# F.avg_pool2d(kernel_size=3, stride=2): no padding, ceil_mode=False (glue)
# ----------------------------------------------------------------------------
def avg_pool_3x3_s2(x):
    s = lax.reduce_window(x, 0.0, lax.add, (1, 3, 3, 1), (1, 2, 2, 1), "VALID")
    return s / 9.0


# ----------------------------------------------------------------------------
# Parameter init (deterministic; shapes from the PyTorch __init__)
# ----------------------------------------------------------------------------
def init_bconv(key, cin, cout, k):
    fan_in = cin * k * k
    bound = 1.0 / fan_in ** 0.5
    w = jax.random.uniform(key, (cout, cin, k, k), jnp.float32, -bound, bound)
    # BN defaults: gamma=1, beta=0, running_mean=0, running_var=1, eps=1e-5.
    gamma = jnp.ones((cout,), jnp.float32)
    beta = jnp.zeros((cout,), jnp.float32)
    mean = jnp.zeros((cout,), jnp.float32)
    var = jnp.ones((cout,), jnp.float32)
    scale = gamma / jnp.sqrt(var + _BN_EPS)
    shift = beta - mean * scale
    return {"w": w, "scale": scale, "shift": shift}


def init_inception_b(key, in_channels):
    ks = jax.random.split(key, 4)
    return {
        "branch1": init_bconv(ks[0], in_channels, 384, 3),
        "branch2a": init_bconv(ks[1], in_channels, 64, 1),
        "branch2b": init_bconv(ks[2], 64, 96, 3),
        "branch2c": init_bconv(ks[3], 96, 96, 3),
    }


# ----------------------------------------------------------------------------
# Forward pass: InceptionB
# ----------------------------------------------------------------------------
def inception_b_forward(params, x_nchw):
    x = jnp.transpose(x_nchw, (0, 2, 3, 1)).astype(jnp.float32)   # NCHW -> NHWC

    # branch1: 3x3 conv, stride 2 (branch-final output in f32)
    b1 = basic_conv(x, params["branch1"], stride=2, pad=0, out_dtype=jnp.float32)

    # branch2: 1x1 -> 3x3(pad=1) -> 3x3 stride 2 (intermediates stay bf16)
    b2 = basic_conv(x, params["branch2a"], stride=1, pad=0)
    b2 = basic_conv(b2, params["branch2b"], stride=1, pad=1)
    b2 = basic_conv(b2, params["branch2c"], stride=2, pad=0, out_dtype=jnp.float32)

    # branch3: F.avg_pool2d(x, kernel_size=3, stride=2)
    b3 = avg_pool_3x3_s2(x)

    # TODO(synk): BatchNorm uses folded running statistics (inference mode);
    # PyTorch's default train-mode batch statistics are not reproduced.
    out = jnp.concatenate([b1, b2, b3], axis=-1)   # torch.cat(dim=1) in NHWC
    return jnp.transpose(out, (0, 3, 1, 2))        # NHWC -> NCHW


if __name__ == "__main__":
    key = jax.random.PRNGKey(0)
    k_param, k_input = jax.random.split(key)

    in_channels = 4
    params = init_inception_b(k_param, in_channels)
    x = jax.random.normal(k_input, (2, in_channels, 16, 16), jnp.float32)

    fwd = jax.jit(inception_b_forward)
    out = fwd(params, x)
    jax.block_until_ready(out)
    # 3x3/stride-2 (no padding) on 16x16 -> 7x7; channels = 384 + 96 + in_channels
    assert out.shape == (2, 384 + 96 + in_channels, 7, 7), out.shape
    print("KERNEL_OK")
</pallas_src>

<mosaic_0001>
module attributes {stable_mosaic.version = 11 : i64} {
  func.func @kernel(%arg0: i32, %arg1: i32, %arg2: i32, %arg3: memref<128x128xbf16, #tpu.memory_space<vmem>>, %arg4: memref<128x128xbf16, #tpu.memory_space<vmem>>, %arg5: memref<2x128xf32, #tpu.memory_space<vmem>>, %arg6: memref<128x128xbf16, #tpu.memory_space<vmem>>, %arg7: memref<128x128xf32, #tpu.memory_space<vmem>>) attributes {dimension_semantics = [#tpu.dimension_semantics<parallel>, #tpu.dimension_semantics<parallel>, #tpu.dimension_semantics<arbitrary>], iteration_bounds = array<i64: 4, 1, 1>, scalar_prefetch = 0 : i64, scratch_operands = 1 : i64, tpu.core_type = #tpu.core_type<tc>, window_params = [{transform_indices = @transform_0, window_bounds = array<i64: 128, 128>}, {transform_indices = @transform_1, window_bounds = array<i64: 128, 128>}, {transform_indices = @transform_2, window_bounds = array<i64: 2, 128>}, {transform_indices = @transform_3, window_bounds = array<i64: 128, 128>}]} {
    %c0_i32 = arith.constant 0 : i32
    %0 = arith.cmpi eq, %arg2, %c0_i32 : i32
    %1 = arith.extui %0 : i1 to i32
    %c0_i32_0 = arith.constant 0 : i32
    %2 = arith.cmpi ne, %1, %c0_i32_0 : i32
    scf.if %2 {
      %cst_10 = arith.constant 0.000000e+00 : f32
      %12 = vector.broadcast %cst_10 : f32 to vector<128x128xf32>
      %c0_11 = arith.constant 0 : index
      %c0_12 = arith.constant 0 : index
      %13 = vector.load %arg7[%c0_11, %c0_12] : memref<128x128xf32, #tpu.memory_space<vmem>>, vector<128x128xf32>
      tpu.vector_store %arg7[%c0_11, %c0_12], %12 {strides = array<i32>} : memref<128x128xf32, #tpu.memory_space<vmem>>, vector<128x128xf32>,
    } else {
    }
    %c0 = arith.constant 0 : index
    %c0_1 = arith.constant 0 : index
    %3 = vector.load %arg7[%c0, %c0_1] : memref<128x128xf32, #tpu.memory_space<vmem>>, vector<128x128xf32>
    %c0_2 = arith.constant 0 : index
    %c0_3 = arith.constant 0 : index
    %4 = vector.load %arg3[%c0_2, %c0_3] : memref<128x128xbf16, #tpu.memory_space<vmem>>, vector<128x128xbf16>
    %c0_4 = arith.constant 0 : index
    %c0_5 = arith.constant 0 : index
    %5 = vector.load %arg4[%c0_4, %c0_5] : memref<128x128xbf16, #tpu.memory_space<vmem>>, vector<128x128xbf16>
    %cst = arith.constant dense<0.000000e+00> : vector<128x128xf32>
    %6 = tpu.matmul %4, %5, %cst {dimension_numbers = #tpu.dot_dimension_numbers<[1], [0], [0], [1], [0, 0, 1, 1], [], []>} : vector<128x128xbf16>, vector<128x128xbf16>, vector<128x128xf32> -> vector<128x128xf32>
    %7 = arith.addf %3, %6 : vector<128x128xf32>
    %c0_6 = arith.constant 0 : index
    %c0_7 = arith.constant 0 : index
    %8 = vector.load %arg7[%c0_6, %c0_7] : memref<128x128xf32, #tpu.memory_space<vmem>>, vector<128x128xf32>
    tpu.vector_store %arg7[%c0_6, %c0_7], %7 {strides = array<i32>} : memref<128x128xf32, #tpu.memory_space<vmem>>, vector<128x128xf32>,
    %c0_i32_8 = arith.constant 0 : i32
    %9 = arith.cmpi eq, %arg2, %c0_i32_8 : i32
    %10 = arith.extui %9 : i1 to i32
    %c0_i32_9 = arith.constant 0 : i32
    %11 = arith.cmpi ne, %10, %c0_i32_9 : i32
    scf.if %11 {
      %c0_10 = arith.constant 0 : index
      %c0_11 = arith.constant 0 : index
      %12 = vector.load %arg7[%c0_10, %c0_11] : memref<128x128xf32, #tpu.memory_space<vmem>>, vector<128x128xf32>
      %c0_12 = arith.constant 0 : index
      %c0_13 = arith.constant 0 : index
      %13 = vector.load %arg5[%c0_12, %c0_13] : memref<2x128xf32, #tpu.memory_space<vmem>>, vector<1x128xf32>
      %14 = vector.broadcast %13 : vector<1x128xf32> to vector<128x128xf32>
      %15 = arith.mulf %12, %14 : vector<128x128xf32>
      %c1 = arith.constant 1 : index
      %c0_14 = arith.constant 0 : index
      %16 = vector.load %arg5[%c1, %c0_14] : memref<2x128xf32, #tpu.memory_space<vmem>>, vector<1x128xf32>
      %17 = vector.broadcast %16 : vector<1x128xf32> to vector<128x128xf32>
      %18 = arith.addf %15, %17 : vector<128x128xf32>
      %cst_15 = arith.constant 0.000000e+00 : f32
      %19 = vector.broadcast %cst_15 : f32 to vector<128x128xf32>
      %20 = arith.maximumf %18, %19 : vector<128x128xf32>
      %21 = arith.truncf %20 : vector<128x128xf32> to vector<128x128xbf16>
      %c0_16 = arith.constant 0 : index
      %c0_17 = arith.constant 0 : index
      %22 = vector.load %arg6[%c0_16, %c0_17] : memref<128x128xbf16, #tpu.memory_space<vmem>>, vector<128x128xbf16>
      tpu.vector_store %arg6[%c0_16, %c0_17], %21 {strides = array<i32>} : memref<128x128xbf16, #tpu.memory_space<vmem>>, vector<128x128xbf16>,
    } else {
    }
    return
  }
  func.func @transform_0(%arg0: i32, %arg1: i32, %arg2: i32) -> (i32, i32) {
    %c0_i32 = arith.constant 0 : i32
    return %arg0, %arg2 : i32, i32
  }
  func.func @transform_1(%arg0: i32, %arg1: i32, %arg2: i32) -> (i32, i32) {
    %c0_i32 = arith.constant 0 : i32
    return %arg2, %arg1 : i32, i32
  }
  func.func @transform_2(%arg0: i32, %arg1: i32, %arg2: i32) -> (i32, i32) {
    %c0_i32 = arith.constant 0 : i32
    %c0_i32_0 = arith.constant 0 : i32
    return %c0_i32, %arg1 : i32, i32
  }
  func.func @transform_3(%arg0: i32, %arg1: i32, %arg2: i32) -> (i32, i32) {
    %c0_i32 = arith.constant 0 : i32
    return %arg0, %arg1 : i32, i32
  }
}

module attributes {stable_mosaic.version = 11 : i64} {
  func.func @kernel(%arg0: i32, %arg1: i32, %arg2: i32, %arg3: memref<128x640xbf16, #tpu.memory_space<vmem>>, %arg4: memref<640x128xbf16, #tpu.memory_space<vmem>>, %arg5: memref<2x128xf32, #tpu.memory_space<vmem>>, %arg6: memref<128x128xbf16, #tpu.memory_space<vmem>>, %arg7: memref<128x128xf32, #tpu.memory_space<vmem>>) attributes {dimension_semantics = [#tpu.dimension_semantics<parallel>, #tpu.dimension_semantics<parallel>, #tpu.dimension_semantics<arbitrary>], iteration_bounds = array<i64: 4, 1, 1>, scalar_prefetch = 0 : i64, scratch_operands = 1 : i64, tpu.core_type = #tpu.core_type<tc>, window_params = [{transform_indices = @transform_0, window_bounds = array<i64: 128, 640>}, {transform_indices = @transform_1, window_bounds = array<i64: 640, 128>}, {transform_indices = @transform_2, window_bounds = array<i64: 2, 128>}, {transform_indices = @transform_3, window_bounds = array<i64: 128, 128>}]} {
    %c0_i32 = arith.constant 0 : i32
    %0 = arith.cmpi eq, %arg2, %c0_i32 : i32
    %1 = arith.extui %0 : i1 to i32
    %c0_i32_0 = arith.constant 0 : i32
    %2 = arith.cmpi ne, %1, %c0_i32_0 : i32
    scf.if %2 {
      %cst_10 = arith.constant 0.000000e+00 : f32
      %12 = vector.broadcast %cst_10 : f32 to vector<128x128xf32>
      %c0_11 = arith.constant 0 : index
      %c0_12 = arith.constant 0 : index
      %13 = vector.load %arg7[%c0_11, %c0_12] : memref<128x128xf32, #tpu.memory_space<vmem>>, vector<128x128xf32>
      tpu.vector_store %arg7[%c0_11, %c0_12], %12 {strides = array<i32>} : memref<128x128xf32, #tpu.memory_space<vmem>>, vector<128x128xf32>,
    } else {
    }
    %c0 = arith.constant 0 : index
    %c0_1 = arith.constant 0 : index
    %3 = vector.load %arg7[%c0, %c0_1] : memref<128x128xf32, #tpu.memory_space<vmem>>, vector<128x128xf32>
    %c0_2 = arith.constant 0 : index
    %c0_3 = arith.constant 0 : index
    %4 = vector.load %arg3[%c0_2, %c0_3] : memref<128x640xbf16, #tpu.memory_space<vmem>>, vector<128x640xbf16>
    %c0_4 = arith.constant 0 : index
    %c0_5 = arith.constant 0 : index
    %5 = vector.load %arg4[%c0_4, %c0_5] : memref<640x128xbf16, #tpu.memory_space<vmem>>, vector<640x128xbf16>
    %cst = arith.constant dense<0.000000e+00> : vector<128x128xf32>
    %6 = tpu.matmul %4, %5, %cst {dimension_numbers = #tpu.dot_dimension_numbers<[1], [0], [0], [1], [0, 0, 1, 1], [], []>} : vector<128x640xbf16>, vector<640x128xbf16>, vector<128x128xf32> -> vector<128x128xf32>
    %7 = arith.addf %3, %6 : vector<128x128xf32>
    %c0_6 = arith.constant 0 : index
    %c0_7 = arith.constant 0 : index
    %8 = vector.load %arg7[%c0_6, %c0_7] : memref<128x128xf32, #tpu.memory_space<vmem>>, vector<128x128xf32>
    tpu.vector_store %arg7[%c0_6, %c0_7], %7 {strides = array<i32>} : memref<128x128xf32, #tpu.memory_space<vmem>>, vector<128x128xf32>,
    %c0_i32_8 = arith.constant 0 : i32
    %9 = arith.cmpi eq, %arg2, %c0_i32_8 : i32
    %10 = arith.extui %9 : i1 to i32
    %c0_i32_9 = arith.constant 0 : i32
    %11 = arith.cmpi ne, %10, %c0_i32_9 : i32
    scf.if %11 {
      %c0_10 = arith.constant 0 : index
      %c0_11 = arith.constant 0 : index
      %12 = vector.load %arg7[%c0_10, %c0_11] : memref<128x128xf32, #tpu.memory_space<vmem>>, vector<128x128xf32>
      %c0_12 = arith.constant 0 : index
      %c0_13 = arith.constant 0 : index
      %13 = vector.load %arg5[%c0_12, %c0_13] : memref<2x128xf32, #tpu.memory_space<vmem>>, vector<1x128xf32>
      %14 = vector.broadcast %13 : vector<1x128xf32> to vector<128x128xf32>
      %15 = arith.mulf %12, %14 : vector<128x128xf32>
      %c1 = arith.constant 1 : index
      %c0_14 = arith.constant 0 : index
      %16 = vector.load %arg5[%c1, %c0_14] : memref<2x128xf32, #tpu.memory_space<vmem>>, vector<1x128xf32>
      %17 = vector.broadcast %16 : vector<1x128xf32> to vector<128x128xf32>
      %18 = arith.addf %15, %17 : vector<128x128xf32>
      %cst_15 = arith.constant 0.000000e+00 : f32
      %19 = vector.broadcast %cst_15 : f32 to vector<128x128xf32>
      %20 = arith.maximumf %18, %19 : vector<128x128xf32>
      %21 = arith.truncf %20 : vector<128x128xf32> to vector<128x128xbf16>
      %c0_16 = arith.constant 0 : index
      %c0_17 = arith.constant 0 : index
      %22 = vector.load %arg6[%c0_16, %c0_17] : memref<128x128xbf16, #tpu.memory_space<vmem>>, vector<128x128xbf16>
      tpu.vector_store %arg6[%c0_16, %c0_17], %21 {strides = array<i32>} : memref<128x128xbf16, #tpu.memory_space<vmem>>, vector<128x128xbf16>,
    } else {
    }
    return
  }
  func.func @transform_0(%arg0: i32, %arg1: i32, %arg2: i32) -> (i32, i32) {
    %c0_i32 = arith.constant 0 : i32
    return %arg0, %arg2 : i32, i32
  }
  func.func @transform_1(%arg0: i32, %arg1: i32, %arg2: i32) -> (i32, i32) {
    %c0_i32 = arith.constant 0 : i32
    return %arg2, %arg1 : i32, i32
  }
  func.func @transform_2(%arg0: i32, %arg1: i32, %arg2: i32) -> (i32, i32) {
    %c0_i32 = arith.constant 0 : i32
    %c0_i32_0 = arith.constant 0 : i32
    return %c0_i32, %arg1 : i32, i32
  }
  func.func @transform_3(%arg0: i32, %arg1: i32, %arg2: i32) -> (i32, i32) {
    %c0_i32 = arith.constant 0 : i32
    return %arg0, %arg1 : i32, i32
  }
}

module attributes {stable_mosaic.version = 11 : i64} {
  func.func @kernel(%arg0: i32, %arg1: i32, %arg2: i32, %arg3: memref<104x896xbf16, #tpu.memory_space<vmem>>, %arg4: memref<896x128xbf16, #tpu.memory_space<vmem>>, %arg5: memref<2x128xf32, #tpu.memory_space<vmem>>, %arg6: memref<104x128xf32, #tpu.memory_space<vmem>>, %arg7: memref<104x128xf32, #tpu.memory_space<vmem>>) attributes {dimension_semantics = [#tpu.dimension_semantics<parallel>, #tpu.dimension_semantics<parallel>, #tpu.dimension_semantics<arbitrary>], iteration_bounds = array<i64: 1, 1, 1>, scalar_prefetch = 0 : i64, scratch_operands = 1 : i64, tpu.core_type = #tpu.core_type<tc>, window_params = [{transform_indices = @transform_0, window_bounds = array<i64: 104, 896>}, {transform_indices = @transform_1, window_bounds = array<i64: 896, 128>}, {transform_indices = @transform_2, window_bounds = array<i64: 2, 128>}, {transform_indices = @transform_3, window_bounds = array<i64: 104, 128>}]} {
    %c0_i32 = arith.constant 0 : i32
    %0 = arith.cmpi eq, %arg2, %c0_i32 : i32
    %1 = arith.extui %0 : i1 to i32
    %c0_i32_0 = arith.constant 0 : i32
    %2 = arith.cmpi ne, %1, %c0_i32_0 : i32
    scf.if %2 {
      %cst_10 = arith.constant 0.000000e+00 : f32
      %12 = vector.broadcast %cst_10 : f32 to vector<104x128xf32>
      %c0_11 = arith.constant 0 : index
      %c0_12 = arith.constant 0 : index
      %13 = vector.load %arg7[%c0_11, %c0_12] : memref<104x128xf32, #tpu.memory_space<vmem>>, vector<104x128xf32>
      tpu.vector_store %arg7[%c0_11, %c0_12], %12 {strides = array<i32>} : memref<104x128xf32, #tpu.memory_space<vmem>>, vector<104x128xf32>,
    } else {
    }
    %c0 = arith.constant 0 : index
    %c0_1 = arith.constant 0 : index
    %3 = vector.load %arg7[%c0, %c0_1] : memref<104x128xf32, #tpu.memory_space<vmem>>, vector<104x128xf32>
    %c0_2 = arith.constant 0 : index
    %c0_3 = arith.constant 0 : index
    %4 = vector.load %arg3[%c0_2, %c0_3] : memref<104x896xbf16, #tpu.memory_space<vmem>>, vector<104x896xbf16>
    %c0_4 = arith.constant 0 : index
    %c0_5 = arith.constant 0 : index
    %5 = vector.load %arg4[%c0_4, %c0_5] : memref<896x128xbf16, #tpu.memory_space<vmem>>, vector<896x128xbf16>
    %cst = arith.constant dense<0.000000e+00> : vector<104x128xf32>
    %6 = tpu.matmul %4, %5, %cst {dimension_numbers = #tpu.dot_dimension_numbers<[1], [0], [0], [1], [0, 0, 1, 1], [], []>} : vector<104x896xbf16>, vector<896x128xbf16>, vector<104x128xf32> -> vector<104x128xf32>
    %7 = arith.addf %3, %6 : vector<104x128xf32>
    %c0_6 = arith.constant 0 : index
    %c0_7 = arith.constant 0 : index
    %8 = vector.load %arg7[%c0_6, %c0_7] : memref<104x128xf32, #tpu.memory_space<vmem>>, vector<104x128xf32>
    tpu.vector_store %arg7[%c0_6, %c0_7], %7 {strides = array<i32>} : memref<104x128xf32, #tpu.memory_space<vmem>>, vector<104x128xf32>,
    %c0_i32_8 = arith.constant 0 : i32
    %9 = arith.cmpi eq, %arg2, %c0_i32_8 : i32
    %10 = arith.extui %9 : i1 to i32
    %c0_i32_9 = arith.constant 0 : i32
    %11 = arith.cmpi ne, %10, %c0_i32_9 : i32
    scf.if %11 {
      %c0_10 = arith.constant 0 : index
      %c0_11 = arith.constant 0 : index
      %12 = vector.load %arg7[%c0_10, %c0_11] : memref<104x128xf32, #tpu.memory_space<vmem>>, vector<104x128xf32>
      %c0_12 = arith.constant 0 : index
      %c0_13 = arith.constant 0 : index
      %13 = vector.load %arg5[%c0_12, %c0_13] : memref<2x128xf32, #tpu.memory_space<vmem>>, vector<1x128xf32>
      %14 = vector.broadcast %13 : vector<1x128xf32> to vector<104x128xf32>
      %15 = arith.mulf %12, %14 : vector<104x128xf32>
      %c1 = arith.constant 1 : index
      %c0_14 = arith.constant 0 : index
      %16 = vector.load %arg5[%c1, %c0_14] : memref<2x128xf32, #tpu.memory_space<vmem>>, vector<1x128xf32>
      %17 = vector.broadcast %16 : vector<1x128xf32> to vector<104x128xf32>
      %18 = arith.addf %15, %17 : vector<104x128xf32>
      %cst_15 = arith.constant 0.000000e+00 : f32
      %19 = vector.broadcast %cst_15 : f32 to vector<104x128xf32>
      %20 = arith.maximumf %18, %19 : vector<104x128xf32>
      %c0_16 = arith.constant 0 : index
      %c0_17 = arith.constant 0 : index
      %21 = vector.load %arg6[%c0_16, %c0_17] : memref<104x128xf32, #tpu.memory_space<vmem>>, vector<104x128xf32>
      tpu.vector_store %arg6[%c0_16, %c0_17], %20 {strides = array<i32>} : memref<104x128xf32, #tpu.memory_space<vmem>>, vector<104x128xf32>,
    } else {
    }
    return
  }
  func.func @transform_0(%arg0: i32, %arg1: i32, %arg2: i32) -> (i32, i32) {
    %c0_i32 = arith.constant 0 : i32
    return %arg0, %arg2 : i32, i32
  }
  func.func @transform_1(%arg0: i32, %arg1: i32, %arg2: i32) -> (i32, i32) {
    %c0_i32 = arith.constant 0 : i32
    return %arg2, %arg1 : i32, i32
  }
  func.func @transform_2(%arg0: i32, %arg1: i32, %arg2: i32) -> (i32, i32) {
    %c0_i32 = arith.constant 0 : i32
    %c0_i32_0 = arith.constant 0 : i32
    return %c0_i32, %arg1 : i32, i32
  }
  func.func @transform_3(%arg0: i32, %arg1: i32, %arg2: i32) -> (i32, i32) {
    %c0_i32 = arith.constant 0 : i32
    return %arg0, %arg1 : i32, i32
  }
}

module attributes {stable_mosaic.version = 11 : i64} {
  func.func @kernel(%arg0: i32, %arg1: i32, %arg2: i32, %arg3: memref<104x128xbf16, #tpu.memory_space<vmem>>, %arg4: memref<128x128xbf16, #tpu.memory_space<vmem>>, %arg5: memref<2x128xf32, #tpu.memory_space<vmem>>, %arg6: memref<104x128xf32, #tpu.memory_space<vmem>>, %arg7: memref<104x128xf32, #tpu.memory_space<vmem>>) attributes {dimension_semantics = [#tpu.dimension_semantics<parallel>, #tpu.dimension_semantics<parallel>, #tpu.dimension_semantics<arbitrary>], iteration_bounds = array<i64: 1, 3, 1>, scalar_prefetch = 0 : i64, scratch_operands = 1 : i64, tpu.core_type = #tpu.core_type<tc>, window_params = [{transform_indices = @transform_0, window_bounds = array<i64: 104, 128>}, {transform_indices = @transform_1, window_bounds = array<i64: 128, 128>}, {transform_indices = @transform_2, window_bounds = array<i64: 2, 128>}, {transform_indices = @transform_3, window_bounds = array<i64: 104, 128>}]} {
    %c0_i32 = arith.constant 0 : i32
    %0 = arith.cmpi eq, %arg2, %c0_i32 : i32
    %1 = arith.extui %0 : i1 to i32
    %c0_i32_0 = arith.constant 0 : i32
    %2 = arith.cmpi ne, %1, %c0_i32_0 : i32
    scf.if %2 {
      %cst_10 = arith.constant 0.000000e+00 : f32
      %12 = vector.broadcast %cst_10 : f32 to vector<104x128xf32>
      %c0_11 = arith.constant 0 : index
      %c0_12 = arith.constant 0 : index
      %13 = vector.load %arg7[%c0_11, %c0_12] : memref<104x128xf32, #tpu.memory_space<vmem>>, vector<104x128xf32>
      tpu.vector_store %arg7[%c0_11, %c0_12], %12 {strides = array<i32>} : memref<104x128xf32, #tpu.memory_space<vmem>>, vector<104x128xf32>,
    } else {
    }
    %c0 = arith.constant 0 : index
    %c0_1 = arith.constant 0 : index
    %3 = vector.load %arg7[%c0, %c0_1] : memref<104x128xf32, #tpu.memory_space<vmem>>, vector<104x128xf32>
    %c0_2 = arith.constant 0 : index
    %c0_3 = arith.constant 0 : index
    %4 = vector.load %arg3[%c0_2, %c0_3] : memref<104x128xbf16, #tpu.memory_space<vmem>>, vector<104x128xbf16>
    %c0_4 = arith.constant 0 : index
    %c0_5 = arith.constant 0 : index
    %5 = vector.load %arg4[%c0_4, %c0_5] : memref<128x128xbf16, #tpu.memory_space<vmem>>, vector<128x128xbf16>
    %cst = arith.constant dense<0.000000e+00> : vector<104x128xf32>
    %6 = tpu.matmul %4, %5, %cst {dimension_numbers = #tpu.dot_dimension_numbers<[1], [0], [0], [1], [0, 0, 1, 1], [], []>} : vector<104x128xbf16>, vector<128x128xbf16>, vector<104x128xf32> -> vector<104x128xf32>
    %7 = arith.addf %3, %6 : vector<104x128xf32>
    %c0_6 = arith.constant 0 : index
    %c0_7 = arith.constant 0 : index
    %8 = vector.load %arg7[%c0_6, %c0_7] : memref<104x128xf32, #tpu.memory_space<vmem>>, vector<104x128xf32>
    tpu.vector_store %arg7[%c0_6, %c0_7], %7 {strides = array<i32>} : memref<104x128xf32, #tpu.memory_space<vmem>>, vector<104x128xf32>,
    %c0_i32_8 = arith.constant 0 : i32
    %9 = arith.cmpi eq, %arg2, %c0_i32_8 : i32
    %10 = arith.extui %9 : i1 to i32
    %c0_i32_9 = arith.constant 0 : i32
    %11 = arith.cmpi ne, %10, %c0_i32_9 : i32
    scf.if %11 {
      %c0_10 = arith.constant 0 : index
      %c0_11 = arith.constant 0 : index
      %12 = vector.load %arg7[%c0_10, %c0_11] : memref<104x128xf32, #tpu.memory_space<vmem>>, vector<104x128xf32>
      %c0_12 = arith.constant 0 : index
      %c0_13 = arith.constant 0 : index
      %13 = vector.load %arg5[%c0_12, %c0_13] : memref<2x128xf32, #tpu.memory_space<vmem>>, vector<1x128xf32>
      %14 = vector.broadcast %13 : vector<1x128xf32> to vector<104x128xf32>
      %15 = arith.mulf %12, %14 : vector<104x128xf32>
      %c1 = arith.constant 1 : index
      %c0_14 = arith.constant 0 : index
      %16 = vector.load %arg5[%c1, %c0_14] : memref<2x128xf32, #tpu.memory_space<vmem>>, vector<1x128xf32>
      %17 = vector.broadcast %16 : vector<1x128xf32> to vector<104x128xf32>
      %18 = arith.addf %15, %17 : vector<104x128xf32>
      %cst_15 = arith.constant 0.000000e+00 : f32
      %19 = vector.broadcast %cst_15 : f32 to vector<104x128xf32>
      %20 = arith.maximumf %18, %19 : vector<104x128xf32>
      %c0_16 = arith.constant 0 : index
      %c0_17 = arith.constant 0 : index
      %21 = vector.load %arg6[%c0_16, %c0_17] : memref<104x128xf32, #tpu.memory_space<vmem>>, vector<104x128xf32>
      tpu.vector_store %arg6[%c0_16, %c0_17], %20 {strides = array<i32>} : memref<104x128xf32, #tpu.memory_space<vmem>>, vector<104x128xf32>,
    } else {
    }
    return
  }
  func.func @transform_0(%arg0: i32, %arg1: i32, %arg2: i32) -> (i32, i32) {
    %c0_i32 = arith.constant 0 : i32
    return %arg0, %arg2 : i32, i32
  }
  func.func @transform_1(%arg0: i32, %arg1: i32, %arg2: i32) -> (i32, i32) {
    %c0_i32 = arith.constant 0 : i32
    return %arg2, %arg1 : i32, i32
  }
  func.func @transform_2(%arg0: i32, %arg1: i32, %arg2: i32) -> (i32, i32) {
    %c0_i32 = arith.constant 0 : i32
    %c0_i32_0 = arith.constant 0 : i32
    return %c0_i32, %arg1 : i32, i32
  }
  func.func @transform_3(%arg0: i32, %arg1: i32, %arg2: i32) -> (i32, i32) {
    %c0_i32 = arith.constant 0 : i32
    return %arg0, %arg1 : i32, i32
  }
}

</mosaic_0001>

<llo_original>
// kernel: inception_b_forward.5
$region0: #{inception_b_forward.5}
  #allocation0 [shape = 'u32[]', space=smem, size = 0x4, offset = 0x4, fixed_abs, tag = 'smem constant byte address 0x4 - core index']
  #allocation1 [shape = 'u32[72,128]{1,0:T(1,128)}', space=vmem, size = 0x9000, scoped, tag = 'internal scratch']
  #allocation2 [shape = 'f32[128,128]{1,0:T(8,128)}', space=vmem, size = 0x10000, scoped, tag = 'scratch operand']
  %s0 = inlined_call_operand.vmem [shape: bf16[512,128], index: 0, kind: input, shape index: {}]
  %s1 = inlined_call_operand.vmem [shape: bf16[128,128], index: 1, kind: input, shape index: {}]
  %s2 = inlined_call_operand.vmem [shape: f32[2,128], index: 2, kind: input, shape index: {}]
  %s3 = inlined_call_operand.vmem [shape: bf16[512,128], index: 3, kind: output, shape index: {}]
  %s4 = sld [smem:[#allocation0]]
  $region53: #{inception_b_forward.5} parent=0
    _
  %s6 = ssub.s32 1, %s4
  %s7 = scalar_select 0, %s6, %s4
  loop: start=0, step=1, limit=6
  $region2: #{inception_b_forward.5} parent=0 // loop_pre_header
    _
  $region3: #{inception_b_forward.5} parent=0 // loop_header
    %s9 = sphi 0, %s13
    %p10 = scmp.ge.s32.totalorder %s9, 6
    %s16 = sphi 0, %s35
    %s17 = sphi 0, %s31
    %s18 = sphi 0, %s27
    %s19 = sphi 0, %s16
    %s20 = sphi 0, %s17
    %s21 = sphi 0, %s18
    %s22 = sphi 0, %s19
    %s23 = sphi 0, %s20
    %s24 = sphi 0, %s21
    %s40 = sphi 0, %s42
    %s43 = sphi 0, %s40
    %s44 = sphi 0, %s43
    %s60 = sphi 0, %s44
    %s68 = sphi 0, %s70
    %s71 = sphi 0, %s68
    %s72 = sphi 0, %s71
    %s88 = sphi 0, %s72
    %s94 = sphi 0, %s96
    %s97 = sphi 0, %s94
    %s98 = sphi 0, %s97
    %s114 = sphi 0, %s98
    %s122 = sphi 0, %s124
    %s125 = sphi 0, %s122
    %s126 = sphi 0, %s125
    %s142 = sphi 0, %s126
  $region4: #{inception_b_forward.5} parent=0 // loop_header_branch
    %12 = sbr.rel (%p10) target = $region8
  $region5: #{inception_b_forward.5} parent=0 // loop_body
    %s14 = ssub.s32 %s9, 1
    %s15 = ssub.s32 %s9, 2
    %s25 = sadd.s32 1, %s18
    %p26 = scmp.ge.s32.totalorder %s25, 1
    %s27 = scalar_select %p26, 0, %s25
    %s28 = sadd.s32 1, %s17
    %s29 = scalar_select %p26, %s28, %s17
    %p30 = scmp.ge.s32.totalorder %s29, 1
    %s31 = scalar_select %p30, 0, %s29
    %s32 = sadd.s32 1, %s16
    %s33 = scalar_select %p30, %s32, %s16
    %p34 = scmp.ge.s32.totalorder %s33, 4
    %s35 = scalar_select %p34, 0, %s33
    %s36 = ssub.s32 %s16, %s35
    %s37 = ssub.s32 %s18, %s27
    %s38 = sor.u32 %s36, %s37
    %p39 = scmp.eq.s32.totalorder %s38, 0
    %s41 = sadd.s32 %s40, 1
    %s42 = scalar_select %p39, %s40, %s41
    %p45 = pneg %p39
    %p46 = scmp.eq.s32.totalorder %s9, 3
    %p47 = por %p45, %p46
    %p48 = scmp.ne.s32.totalorder %s40, %s43
    %p49 = scmp.eq.s32.totalorder %s9, 0
    %p50 = por %p48, %p49
    %p51 = scmp.ne.s32.totalorder %s40, %s43
    %p52 = scmp.eq.s32.totalorder %s14, 3
    %p53 = por %p51, %p52
    %p54 = scmp.ne.s32.totalorder %s43, %s44
    %p55 = scmp.eq.s32.totalorder %s14, 0
    %p56 = por %p54, %p55
    %p57 = scmp.ne.s32.totalorder %s43, %s44
    %p58 = scmp.eq.s32.totalorder %s15, 3
    %p59 = por %p57, %p58
    %p61 = scmp.ne.s32.totalorder %s44, %s60
    %p62 = scmp.eq.s32.totalorder %s15, 0
    %p63 = por %p61, %p62
    %s64 = ssub.s32 %s18, %s27
    %s65 = ssub.s32 %s17, %s31
    %s66 = sor.u32 %s64, %s65
    %p67 = scmp.eq.s32.totalorder %s66, 0
    %s69 = sadd.s32 %s68, 1
    %s70 = scalar_select %p67, %s68, %s69
    %p73 = pneg %p67
    %p74 = scmp.eq.s32.totalorder %s9, 3
    %p75 = por %p73, %p74
    %p76 = scmp.ne.s32.totalorder %s68, %s71
    %p77 = scmp.eq.s32.totalorder %s9, 0
    %p78 = por %p76, %p77
    %p79 = scmp.ne.s32.totalorder %s68, %s71
    %p80 = scmp.eq.s32.totalorder %s14, 3
    %p81 = por %p79, %p80
    %p82 = scmp.ne.s32.totalorder %s71, %s72
    %p83 = scmp.eq.s32.totalorder %s14, 0
    %p84 = por %p82, %p83
    %p85 = scmp.ne.s32.totalorder %s71, %s72
    %p86 = scmp.eq.s32.totalorder %s15, 3
    %p87 = por %p85, %p86
    %p89 = scmp.ne.s32.totalorder %s72, %s88
    %p90 = scmp.eq.s32.totalorder %s15, 0
    %p91 = por %p89, %p90
    %s92 = ssub.s32 %s17, %s31
    %p93 = scmp.eq.s32.totalorder %s92, 0
    %s95 = sadd.s32 %s94, 1
    %s96 = scalar_select %p93, %s94, %s95
    %p99 = pneg %p93
    %p100 = scmp.eq.s32.totalorder %s9, 3
    %p101 = por %p99, %p100
    %p102 = scmp.ne.s32.totalorder %s94, %s97
    %p103 = scmp.eq.s32.totalorder %s9, 0
    %p104 = por %p102, %p103
    %p105 = scmp.ne.s32.totalorder %s94, %s97
    %p106 = scmp.eq.s32.totalorder %s14, 3
    %p107 = por %p105, %p106
    %p108 = scmp.ne.s32.totalorder %s97, %s98
    %p109 = scmp.eq.s32.totalorder %s14, 0
    %p110 = por %p108, %p109
    %p111 = scmp.ne.s32.totalorder %s97, %s98
    %p112 = scmp.eq.s32.totalorder %s15, 3
    %p113 = por %p111, %p112
    %p115 = scmp.ne.s32.totalorder %s98, %s114
    %p116 = scmp.eq.s32.totalorder %s15, 0
    %p117 = por %p115, %p116
    %s118 = ssub.s32 %s16, %s35
    %s119 = ssub.s32 %s17, %s31
    %s120 = sor.u32 %s118, %s119
    %p121 = scmp.eq.s32.totalorder %s120, 0
    %s123 = sadd.s32 %s122, 1
    %s124 = scalar_select %p121, %s122, %s123
    %p127 = pneg %p121
    %p128 = scmp.eq.s32.totalorder %s9, 3
    %p129 = por %p127, %p128
    %p130 = scmp.ne.s32.totalorder %s122, %s125
    %p131 = scmp.eq.s32.totalorder %s9, 0
    %p132 = por %p130, %p131
    %p133 = scmp.ne.s32.totalorder %s122, %s125
    %p134 = scmp.eq.s32.totalorder %s14, 3
    %p135 = por %p133, %p134
    %p136 = scmp.ne.s32.totalorder %s125, %s126
    %p137 = scmp.eq.s32.totalorder %s14, 0
    %p138 = por %p136, %p137
    %p139 = scmp.ne.s32.totalorder %s125, %s126
    %p140 = scmp.eq.s32.totalorder %s15, 3
    %p141 = por %p139, %p140
    %p143 = scmp.ne.s32.totalorder %s126, %s142
    %p144 = scmp.eq.s32.totalorder %s15, 0
    %p145 = por %p143, %p144
    %p146 = scmp.le.s32.totalorder 1, %s9
    %p147 = scmp.lt.s32.totalorder %s9, 5
    %p148 = pnand %p146, %p147
    %p149 = pneg %p148
    // Predicated region
    $region9: #{inception_b_forward.5} parent=5 // pred_check
      _
    $region10: #{inception_b_forward.5} parent=5 // pred_check_branch
      %151 = sbr.rel (%p148) target = $region12
    $region11: #{inception_b_forward.5} parent=5 // pred_region
      %s152 = ssub.s32 %s9, 1
      // Predicated region
      $region13: #{inception_b_forward.5} parent=11 // pred_check
        %p153 = pneg %p84
      $region14: #{inception_b_forward.5} parent=11 // pred_check_branch
        %155 = sbr.rel (%p153) target = $region16
      $region15: #{inception_b_forward.5} parent=11 // pred_region
        %s156 = smul.u32 16, %s21
        %p157 = scmp.lt.s32.totalorder %s156, 15
        %s158 = scalar_select %p157, %s156, 15
        %p159 = scmp.lt.s32.totalorder %s20, 0
        %s160 = scalar_select %p159, %s20, 0
        %s161 = sadd.s32 %s160, %s158
        %s162 = smul.addr %s161, 4
        %s163 = scalar_lea.vmem %s1, %s162
        %s164 = smul.u32 16, %s21
      $region16: #{inception_b_forward.5} parent=11 // pred_fallthru
        _
      // Predicated region
      $region17: #{inception_b_forward.5} parent=11 // pred_check
        %p165 = pneg %p110
      $region18: #{inception_b_forward.5} parent=11 // pred_check_branch
        %167 = sbr.rel (%p165) target = $region20
      $region19: #{inception_b_forward.5} parent=11 // pred_region
        %p168 = scmp.lt.s32.totalorder %s20, 0
        %s169 = scalar_select %p168, %s20, 0
        %s170 = smul.addr %s169, 2
        %s171 = scalar_lea.vmem %s2, %s170
      $region20: #{inception_b_forward.5} parent=11 // pred_fallthru
        _
    $region12: #{inception_b_forward.5} parent=5 // pred_fallthru
      _
    %p172 = scmp.lt.s32.totalorder %s9, 4
    // Predicated region
    $region21: #{inception_b_forward.5} parent=5 // pred_check
      %p173 = pneg %p172
    $region22: #{inception_b_forward.5} parent=5 // pred_check_branch
      %175 = sbr.rel (%p173) target = $region24
    $region23: #{inception_b_forward.5} parent=5 // pred_region
      // Predicated region
      $region25: #{inception_b_forward.5} parent=23 // pred_check
        %p176 = pneg %p50
      $region26: #{inception_b_forward.5} parent=23 // pred_check_branch
        %178 = sbr.rel (%p176) target = $region28
      $region27: #{inception_b_forward.5} parent=23 // pred_region
        %s179 = smul.u32 16, %s16
        %p180 = scmp.lt.s32.totalorder %s179, 63
        %s181 = scalar_select %p180, %s179, 63
        %p182 = scmp.lt.s32.totalorder %s18, 0
        %s183 = scalar_select %p182, %s18, 0
        %s184 = sadd.s32 %s183, %s181
        %s185 = smul.addr %s184, 4
        %s186 = scalar_lea.vmem %s0, %s185
        %s187 = smul.u32 16, %s16
      $region28: #{inception_b_forward.5} parent=23 // pred_fallthru
        _
    $region24: #{inception_b_forward.5} parent=5 // pred_fallthru
      _
    %p188 = scmp.le.s32.totalorder 1, %s9
    %p189 = scmp.lt.s32.totalorder %s9, 5
    %p190 = pnand %p188, %p189
    %p191 = pneg %p190
    // Predicated region
    $region29: #{inception_b_forward.5} parent=5 // pred_check
      _
    $region30: #{inception_b_forward.5} parent=5 // pred_check_branch
      %193 = sbr.rel (%p190) target = $region32
    $region31: #{inception_b_forward.5} parent=5 // pred_region
      %s194 = ssub.s32 %s9, 1
      %s195 = smul.u32 16, %s19
      %p196 = scmp.lt.s32.totalorder %s195, 63
      %s197 = scalar_select %p196, %s195, 63
      %p198 = scmp.lt.s32.totalorder %s21, 0
      %s199 = scalar_select %p198, %s21, 0
      %s200 = sadd.s32 %s199, %s197
      %s201 = smul.addr %s200, 4
      %s202 = scalar_lea.vmem %s0, %s201
      %p203 = pneg %p56
      %p204 = pneg %p53
      %s205 = smul.u32 16, %s21
      %p206 = scmp.lt.s32.totalorder %s205, 15
      %s207 = scalar_select %p206, %s205, 15
      %p208 = scmp.lt.s32.totalorder %s20, 0
      %s209 = scalar_select %p208, %s20, 0
      %s210 = sadd.s32 %s209, %s207
      %s211 = smul.addr %s210, 4
      %s212 = scalar_lea.vmem %s1, %s211
      %p213 = pneg %p84
      %p214 = pneg %p81
      %p215 = scmp.lt.s32.totalorder %s20, 0
      %s216 = scalar_select %p215, %s20, 0
      %s217 = smul.addr %s216, 2
      %s218 = scalar_lea.vmem %s2, %s217
      %p219 = pneg %p110
      %p220 = pneg %p107
      %p221 = pneg %p138
      %p222 = pneg %p135
      %s223 = smul.u32 16, %s19
      %p224 = scmp.lt.s32.totalorder %s223, 63
      %s225 = scalar_select %p224, %s223, 63
      %p226 = scmp.lt.s32.totalorder %s20, 0
      %s227 = scalar_select %p226, %s20, 0
      %s228 = sadd.s32 %s227, %s225
      %s229 = smul.addr %s228, 4
      %s230 = scalar_lea.vmem %s3, %s229
      %s231 = smul.u32 16, %s19
      %p232 = scmp.lt.s32.totalorder %s231, 63
      %s233 = scalar_select %p232, %s231, 63
      %p234 = scmp.lt.s32.totalorder %s21, 0
      %s235 = scalar_select %p234, %s21, 0
      %s236 = sadd.s32 %s235, %s233
      %s237 = smul.addr %s236, 4
      %s238 = scalar_lea.vmem %s0, %s237
      %s239 = smul.u32 16, %s19
      %s240 = smul.u32 16, %s21
      %p241 = scmp.lt.s32.totalorder %s240, 15
      %s242 = scalar_select %p241, %s240, 15
      %p243 = scmp.lt.s32.totalorder %s20, 0
      %s244 = scalar_select %p243, %s20, 0
      %s245 = sadd.s32 %s244, %s242
      %s246 = smul.addr %s245, 4
      %s247 = scalar_lea.vmem %s1, %s246
      %s248 = smul.u32 16, %s21
      %p249 = scmp.lt.s32.totalorder %s20, 0
      %s250 = scalar_select %p249, %s20, 0
      %s251 = smul.addr %s250, 2
      %s252 = scalar_lea.vmem %s2, %s251
      %s253 = smul.u32 16, %s19
      %p254 = scmp.lt.s32.totalorder %s253, 63
      %s255 = scalar_select %p254, %s253, 63
      %p256 = scmp.lt.s32.totalorder %s20, 0
      %s257 = scalar_select %p256, %s20, 0
      %s258 = sadd.s32 %s257, %s255
      %s259 = smul.addr %s258, 4
      %s260 = scalar_lea.vmem %s3, %s259
      %s261 = smul.u32 16, %s19
      %p262 = scmp.eq.s32.totalorder %s21, 0
      // Predicated region
      $region33: #{inception_b_forward.5} parent=31 // pred_check
        %p263 = pneg %p262
      $region34: #{inception_b_forward.5} parent=31 // pred_check_branch
        %265 = sbr.rel (%p263) target = $region36
      $region35: #{inception_b_forward.5} parent=31 // pred_region
        %266 = vst [vmem:[#allocation2] sm:$0xff] 0.0
        %267 = vst [vmem:[#allocation2 + $0x8] sm:$0xff] 0.0
        %268 = vst [vmem:[#allocation2 + $0x10] sm:$0xff] 0.0
        %269 = vst [vmem:[#allocation2 + $0x18] sm:$0xff] 0.0
        %270 = vst [vmem:[#allocation2 + $0x20] sm:$0xff] 0.0
        %271 = vst [vmem:[#allocation2 + $0x28] sm:$0xff] 0.0
        %272 = vst [vmem:[#allocation2 + $0x30] sm:$0xff] 0.0
        %273 = vst [vmem:[#allocation2 + $0x38] sm:$0xff] 0.0
        %274 = vst [vmem:[#allocation2 + $0x40] sm:$0xff] 0.0
        %275 = vst [vmem:[#allocation2 + $0x48] sm:$0xff] 0.0
        %276 = vst [vmem:[#allocation2 + $0x50] sm:$0xff] 0.0
        %277 = vst [vmem:[#allocation2 + $0x58] sm:$0xff] 0.0
        %278 = vst [vmem:[#allocation2 + $0x60] sm:$0xff] 0.0
        %279 = vst [vmem:[#allocation2 + $0x68] sm:$0xff] 0.0
        %280 = vst [vmem:[#allocation2 + $0x70] sm:$0xff] 0.0
        %281 = vst [vmem:[#allocation2 + $0x78] sm:$0xff] 0.0
      $region36: #{inception_b_forward.5} parent=31 // pred_fallthru
        _
      %v282 = vld [vmem:[#allocation2] sm:$0xff]
      %v283 = vld [vmem:[#allocation2 + $0x8] sm:$0xff]
      %v284 = vld [vmem:[#allocation2 + $0x10] sm:$0xff]
      %v285 = vld [vmem:[#allocation2 + $0x18] sm:$0xff]
      %v286 = vld [vmem:[#allocation2 + $0x20] sm:$0xff]
      %v287 = vld [vmem:[#allocation2 + $0x28] sm:$0xff]
      %v288 = vld [vmem:[#allocation2 + $0x30] sm:$0xff]
      %v289 = vld [vmem:[#allocation2 + $0x38] sm:$0xff]
      %v290 = vld [vmem:[#allocation2 + $0x40] sm:$0xff]
      %v291 = vld [vmem:[#allocation2 + $0x48] sm:$0xff]
      %v292 = vld [vmem:[#allocation2 + $0x50] sm:$0xff]
      %v293 = vld [vmem:[#allocation2 + $0x58] sm:$0xff]
      %v294 = vld [vmem:[#allocation2 + $0x60] sm:$0xff]
      %v295 = vld [vmem:[#allocation2 + $0x68] sm:$0xff]
      %v296 = vld [vmem:[#allocation2 + $0x70] sm:$0xff]
      %v297 = vld [vmem:[#allocation2 + $0x78] sm:$0xff]
      %v298 = vld [vmem:[%s238] sm:$0xf]
      %v299 = vld [vmem:[%s238 + $0x4] sm:$0xf]
      %v300 = vld [vmem:[%s238 + $0x8] sm:$0xf]
      %v301 = vld [vmem:[%s238 + $0xc] sm:$0xf]
      %v302 = vld [vmem:[%s238 + $0x10] sm:$0xf]
      %v303 = vld [vmem:[%s238 + $0x14] sm:$0xf]
      %v304 = vld [vmem:[%s238 + $0x18] sm:$0xf]
      %v305 = vld [vmem:[%s238 + $0x1c] sm:$0xf]
      %v306 = vld [vmem:[%s238 + $0x20] sm:$0xf]
      %v307 = vld [vmem:[%s238 + $0x24] sm:$0xf]
      %v308 = vld [vmem:[%s238 + $0x28] sm:$0xf]
      %v309 = vld [vmem:[%s238 + $0x2c] sm:$0xf]
      %v310 = vld [vmem:[%s238 + $0x30] sm:$0xf]
      %v311 = vld [vmem:[%s238 + $0x34] sm:$0xf]
      %v312 = vld [vmem:[%s238 + $0x38] sm:$0xf]
      %v313 = vld [vmem:[%s238 + $0x3c] sm:$0xf]
      %v314 = vld [vmem:[%s247] sm:$0xf]
      %v315 = vld [vmem:[%s247 + $0x4] sm:$0xf]
      %v316 = vld [vmem:[%s247 + $0x8] sm:$0xf]
      %v317 = vld [vmem:[%s247 + $0xc] sm:$0xf]
      %v318 = vld [vmem:[%s247 + $0x10] sm:$0xf]
      %v319 = vld [vmem:[%s247 + $0x14] sm:$0xf]
      %v320 = vld [vmem:[%s247 + $0x18] sm:$0xf]
      %v321 = vld [vmem:[%s247 + $0x1c] sm:$0xf]
      %v322 = vld [vmem:[%s247 + $0x20] sm:$0xf]
      %v323 = vld [vmem:[%s247 + $0x24] sm:$0xf]
      %v324 = vld [vmem:[%s247 + $0x28] sm:$0xf]
      %v325 = vld [vmem:[%s247 + $0x2c] sm:$0xf]
      %v326 = vld [vmem:[%s247 + $0x30] sm:$0xf]
      %v327 = vld [vmem:[%s247 + $0x34] sm:$0xf]
      %v328 = vld [vmem:[%s247 + $0x38] sm:$0xf]
      %v329 = vld [vmem:[%s247 + $0x3c] sm:$0xf]
      %v346 = vunpack.c.l.b16 %v298
      %v347 = vunpack.c.l.b16 %v299
      %v348 = vunpack.c.l.b16 %v300
      %v349 = vunpack.c.l.b16 %v301
      %v350 = vunpack.c.l.b16 %v302
      %v351 = vunpack.c.l.b16 %v303
      %v352 = vunpack.c.l.b16 %v304
      %v353 = vunpack.c.l.b16 %v305
      %v354 = vunpack.c.l.b16 %v306
      %v355 = vunpack.c.l.b16 %v307
      %v356 = vunpack.c.l.b16 %v308
      %v357 = vunpack.c.l.b16 %v309
      %v358 = vunpack.c.l.b16 %v310
      %v359 = vunpack.c.l.b16 %v311
      %v360 = vunpack.c.l.b16 %v312
      %v361 = vunpack.c.l.b16 %v313
      %v362 = vpack.c.b16 %v347, %v346
      %v363 = vpack.c.b16 %v349, %v348
      %v364 = vpack.c.b16 %v351, %v350
      %v365 = vpack.c.b16 %v353, %v352
      %v366 = vpack.c.b16 %v355, %v354
      %v367 = vpack.c.b16 %v357, %v356
      %v368 = vpack.c.b16 %v359, %v358
      %v369 = vpack.c.b16 %v361, %v360
      %v394 = vunpack.c.l.b16 %v314
      %v395 = vunpack.c.l.b16 %v315
      %v396 = vunpack.c.l.b16 %v316
      %v397 = vunpack.c.l.b16 %v317
      %v398 = vunpack.c.l.b16 %v318
      %v399 = vunpack.c.l.b16 %v319
      %v400 = vunpack.c.l.b16 %v320
      %v401 = vunpack.c.l.b16 %v321
      %v402 = vunpack.c.l.b16 %v322
      %v403 = vunpack.c.l.b16 %v323
      %v404 = vunpack.c.l.b16 %v324
      %v405 = vunpack.c.l.b16 %v325
      %v406 = vunpack.c.l.b16 %v326
      %v407 = vunpack.c.l.b16 %v327
      %v408 = vunpack.c.l.b16 %v328
      %v409 = vunpack.c.l.b16 %v329
      %v410 = vpack.c.b16 %v395, %v394
      %v411 = vpack.c.b16 %v397, %v396
      %v412 = vpack.c.b16 %v399, %v398
      %v413 = vpack.c.b16 %v401, %v400
      %v414 = vpack.c.b16 %v403, %v402
      %v415 = vpack.c.b16 %v405, %v404
      %v416 = vpack.c.b16 %v407, %v406
      %v417 = vpack.c.b16 %v409, %v408
      %426 = vmatpush.bf16.msra.mxu0 %v417
      %427 = vmatpush.bf16.msra.mxu0 %v416
      %428 = vmatpush.bf16.msra.mxu0 %v415
      %429 = vmatpush.bf16.msra.mxu0 %v414
      %430 = vmatpush.bf16.msra.mxu0 %v413
      %431 = vmatpush.bf16.msra.mxu0 %v412
      %432 = vmatpush.bf16.msra.mxu0 %v411
      %433 = vmatpush.bf16.msra.mxu0 %v410
      %434 = vmatmul.bf16.gmra.mxu0 %v362
      %v435 = vpop.f32.mrf.mxu0
      %v436 = vadd.f32 0.0, %v435
      %v437 = vpop.f32.mrf.mxu0
      %v438 = vadd.f32 0.0, %v437
      %439 = vmatmul.bf16.gmra.mxu0 %v363
      %v440 = vpop.f32.mrf.mxu0
      %v441 = vadd.f32 0.0, %v440
      %v442 = vpop.f32.mrf.mxu0
      %v443 = vadd.f32 0.0, %v442
      %444 = vmatmul.bf16.gmra.mxu0 %v364
      %v445 = vpop.f32.mrf.mxu0
      %v446 = vadd.f32 0.0, %v445
      %v447 = vpop.f32.mrf.mxu0
      %v448 = vadd.f32 0.0, %v447
      %449 = vmatmul.bf16.gmra.mxu0 %v365
      %v450 = vpop.f32.mrf.mxu0
      %v451 = vadd.f32 0.0, %v450
      %v452 = vpop.f32.mrf.mxu0
      %v453 = vadd.f32 0.0, %v452
      %454 = vmatmul.bf16.gmra.mxu0 %v366
      %v455 = vpop.f32.mrf.mxu0
      %v456 = vadd.f32 0.0, %v455
      %v457 = vpop.f32.mrf.mxu0
      %v458 = vadd.f32 0.0, %v457
      %459 = vmatmul.bf16.gmra.mxu0 %v367
      %v460 = vpop.f32.mrf.mxu0
      %v461 = vadd.f32 0.0, %v460
      %v462 = vpop.f32.mrf.mxu0
      %v463 = vadd.f32 0.0, %v462
      %464 = vmatmul.bf16.gmra.mxu0 %v368
      %v465 = vpop.f32.mrf.mxu0
      %v466 = vadd.f32 0.0, %v465
      %v467 = vpop.f32.mrf.mxu0
      %v468 = vadd.f32 0.0, %v467
      %469 = vmatmul.bf16.gmra.mxu0 %v369
      %v470 = vpop.f32.mrf.mxu0
      %v471 = vadd.f32 0.0, %v470
      %v472 = vpop.f32.mrf.mxu0
      %v473 = vadd.f32 0.0, %v472
      %474 = vdwg.mxu0
      %v475 = vadd.f32 %v282, %v436
      %v476 = vadd.f32 %v283, %v438
      %v477 = vadd.f32 %v284, %v441
      %v478 = vadd.f32 %v285, %v443
      %v479 = vadd.f32 %v286, %v446
      %v480 = vadd.f32 %v287, %v448
      %v481 = vadd.f32 %v288, %v451
      %v482 = vadd.f32 %v289, %v453
      %v483 = vadd.f32 %v290, %v456
      %v484 = vadd.f32 %v291, %v458
      %v485 = vadd.f32 %v292, %v461
      %v486 = vadd.f32 %v293, %v463
      %v487 = vadd.f32 %v294, %v466
      %v488 = vadd.f32 %v295, %v468
      %v489 = vadd.f32 %v296, %v471
      %v490 = vadd.f32 %v297, %v473
      %491 = vst [vmem:[#allocation2] sm:$0xff] %v475
      %492 = vst [vmem:[#allocation2 + $0x8] sm:$0xff] %v476
      %493 = vst [vmem:[#allocation2 + $0x10] sm:$0xff] %v477
      %494 = vst [vmem:[#allocation2 + $0x18] sm:$0xff] %v478
      %495 = vst [vmem:[#allocation2 + $0x20] sm:$0xff] %v479
      %496 = vst [vmem:[#allocation2 + $0x28] sm:$0xff] %v480
      %497 = vst [vmem:[#allocation2 + $0x30] sm:$0xff] %v481
      %498 = vst [vmem:[#allocation2 + $0x38] sm:$0xff] %v482
      %499 = vst [vmem:[#allocation2 + $0x40] sm:$0xff] %v483
      %500 = vst [vmem:[#allocation2 + $0x48] sm:$0xff] %v484
      %501 = vst [vmem:[#allocation2 + $0x50] sm:$0xff] %v485
      %502 = vst [vmem:[#allocation2 + $0x58] sm:$0xff] %v486
      %503 = vst [vmem:[#allocation2 + $0x60] sm:$0xff] %v487
      %504 = vst [vmem:[#allocation2 + $0x68] sm:$0xff] %v488
      %505 = vst [vmem:[#allocation2 + $0x70] sm:$0xff] %v489
      %506 = vst [vmem:[#allocation2 + $0x78] sm:$0xff] %v490
      // Predicated region
      $region37: #{inception_b_forward.5} parent=31 // pred_check
        %p507 = pneg %p262
      $region38: #{inception_b_forward.5} parent=31 // pred_check_branch
        %509 = sbr.rel (%p507) target = $region40
      $region39: #{inception_b_forward.5} parent=31 // pred_region
        %v510 = vld [vmem:[#allocation2] sm:$0xff]
        %v511 = vld [vmem:[#allocation2 + $0x8] sm:$0xff]
        %v512 = vld [vmem:[#allocation2 + $0x10] sm:$0xff]
        %v513 = vld [vmem:[#allocation2 + $0x18] sm:$0xff]
        %v514 = vld [vmem:[#allocation2 + $0x20] sm:$0xff]
        %v515 = vld [vmem:[#allocation2 + $0x28] sm:$0xff]
        %v516 = vld [vmem:[#allocation2 + $0x30] sm:$0xff]
        %v517 = vld [vmem:[#allocation2 + $0x38] sm:$0xff]
        %v518 = vld [vmem:[#allocation2 + $0x40] sm:$0xff]
        %v519 = vld [vmem:[#allocation2 + $0x48] sm:$0xff]
        %v520 = vld [vmem:[#allocation2 + $0x50] sm:$0xff]
        %v521 = vld [vmem:[#allocation2 + $0x58] sm:$0xff]
        %v522 = vld [vmem:[#allocation2 + $0x60] sm:$0xff]
        %v523 = vld [vmem:[#allocation2 + $0x68] sm:$0xff]
        %v524 = vld [vmem:[#allocation2 + $0x70] sm:$0xff]
        %v525 = vld [vmem:[#allocation2 + $0x78] sm:$0xff]
        %v526 = vld [vmem:[%s252] sm:$0x1]
        %v527 = vperm.slane %v526, 0
        %v528 = vmul.f32 %v510, %v527
        %v529 = vmul.f32 %v511, %v527
        %v530 = vmul.f32 %v512, %v527
        %v531 = vmul.f32 %v513, %v527
        %v532 = vmul.f32 %v514, %v527
        %v533 = vmul.f32 %v515, %v527
        %v534 = vmul.f32 %v516, %v527
        %v535 = vmul.f32 %v517, %v527
        %v536 = vmul.f32 %v518, %v527
        %v537 = vmul.f32 %v519, %v527
        %v538 = vmul.f32 %v520, %v527
        %v539 = vmul.f32 %v521, %v527
        %v540 = vmul.f32 %v522, %v527
        %v541 = vmul.f32 %v523, %v527
        %v542 = vmul.f32 %v524, %v527
        %v543 = vmul.f32 %v525, %v527
        %v544 = vld [vmem:[%s252 + $0x1] sm:$0x1]
        %v545 = vperm.slane %v544, 0
        %v546 = vadd.f32 %v528, %v545
        %v547 = vadd.f32 %v529, %v545
        %v548 = vadd.f32 %v530, %v545
        %v549 = vadd.f32 %v531, %v545
        %v550 = vadd.f32 %v532, %v545
        %v551 = vadd.f32 %v533, %v545
        %v552 = vadd.f32 %v534, %v545
        %v553 = vadd.f32 %v535, %v545
        %v554 = vadd.f32 %v536, %v545
        %v555 = vadd.f32 %v537, %v545
        %v556 = vadd.f32 %v538, %v545
        %v557 = vadd.f32 %v539, %v545
        %v558 = vadd.f32 %v540, %v545
        %v559 = vadd.f32 %v541, %v545
        %v560 = vadd.f32 %v542, %v545
        %v561 = vadd.f32 %v543, %v545
        %v562 = vmax.f32 %v546, 0.0
        %v563 = vmax.f32 %v547, 0.0
        %v564 = vmax.f32 %v548, 0.0
        %v565 = vmax.f32 %v549, 0.0
        %v566 = vmax.f32 %v550, 0.0
        %v567 = vmax.f32 %v551, 0.0
        %v568 = vmax.f32 %v552, 0.0
        %v569 = vmax.f32 %v553, 0.0
        %v570 = vmax.f32 %v554, 0.0
        %v571 = vmax.f32 %v555, 0.0
        %v572 = vmax.f32 %v556, 0.0
        %v573 = vmax.f32 %v557, 0.0
        %v574 = vmax.f32 %v558, 0.0
        %v575 = vmax.f32 %v559, 0.0
        %v576 = vmax.f32 %v560, 0.0
        %v577 = vmax.f32 %v561, 0.0
        %v578 = vpack.c.bf16 %v562, %v562
        %v579 = vpack.c.bf16 %v563, %v563
        %v580 = vpack.c.bf16 %v564, %v564
        %v581 = vpack.c.bf16 %v565, %v565
        %v582 = vpack.c.bf16 %v566, %v566
        %v583 = vpack.c.bf16 %v567, %v567
        %v584 = vpack.c.bf16 %v568, %v568
        %v585 = vpack.c.bf16 %v569, %v569
        %v586 = vpack.c.bf16 %v570, %v570
        %v587 = vpack.c.bf16 %v571, %v571
        %v588 = vpack.c.bf16 %v572, %v572
        %v589 = vpack.c.bf16 %v573, %v573
        %v590 = vpack.c.bf16 %v574, %v574
        %v591 = vpack.c.bf16 %v575, %v575
        %v592 = vpack.c.bf16 %v576, %v576
        %v593 = vpack.c.bf16 %v577, %v577
        %594 = vst [vmem:[%s260] sm:$0xf] %v578
        %595 = vst [vmem:[%s260 + $0x4] sm:$0xf] %v579
        %596 = vst [vmem:[%s260 + $0x8] sm:$0xf] %v580
        %597 = vst [vmem:[%s260 + $0xc] sm:$0xf] %v581
        %598 = vst [vmem:[%s260 + $0x10] sm:$0xf] %v582
        %599 = vst [vmem:[%s260 + $0x14] sm:$0xf] %v583
        %600 = vst [vmem:[%s260 + $0x18] sm:$0xf] %v584
        %601 = vst [vmem:[%s260 + $0x1c] sm:$0xf] %v585
        %602 = vst [vmem:[%s260 + $0x20] sm:$0xf] %v586
        %603 = vst [vmem:[%s260 + $0x24] sm:$0xf] %v587
        %604 = vst [vmem:[%s260 + $0x28] sm:$0xf] %v588
        %605 = vst [vmem:[%s260 + $0x2c] sm:$0xf] %v589
        %606 = vst [vmem:[%s260 + $0x30] sm:$0xf] %v590
        %607 = vst [vmem:[%s260 + $0x34] sm:$0xf] %v591
        %608 = vst [vmem:[%s260 + $0x38] sm:$0xf] %v592
        %609 = vst [vmem:[%s260 + $0x3c] sm:$0xf] %v593
      $region40: #{inception_b_forward.5} parent=31 // pred_fallthru
        _
      %s610 = smul.u32 16, %s19
      %p611 = scmp.lt.s32.totalorder %s610, 63
      %s612 = scalar_select %p611, %s610, 63
      %p613 = scmp.lt.s32.totalorder %s20, 0
      %s614 = scalar_select %p613, %s20, 0
      %s615 = sadd.s32 %s614, %s612
      %s616 = smul.addr %s615, 4
      %s617 = scalar_lea.vmem %s3, %s616
      // Predicated region
      $region41: #{inception_b_forward.5} parent=31 // pred_check
        %p618 = pneg %p135
      $region42: #{inception_b_forward.5} parent=31 // pred_check_branch
        %620 = sbr.rel (%p618) target = $region44
      $region43: #{inception_b_forward.5} parent=31 // pred_region
        %s621 = smul.u32 16, %s19
      $region44: #{inception_b_forward.5} parent=31 // pred_fallthru
        _
    $region32: #{inception_b_forward.5} parent=5 // pred_fallthru
      _
    %p622 = scmp.le.s32.totalorder 2, %s9
    // Predicated region
    $region45: #{inception_b_forward.5} parent=5 // pred_check
      %p623 = pneg %p622
    $region46: #{inception_b_forward.5} parent=5 // pred_check_branch
      %625 = sbr.rel (%p623) target = $region48
    $region47: #{inception_b_forward.5} parent=5 // pred_region
      %s626 = ssub.s32 %s9, 2
      // Predicated region
      $region49: #{inception_b_forward.5} parent=47 // pred_check
        %p627 = pneg %p141
      $region50: #{inception_b_forward.5} parent=47 // pred_check_branch
        %629 = sbr.rel (%p627) target = $region52
      $region51: #{inception_b_forward.5} parent=47 // pred_region
        %s630 = smul.u32 16, %s22
        %p631 = scmp.lt.s32.totalorder %s630, 63
        %s632 = scalar_select %p631, %s630, 63
        %p633 = scmp.lt.s32.totalorder %s23, 0
        %s634 = scalar_select %p633, %s23, 0
        %s635 = sadd.s32 %s634, %s632
        %s636 = smul.addr %s635, 4
        %s637 = scalar_lea.vmem %s3, %s636
      $region52: #{inception_b_forward.5} parent=47 // pred_fallthru
        _
    $region48: #{inception_b_forward.5} parent=5 // pred_fallthru
      _
  $region6: #{inception_b_forward.5} parent=0 // loop_footer
    %s13 = sadd.s32 1, %s9
  $region7: #{inception_b_forward.5} parent=0 // loop_footer_branch
    %8 = sbr.rel target = $region3
  $region8: #{inception_b_forward.5} parent=0 // loop_exit
    _

// kernel: inception_b_forward.6
$region0: #{inception_b_forward.6}
  #allocation0 [shape = 'u32[]', space=smem, size = 0x4, offset = 0x4, fixed_abs, tag = 'smem constant byte address 0x4 - core index']
  #allocation1 [shape = 'u32[72,128]{1,0:T(1,128)}', space=vmem, size = 0x9000, scoped, tag = 'internal scratch']
  #allocation2 [shape = 'f32[128,128]{1,0:T(8,128)}', space=vmem, size = 0x10000, scoped, tag = 'scratch operand']
  %s0 = inlined_call_operand.vmem [shape: bf16[512,640], index: 0, kind: input, shape index: {}]
  %s1 = inlined_call_operand.vmem [shape: bf16[640,128], index: 1, kind: input, shape index: {}]
  %s2 = inlined_call_operand.vmem [shape: f32[2,128], index: 2, kind: input, shape index: {}]
  %s3 = inlined_call_operand.vmem [shape: bf16[512,128], index: 3, kind: output, shape index: {}]
  %s4 = sld [smem:[#allocation0]]
  $region53: #{inception_b_forward.6} parent=0
    _
  %s6 = ssub.s32 1, %s4
  %s7 = scalar_select 0, %s6, %s4
  loop: start=0, step=1, limit=6
  $region2: #{inception_b_forward.6} parent=0 // loop_pre_header
    _
  $region3: #{inception_b_forward.6} parent=0 // loop_header
    %s9 = sphi 0, %s13
    %p10 = scmp.ge.s32.totalorder %s9, 6
    %s16 = sphi 0, %s35
    %s17 = sphi 0, %s31
    %s18 = sphi 0, %s27
    %s19 = sphi 0, %s16
    %s20 = sphi 0, %s17
    %s21 = sphi 0, %s18
    %s22 = sphi 0, %s19
    %s23 = sphi 0, %s20
    %s24 = sphi 0, %s21
    %s40 = sphi 0, %s42
    %s43 = sphi 0, %s40
    %s44 = sphi 0, %s43
    %s60 = sphi 0, %s44
    %s68 = sphi 0, %s70
    %s71 = sphi 0, %s68
    %s72 = sphi 0, %s71
    %s88 = sphi 0, %s72
    %s94 = sphi 0, %s96
    %s97 = sphi 0, %s94
    %s98 = sphi 0, %s97
    %s114 = sphi 0, %s98
    %s122 = sphi 0, %s124
    %s125 = sphi 0, %s122
    %s126 = sphi 0, %s125
    %s142 = sphi 0, %s126
  $region4: #{inception_b_forward.6} parent=0 // loop_header_branch
    %12 = sbr.rel (%p10) target = $region8
  $region5: #{inception_b_forward.6} parent=0 // loop_body
    %s14 = ssub.s32 %s9, 1
    %s15 = ssub.s32 %s9, 2
    %s25 = sadd.s32 1, %s18
    %p26 = scmp.ge.s32.totalorder %s25, 1
    %s27 = scalar_select %p26, 0, %s25
    %s28 = sadd.s32 1, %s17
    %s29 = scalar_select %p26, %s28, %s17
    %p30 = scmp.ge.s32.totalorder %s29, 1
    %s31 = scalar_select %p30, 0, %s29
    %s32 = sadd.s32 1, %s16
    %s33 = scalar_select %p30, %s32, %s16
    %p34 = scmp.ge.s32.totalorder %s33, 4
    %s35 = scalar_select %p34, 0, %s33
    %s36 = ssub.s32 %s16, %s35
    %s37 = ssub.s32 %s18, %s27
    %s38 = sor.u32 %s36, %s37
    %p39 = scmp.eq.s32.totalorder %s38, 0
    %s41 = sadd.s32 %s40, 1
    %s42 = scalar_select %p39, %s40, %s41
    %p45 = pneg %p39
    %p46 = scmp.eq.s32.totalorder %s9, 3
    %p47 = por %p45, %p46
    %p48 = scmp.ne.s32.totalorder %s40, %s43
    %p49 = scmp.eq.s32.totalorder %s9, 0
    %p50 = por %p48, %p49
    %p51 = scmp.ne.s32.totalorder %s40, %s43
    %p52 = scmp.eq.s32.totalorder %s14, 3
    %p53 = por %p51, %p52
    %p54 = scmp.ne.s32.totalorder %s43, %s44
    %p55 = scmp.eq.s32.totalorder %s14, 0
    %p56 = por %p54, %p55
    %p57 = scmp.ne.s32.totalorder %s43, %s44
    %p58 = scmp.eq.s32.totalorder %s15, 3
    %p59 = por %p57, %p58
    %p61 = scmp.ne.s32.totalorder %s44, %s60
    %p62 = scmp.eq.s32.totalorder %s15, 0
    %p63 = por %p61, %p62
    %s64 = ssub.s32 %s18, %s27
    %s65 = ssub.s32 %s17, %s31
    %s66 = sor.u32 %s64, %s65
    %p67 = scmp.eq.s32.totalorder %s66, 0
    %s69 = sadd.s32 %s68, 1
    %s70 = scalar_select %p67, %s68, %s69
    %p73 = pneg %p67
    %p74 = scmp.eq.s32.totalorder %s9, 3
    %p75 = por %p73, %p74
    %p76 = scmp.ne.s32.totalorder %s68, %s71
    %p77 = scmp.eq.s32.totalorder %s9, 0
    %p78 = por %p76, %p77
    %p79 = scmp.ne.s32.totalorder %s68, %s71
    %p80 = scmp.eq.s32.totalorder %s14, 3
    %p81 = por %p79, %p80
    %p82 = scmp.ne.s32.totalorder %s71, %s72
    %p83 = scmp.eq.s32.totalorder %s14, 0
    %p84 = por %p82, %p83
    %p85 = scmp.ne.s32.totalorder %s71, %s72
    %p86 = scmp.eq.s32.totalorder %s15, 3
    %p87 = por %p85, %p86
    %p89 = scmp.ne.s32.totalorder %s72, %s88
    %p90 = scmp.eq.s32.totalorder %s15, 0
    %p91 = por %p89, %p90
    %s92 = ssub.s32 %s17, %s31
    %p93 = scmp.eq.s32.totalorder %s92, 0
    %s95 = sadd.s32 %s94, 1
    %s96 = scalar_select %p93, %s94, %s95
    %p99 = pneg %p93
    %p100 = scmp.eq.s32.totalorder %s9, 3
    %p101 = por %p99, %p100
    %p102 = scmp.ne.s32.totalorder %s94, %s97
    %p103 = scmp.eq.s32.totalorder %s9, 0
    %p104 = por %p102, %p103
    %p105 = scmp.ne.s32.totalorder %s94, %s97
    %p106 = scmp.eq.s32.totalorder %s14, 3
    %p107 = por %p105, %p106
    %p108 = scmp.ne.s32.totalorder %s97, %s98
    %p109 = scmp.eq.s32.totalorder %s14, 0
    %p110 = por %p108, %p109
    %p111 = scmp.ne.s32.totalorder %s97, %s98
    %p112 = scmp.eq.s32.totalorder %s15, 3
    %p113 = por %p111, %p112
    %p115 = scmp.ne.s32.totalorder %s98, %s114
    %p116 = scmp.eq.s32.totalorder %s15, 0
    %p117 = por %p115, %p116
    %s118 = ssub.s32 %s16, %s35
    %s119 = ssub.s32 %s17, %s31
    %s120 = sor.u32 %s118, %s119
    %p121 = scmp.eq.s32.totalorder %s120, 0
    %s123 = sadd.s32 %s122, 1
    %s124 = scalar_select %p121, %s122, %s123
    %p127 = pneg %p121
    %p128 = scmp.eq.s32.totalorder %s9, 3
    %p129 = por %p127, %p128
    %p130 = scmp.ne.s32.totalorder %s122, %s125
    %p131 = scmp.eq.s32.totalorder %s9, 0
    %p132 = por %p130, %p131
    %p133 = scmp.ne.s32.totalorder %s122, %s125
    %p134 = scmp.eq.s32.totalorder %s14, 3
    %p135 = por %p133, %p134
    %p136 = scmp.ne.s32.totalorder %s125, %s126
    %p137 = scmp.eq.s32.totalorder %s14, 0
    %p138 = por %p136, %p137
    %p139 = scmp.ne.s32.totalorder %s125, %s126
    %p140 = scmp.eq.s32.totalorder %s15, 3
    %p141 = por %p139, %p140
    %p143 = scmp.ne.s32.totalorder %s126, %s142
    %p144 = scmp.eq.s32.totalorder %s15, 0
    %p145 = por %p143, %p144
    %p146 = scmp.le.s32.totalorder 1, %s9
    %p147 = scmp.lt.s32.totalorder %s9, 5
    %p148 = pnand %p146, %p147
    %p149 = pneg %p148
    // Predicated region
    $region9: #{inception_b_forward.6} parent=5 // pred_check
      _
    $region10: #{inception_b_forward.6} parent=5 // pred_check_branch
      %151 = sbr.rel (%p148) target = $region12
    $region11: #{inception_b_forward.6} parent=5 // pred_region
      %s152 = ssub.s32 %s9, 1
      // Predicated region
      $region13: #{inception_b_forward.6} parent=11 // pred_check
        %p153 = pneg %p84
      $region14: #{inception_b_forward.6} parent=11 // pred_check_branch
        %155 = sbr.rel (%p153) target = $region16
      $region15: #{inception_b_forward.6} parent=11 // pred_region
        %s156 = smul.u32 80, %s21
        %p157 = scmp.lt.s32.totalorder %s156, 79
        %s158 = scalar_select %p157, %s156, 79
        %p159 = scmp.lt.s32.totalorder %s20, 0
        %s160 = scalar_select %p159, %s20, 0
        %s161 = sadd.s32 %s160, %s158
        %s162 = smul.addr %s161, 4
        %s163 = scalar_lea.vmem %s1, %s162
        %s164 = smul.u32 80, %s21
      $region16: #{inception_b_forward.6} parent=11 // pred_fallthru
        _
      // Predicated region
      $region17: #{inception_b_forward.6} parent=11 // pred_check
        %p165 = pneg %p110
      $region18: #{inception_b_forward.6} parent=11 // pred_check_branch
        %167 = sbr.rel (%p165) target = $region20
      $region19: #{inception_b_forward.6} parent=11 // pred_region
        %p168 = scmp.lt.s32.totalorder %s20, 0
        %s169 = scalar_select %p168, %s20, 0
        %s170 = smul.addr %s169, 2
        %s171 = scalar_lea.vmem %s2, %s170
      $region20: #{inception_b_forward.6} parent=11 // pred_fallthru
        _
    $region12: #{inception_b_forward.6} parent=5 // pred_fallthru
      _
    %p172 = scmp.lt.s32.totalorder %s9, 4
    // Predicated region
    $region21: #{inception_b_forward.6} parent=5 // pred_check
      %p173 = pneg %p172
    $region22: #{inception_b_forward.6} parent=5 // pred_check_branch
      %175 = sbr.rel (%p173) target = $region24
    $region23: #{inception_b_forward.6} parent=5 // pred_region
      // Predicated region
      $region25: #{inception_b_forward.6} parent=23 // pred_check
        %p176 = pneg %p50
      $region26: #{inception_b_forward.6} parent=23 // pred_check_branch
        %178 = sbr.rel (%p176) target = $region28
      $region27: #{inception_b_forward.6} parent=23 // pred_region
        %s179 = smul.u32 16, %s16
        %s180 = smul.u32 5, %s18
        %p181 = scmp.lt.s32.totalorder %s179, 63
        %s182 = scalar_select %p181, %s179, 63
        %p183 = scmp.lt.s32.totalorder %s180, 4
        %s184 = scalar_select %p183, %s180, 4
        %s185 = smul.addr %s182, 5
        %s186 = sadd.s32 %s184, %s185
        %s187 = smul.addr %s186, 4
        %s188 = scalar_lea.vmem %s0, %s187
        %s189 = smul.u32 16, %s16
        %s190 = smul.u32 5, %s18
      $region28: #{inception_b_forward.6} parent=23 // pred_fallthru
        _
    $region24: #{inception_b_forward.6} parent=5 // pred_fallthru
      _
    %p191 = scmp.le.s32.totalorder 1, %s9
    %p192 = scmp.lt.s32.totalorder %s9, 5
    %p193 = pnand %p191, %p192
    %p194 = pneg %p193
    // Predicated region
    $region29: #{inception_b_forward.6} parent=5 // pred_check
      _
    $region30: #{inception_b_forward.6} parent=5 // pred_check_branch
      %196 = sbr.rel (%p193) target = $region32
    $region31: #{inception_b_forward.6} parent=5 // pred_region
      %s197 = ssub.s32 %s9, 1
      %s198 = smul.u32 16, %s19
      %s199 = smul.u32 5, %s21
      %p200 = scmp.lt.s32.totalorder %s198, 63
      %s201 = scalar_select %p200, %s198, 63
      %p202 = scmp.lt.s32.totalorder %s199, 4
      %s203 = scalar_select %p202, %s199, 4
      %s204 = smul.addr %s201, 5
      %s205 = sadd.s32 %s203, %s204
      %s206 = smul.addr %s205, 4
      %s207 = scalar_lea.vmem %s0, %s206
      %p208 = pneg %p56
      %p209 = pneg %p53
      %s210 = smul.u32 80, %s21
      %p211 = scmp.lt.s32.totalorder %s210, 79
      %s212 = scalar_select %p211, %s210, 79
      %p213 = scmp.lt.s32.totalorder %s20, 0
      %s214 = scalar_select %p213, %s20, 0
      %s215 = sadd.s32 %s214, %s212
      %s216 = smul.addr %s215, 4
      %s217 = scalar_lea.vmem %s1, %s216
      %p218 = pneg %p84
      %p219 = pneg %p81
      %p220 = scmp.lt.s32.totalorder %s20, 0
      %s221 = scalar_select %p220, %s20, 0
      %s222 = smul.addr %s221, 2
      %s223 = scalar_lea.vmem %s2, %s222
      %p224 = pneg %p110
      %p225 = pneg %p107
      %p226 = pneg %p138
      %p227 = pneg %p135
      %s228 = smul.u32 16, %s19
      %p229 = scmp.lt.s32.totalorder %s228, 63
      %s230 = scalar_select %p229, %s228, 63
      %p231 = scmp.lt.s32.totalorder %s20, 0
      %s232 = scalar_select %p231, %s20, 0
      %s233 = sadd.s32 %s232, %s230
      %s234 = smul.addr %s233, 4
      %s235 = scalar_lea.vmem %s3, %s234
      %s236 = smul.u32 16, %s19
      %s237 = smul.u32 5, %s21
      %p238 = scmp.lt.s32.totalorder %s236, 63
      %s239 = scalar_select %p238, %s236, 63
      %p240 = scmp.lt.s32.totalorder %s237, 4
      %s241 = scalar_select %p240, %s237, 4
      %s242 = smul.addr %s239, 5
      %s243 = sadd.s32 %s241, %s242
      %s244 = smul.addr %s243, 4
      %s245 = scalar_lea.vmem %s0, %s244
      %s246 = smul.u32 16, %s19
      %s247 = smul.u32 5, %s21
      %s248 = smul.u32 80, %s21
      %p249 = scmp.lt.s32.totalorder %s248, 79
      %s250 = scalar_select %p249, %s248, 79
      %p251 = scmp.lt.s32.totalorder %s20, 0
      %s252 = scalar_select %p251, %s20, 0
      %s253 = sadd.s32 %s252, %s250
      %s254 = smul.addr %s253, 4
      %s255 = scalar_lea.vmem %s1, %s254
      %s256 = smul.u32 80, %s21
      %p257 = scmp.lt.s32.totalorder %s20, 0
      %s258 = scalar_select %p257, %s20, 0
      %s259 = smul.addr %s258, 2
      %s260 = scalar_lea.vmem %s2, %s259
      %s261 = smul.u32 16, %s19
      %p262 = scmp.lt.s32.totalorder %s261, 63
      %s263 = scalar_select %p262, %s261, 63
      %p264 = scmp.lt.s32.totalorder %s20, 0
      %s265 = scalar_select %p264, %s20, 0
      %s266 = sadd.s32 %s265, %s263
      %s267 = smul.addr %s266, 4
      %s268 = scalar_lea.vmem %s3, %s267
      %s269 = smul.u32 16, %s19
      %p270 = scmp.eq.s32.totalorder %s21, 0
      // Predicated region
      $region33: #{inception_b_forward.6} parent=31 // pred_check
        %p271 = pneg %p270
      $region34: #{inception_b_forward.6} parent=31 // pred_check_branch
        %273 = sbr.rel (%p271) target = $region36
      $region35: #{inception_b_forward.6} parent=31 // pred_region
        %274 = vst [vmem:[#allocation2] sm:$0xff] 0.0
        %275 = vst [vmem:[#allocation2 + $0x8] sm:$0xff] 0.0
        %276 = vst [vmem:[#allocation2 + $0x10] sm:$0xff] 0.0
        %277 = vst [vmem:[#allocation2 + $0x18] sm:$0xff] 0.0
        %278 = vst [vmem:[#allocation2 + $0x20] sm:$0xff] 0.0
        %279 = vst [vmem:[#allocation2 + $0x28] sm:$0xff] 0.0
        %280 = vst [vmem:[#allocation2 + $0x30] sm:$0xff] 0.0
        %281 = vst [vmem:[#allocation2 + $0x38] sm:$0xff] 0.0
        %282 = vst [vmem:[#allocation2 + $0x40] sm:$0xff] 0.0
        %283 = vst [vmem:[#allocation2 + $0x48] sm:$0xff] 0.0
        %284 = vst [vmem:[#allocation2 + $0x50] sm:$0xff] 0.0
        %285 = vst [vmem:[#allocation2 + $0x58] sm:$0xff] 0.0
        %286 = vst [vmem:[#allocation2 + $0x60] sm:$0xff] 0.0
        %287 = vst [vmem:[#allocation2 + $0x68] sm:$0xff] 0.0
        %288 = vst [vmem:[#allocation2 + $0x70] sm:$0xff] 0.0
        %289 = vst [vmem:[#allocation2 + $0x78] sm:$0xff] 0.0
      $region36: #{inception_b_forward.6} parent=31 // pred_fallthru
        _
      %v290 = vld [vmem:[#allocation2] sm:$0xff]
      %v291 = vld [vmem:[#allocation2 + $0x8] sm:$0xff]
      %v292 = vld [vmem:[#allocation2 + $0x10] sm:$0xff]
      %v293 = vld [vmem:[#allocation2 + $0x18] sm:$0xff]
      %v294 = vld [vmem:[#allocation2 + $0x20] sm:$0xff]
      %v295 = vld [vmem:[#allocation2 + $0x28] sm:$0xff]
      %v296 = vld [vmem:[#allocation2 + $0x30] sm:$0xff]
      %v297 = vld [vmem:[#allocation2 + $0x38] sm:$0xff]
      %v298 = vld [vmem:[#allocation2 + $0x40] sm:$0xff]
      %v299 = vld [vmem:[#allocation2 + $0x48] sm:$0xff]
      %v300 = vld [vmem:[#allocation2 + $0x50] sm:$0xff]
      %v301 = vld [vmem:[#allocation2 + $0x58] sm:$0xff]
      %v302 = vld [vmem:[#allocation2 + $0x60] sm:$0xff]
      %v303 = vld [vmem:[#allocation2 + $0x68] sm:$0xff]
      %v304 = vld [vmem:[#allocation2 + $0x70] sm:$0xff]
      %v305 = vld [vmem:[#allocation2 + $0x78] sm:$0xff]
      %v306 = vld [vmem:[%s245] sm:$0xff]
      %v307 = vld [vmem:[%s245 + $0x8] sm:$0xff]
      %v308 = vld [vmem:[%s245 + $0x10] sm:$0xf]
      %v309 = vld [vmem:[%s245 + $0x14] sm:$0xff]
      %v310 = vld [vmem:[%s245 + $0x1c] sm:$0xff]
      %v311 = vld [vmem:[%s245 + $0x24] sm:$0xf]
      %v312 = vld [vmem:[%s245 + $0x28] sm:$0xff]
      %v313 = vld [vmem:[%s245 + $0x30] sm:$0xff]
      %v314 = vld [vmem:[%s245 + $0x38] sm:$0xf]
      %v315 = vld [vmem:[%s245 + $0x3c] sm:$0xff]
      %v316 = vld [vmem:[%s245 + $0x44] sm:$0xff]
      %v317 = vld [vmem:[%s245 + $0x4c] sm:$0xf]
      %v318 = vld [vmem:[%s245 + $0x50] sm:$0xff]
      %v319 = vld [vmem:[%s245 + $0x58] sm:$0xff]
      %v320 = vld [vmem:[%s245 + $0x60] sm:$0xf]
      %v321 = vld [vmem:[%s245 + $0x64] sm:$0xff]
      %v322 = vld [vmem:[%s245 + $0x6c] sm:$0xff]
      %v323 = vld [vmem:[%s245 + $0x74] sm:$0xf]
      %v324 = vld [vmem:[%s245 + $0x78] sm:$0xff]
      %v325 = vld [vmem:[%s245 + $0x80] sm:$0xff]
      %v326 = vld [vmem:[%s245 + $0x88] sm:$0xf]
      %v327 = vld [vmem:[%s245 + $0x8c] sm:$0xff]
      %v328 = vld [vmem:[%s245 + $0x94] sm:$0xff]
      %v329 = vld [vmem:[%s245 + $0x9c] sm:$0xf]
      %v330 = vld [vmem:[%s245 + $0xa0] sm:$0xff]
      %v331 = vld [vmem:[%s245 + $0xa8] sm:$0xff]
      %v332 = vld [vmem:[%s245 + $0xb0] sm:$0xf]
      %v333 = vld [vmem:[%s245 + $0xb4] sm:$0xff]
      %v334 = vld [vmem:[%s245 + $0xbc] sm:$0xff]
      %v335 = vld [vmem:[%s245 + $0xc4] sm:$0xf]
      %v336 = vld [vmem:[%s245 + $0xc8] sm:$0xff]
      %v337 = vld [vmem:[%s245 + $0xd0] sm:$0xff]
      %v338 = vld [vmem:[%s245 + $0xd8] sm:$0xf]
      %v339 = vld [vmem:[%s245 + $0xdc] sm:$0xff]
      %v340 = vld [vmem:[%s245 + $0xe4] sm:$0xff]
      %v341 = vld [vmem:[%s245 + $0xec] sm:$0xf]
      %v342 = vld [vmem:[%s245 + $0xf0] sm:$0xff]
      %v343 = vld [vmem:[%s245 + $0xf8] sm:$0xff]
      %v344 = vld [vmem:[%s245 + $0x100] sm:$0xf]
      %v345 = vld [vmem:[%s245 + $0x104] sm:$0xff]
      %v346 = vld [vmem:[%s245 + $0x10c] sm:$0xff]
      %v347 = vld [vmem:[%s245 + $0x114] sm:$0xf]
      %v348 = vld [vmem:[%s245 + $0x118] sm:$0xff]
      %v349 = vld [vmem:[%s245 + $0x120] sm:$0xff]
      %v350 = vld [vmem:[%s245 + $0x128] sm:$0xf]
      %v351 = vld [vmem:[%s245 + $0x12c] sm:$0xff]
      %v352 = vld [vmem:[%s245 + $0x134] sm:$0xff]
      %v353 = vld [vmem:[%s245 + $0x13c] sm:$0xf]
      %v354 = vld [vmem:[%s255] sm:$0xf]
      %v355 = vld [vmem:[%s255 + $0x4] sm:$0xf]
      %v356 = vld [vmem:[%s255 + $0x8] sm:$0xf]
      %v357 = vld [vmem:[%s255 + $0xc] sm:$0xf]
      %v358 = vld [vmem:[%s255 + $0x10] sm:$0xf]
      %v359 = vld [vmem:[%s255 + $0x14] sm:$0xf]
      %v360 = vld [vmem:[%s255 + $0x18] sm:$0xf]
      %v361 = vld [vmem:[%s255 + $0x1c] sm:$0xf]
      %v362 = vld [vmem:[%s255 + $0x20] sm:$0xf]
      %v363 = vld [vmem:[%s255 + $0x24] sm:$0xf]
      %v364 = vld [vmem:[%s255 + $0x28] sm:$0xf]
      %v365 = vld [vmem:[%s255 + $0x2c] sm:$0xf]
      %v366 = vld [vmem:[%s255 + $0x30] sm:$0xf]
      %v367 = vld [vmem:[%s255 + $0x34] sm:$0xf]
      %v368 = vld [vmem:[%s255 + $0x38] sm:$0xf]
      %v369 = vld [vmem:[%s255 + $0x3c] sm:$0xf]
      %v370 = vld [vmem:[%s255 + $0x40] sm:$0xf]
      %v371 = vld [vmem:[%s255 + $0x44] sm:$0xf]
      %v372 = vld [vmem:[%s255 + $0x48] sm:$0xf]
      %v373 = vld [vmem:[%s255 + $0x4c] sm:$0xf]
      %v374 = vld [vmem:[%s255 + $0x50] sm:$0xf]
      %v375 = vld [vmem:[%s255 + $0x54] sm:$0xf]
      %v376 = vld [vmem:[%s255 + $0x58] sm:$0xf]
      %v377 = vld [vmem:[%s255 + $0x5c] sm:$0xf]
      %v378 = vld [vmem:[%s255 + $0x60] sm:$0xf]
      %v379 = vld [vmem:[%s255 + $0x64] sm:$0xf]
      %v380 = vld [vmem:[%s255 + $0x68] sm:$0xf]
      %v381 = vld [vmem:[%s255 + $0x6c] sm:$0xf]
      %v382 = vld [vmem:[%s255 + $0x70] sm:$0xf]
      %v383 = vld [vmem:[%s255 + $0x74] sm:$0xf]
      %v384 = vld [vmem:[%s255 + $0x78] sm:$0xf]
      %v385 = vld [vmem:[%s255 + $0x7c] sm:$0xf]
      %v386 = vld [vmem:[%s255 + $0x80] sm:$0xf]
      %v387 = vld [vmem:[%s255 + $0x84] sm:$0xf]
      %v388 = vld [vmem:[%s255 + $0x88] sm:$0xf]
      %v389 = vld [vmem:[%s255 + $0x8c] sm:$0xf]
      %v390 = vld [vmem:[%s255 + $0x90] sm:$0xf]
      %v391 = vld [vmem:[%s255 + $0x94] sm:$0xf]
      %v392 = vld [vmem:[%s255 + $0x98] sm:$0xf]
      %v393 = vld [vmem:[%s255 + $0x9c] sm:$0xf]
      %v394 = vld [vmem:[%s255 + $0xa0] sm:$0xf]
      %v395 = vld [vmem:[%s255 + $0xa4] sm:$0xf]
      %v396 = vld [vmem:[%s255 + $0xa8] sm:$0xf]
      %v397 = vld [vmem:[%s255 + $0xac] sm:$0xf]
      %v398 = vld [vmem:[%s255 + $0xb0] sm:$0xf]
      %v399 = vld [vmem:[%s255 + $0xb4] sm:$0xf]
      %v400 = vld [vmem:[%s255 + $0xb8] sm:$0xf]
      %v401 = vld [vmem:[%s255 + $0xbc] sm:$0xf]
      %v402 = vld [vmem:[%s255 + $0xc0] sm:$0xf]
      %v403 = vld [vmem:[%s255 + $0xc4] sm:$0xf]
      %v404 = vld [vmem:[%s255 + $0xc8] sm:$0xf]
      %v405 = vld [vmem:[%s255 + $0xcc] sm:$0xf]
      %v406 = vld [vmem:[%s255 + $0xd0] sm:$0xf]
      %v407 = vld [vmem:[%s255 + $0xd4] sm:$0xf]
      %v408 = vld [vmem:[%s255 + $0xd8] sm:$0xf]
      %v409 = vld [vmem:[%s255 + $0xdc] sm:$0xf]
      %v410 = vld [vmem:[%s255 + $0xe0] sm:$0xf]
      %v411 = vld [vmem:[%s255 + $0xe4] sm:$0xf]
      %v412 = vld [vmem:[%s255 + $0xe8] sm:$0xf]
      %v413 = vld [vmem:[%s255 + $0xec] sm:$0xf]
      %v414 = vld [vmem:[%s255 + $0xf0] sm:$0xf]
      %v415 = vld [vmem:[%s255 + $0xf4] sm:$0xf]
      %v416 = vld [vmem:[%s255 + $0xf8] sm:$0xf]
      %v417 = vld [vmem:[%s255 + $0xfc] sm:$0xf]
      %v418 = vld [vmem:[%s255 + $0x100] sm:$0xf]
      %v419 = vld [vmem:[%s255 + $0x104] sm:$0xf]
      %v420 = vld [vmem:[%s255 + $0x108] sm:$0xf]
      %v421 = vld [vmem:[%s255 + $0x10c] sm:$0xf]
      %v422 = vld [vmem:[%s255 + $0x110] sm:$0xf]
      %v423 = vld [vmem:[%s255 + $0x114] sm:$0xf]
      %v424 = vld [vmem:[%s255 + $0x118] sm:$0xf]
      %v425 = vld [vmem:[%s255 + $0x11c] sm:$0xf]
      %v426 = vld [vmem:[%s255 + $0x120] sm:$0xf]
      %v427 = vld [vmem:[%s255 + $0x124] sm:$0xf]
      %v428 = vld [vmem:[%s255 + $0x128] sm:$0xf]
      %v429 = vld [vmem:[%s255 + $0x12c] sm:$0xf]
      %v430 = vld [vmem:[%s255 + $0x130] sm:$0xf]
      %v431 = vld [vmem:[%s255 + $0x134] sm:$0xf]
      %v432 = vld [vmem:[%s255 + $0x138] sm:$0xf]
      %v433 = vld [vmem:[%s255 + $0x13c] sm:$0xf]
      %v482 = vunpack.c.l.b16 %v306
      %v483 = vunpack.c.h.b16 %v306
      %v484 = vunpack.c.l.b16 %v307
      %v485 = vunpack.c.h.b16 %v307
      %v486 = vunpack.c.l.b16 %v308
      %v487 = vunpack.c.l.b16 %v309
      %v488 = vunpack.c.h.b16 %v309
      %v489 = vunpack.c.l.b16 %v310
      %v490 = vunpack.c.h.b16 %v310
      %v491 = vunpack.c.l.b16 %v311
      %v492 = vunpack.c.l.b16 %v312
      %v493 = vunpack.c.h.b16 %v312
      %v494 = vunpack.c.l.b16 %v313
      %v495 = vunpack.c.h.b16 %v313
      %v496 = vunpack.c.l.b16 %v314
      %v497 = vunpack.c.l.b16 %v315
      %v498 = vunpack.c.h.b16 %v315
      %v499 = vunpack.c.l.b16 %v316
      %v500 = vunpack.c.h.b16 %v316
      %v501 = vunpack.c.l.b16 %v317
      %v502 = vunpack.c.l.b16 %v318
      %v503 = vunpack.c.h.b16 %v318
      %v504 = vunpack.c.l.b16 %v319
      %v505 = vunpack.c.h.b16 %v319
      %v506 = vunpack.c.l.b16 %v320
      %v507 = vunpack.c.l.b16 %v321
      %v508 = vunpack.c.h.b16 %v321
      %v509 = vunpack.c.l.b16 %v322
      %v510 = vunpack.c.h.b16 %v322
      %v511 = vunpack.c.l.b16 %v323
      %v512 = vunpack.c.l.b16 %v324
      %v513 = vunpack.c.h.b16 %v324
      %v514 = vunpack.c.l.b16 %v325
      %v515 = vunpack.c.h.b16 %v325
      %v516 = vunpack.c.l.b16 %v326
      %v517 = vunpack.c.l.b16 %v327
      %v518 = vunpack.c.h.b16 %v327
      %v519 = vunpack.c.l.b16 %v328
      %v520 = vunpack.c.h.b16 %v328
      %v521 = vunpack.c.l.b16 %v329
      %v522 = vunpack.c.l.b16 %v330
      %v523 = vunpack.c.h.b16 %v330
      %v524 = vunpack.c.l.b16 %v331
      %v525 = vunpack.c.h.b16 %v331
      %v526 = vunpack.c.l.b16 %v332
      %v527 = vunpack.c.l.b16 %v333
      %v528 = vunpack.c.h.b16 %v333
      %v529 = vunpack.c.l.b16 %v334
      %v530 = vunpack.c.h.b16 %v334
      %v531 = vunpack.c.l.b16 %v335
      %v532 = vunpack.c.l.b16 %v336
      %v533 = vunpack.c.h.b16 %v336
      %v534 = vunpack.c.l.b16 %v337
      %v535 = vunpack.c.h.b16 %v337
      %v536 = vunpack.c.l.b16 %v338
      %v537 = vunpack.c.l.b16 %v339
      %v538 = vunpack.c.h.b16 %v339
      %v539 = vunpack.c.l.b16 %v340
      %v540 = vunpack.c.h.b16 %v340
      %v541 = vunpack.c.l.b16 %v341
      %v542 = vunpack.c.l.b16 %v342
      %v543 = vunpack.c.h.b16 %v342
      %v544 = vunpack.c.l.b16 %v343
      %v545 = vunpack.c.h.b16 %v343
      %v546 = vunpack.c.l.b16 %v344
      %v547 = vunpack.c.l.b16 %v345
      %v548 = vunpack.c.h.b16 %v345
      %v549 = vunpack.c.l.b16 %v346
      %v550 = vunpack.c.h.b16 %v346
      %v551 = vunpack.c.l.b16 %v347
      %v552 = vunpack.c.l.b16 %v348
      %v553 = vunpack.c.h.b16 %v348
      %v554 = vunpack.c.l.b16 %v349
      %v555 = vunpack.c.h.b16 %v349
      %v556 = vunpack.c.l.b16 %v350
      %v557 = vunpack.c.l.b16 %v351
      %v558 = vunpack.c.h.b16 %v351
      %v559 = vunpack.c.l.b16 %v352
      %v560 = vunpack.c.h.b16 %v352
      %v561 = vunpack.c.l.b16 %v353
      %v562 = vpack.c.b16 %v487, %v482
      %v563 = vpack.c.b16 %v488, %v483
      %v564 = vpack.c.b16 %v489, %v484
      %v565 = vpack.c.b16 %v490, %v485
      %v566 = vpack.c.b16 %v491, %v486
      %v567 = vpack.c.b16 %v497, %v492
      %v568 = vpack.c.b16 %v498, %v493
      %v569 = vpack.c.b16 %v499, %v494
      %v570 = vpack.c.b16 %v500, %v495
      %v571 = vpack.c.b16 %v501, %v496
      %v572 = vpack.c.b16 %v507, %v502
      %v573 = vpack.c.b16 %v508, %v503
      %v574 = vpack.c.b16 %v509, %v504
      %v575 = vpack.c.b16 %v510, %v505
      %v576 = vpack.c.b16 %v511, %v506
      %v577 = vpack.c.b16 %v517, %v512
      %v578 = vpack.c.b16 %v518, %v513
      %v579 = vpack.c.b16 %v519, %v514
      %v580 = vpack.c.b16 %v520, %v515
      %v581 = vpack.c.b16 %v521, %v516
      %v582 = vpack.c.b16 %v527, %v522
      %v583 = vpack.c.b16 %v528, %v523
      %v584 = vpack.c.b16 %v529, %v524
      %v585 = vpack.c.b16 %v530, %v525
      %v586 = vpack.c.b16 %v531, %v526
      %v587 = vpack.c.b16 %v537, %v532
      %v588 = vpack.c.b16 %v538, %v533
      %v589 = vpack.c.b16 %v539, %v534
      %v590 = vpack.c.b16 %v540, %v535
      %v591 = vpack.c.b16 %v541, %v536
      %v592 = vpack.c.b16 %v547, %v542
      %v593 = vpack.c.b16 %v548, %v543
      %v594 = vpack.c.b16 %v549, %v544
      %v595 = vpack.c.b16 %v550, %v545
      %v596 = vpack.c.b16 %v551, %v546
      %v597 = vpack.c.b16 %v557, %v552
      %v598 = vpack.c.b16 %v558, %v553
      %v599 = vpack.c.b16 %v559, %v554
      %v600 = vpack.c.b16 %v560, %v555
      %v601 = vpack.c.b16 %v561, %v556
      %v722 = vunpack.c.l.b16 %v354
      %v723 = vunpack.c.l.b16 %v355
      %v724 = vunpack.c.l.b16 %v356
      %v725 = vunpack.c.l.b16 %v357
      %v726 = vunpack.c.l.b16 %v358
      %v727 = vunpack.c.l.b16 %v359
      %v728 = vunpack.c.l.b16 %v360
      %v729 = vunpack.c.l.b16 %v361
      %v730 = vunpack.c.l.b16 %v362
      %v731 = vunpack.c.l.b16 %v363
      %v732 = vunpack.c.l.b16 %v364
      %v733 = vunpack.c.l.b16 %v365
      %v734 = vunpack.c.l.b16 %v366
      %v735 = vunpack.c.l.b16 %v367
      %v736 = vunpack.c.l.b16 %v368
      %v737 = vunpack.c.l.b16 %v369
      %v738 = vunpack.c.l.b16 %v370
      %v739 = vunpack.c.l.b16 %v371
      %v740 = vunpack.c.l.b16 %v372
      %v741 = vunpack.c.l.b16 %v373
      %v742 = vunpack.c.l.b16 %v374
      %v743 = vunpack.c.l.b16 %v375
      %v744 = vunpack.c.l.b16 %v376
      %v745 = vunpack.c.l.b16 %v377
      %v746 = vunpack.c.l.b16 %v378
      %v747 = vunpack.c.l.b16 %v379
      %v748 = vunpack.c.l.b16 %v380
      %v749 = vunpack.c.l.b16 %v381
      %v750 = vunpack.c.l.b16 %v382
      %v751 = vunpack.c.l.b16 %v383
      %v752 = vunpack.c.l.b16 %v384
      %v753 = vunpack.c.l.b16 %v385
      %v754 = vunpack.c.l.b16 %v386
      %v755 = vunpack.c.l.b16 %v387
      %v756 = vunpack.c.l.b16 %v388
      %v757 = vunpack.c.l.b16 %v389
      %v758 = vunpack.c.l.b16 %v390
      %v759 = vunpack.c.l.b16 %v391
      %v760 = vunpack.c.l.b16 %v392
      %v761 = vunpack.c.l.b16 %v393
      %v762 = vunpack.c.l.b16 %v394
      %v763 = vunpack.c.l.b16 %v395
      %v764 = vunpack.c.l.b16 %v396
      %v765 = vunpack.c.l.b16 %v397
      %v766 = vunpack.c.l.b16 %v398
      %v767 = vunpack.c.l.b16 %v399
      %v768 = vunpack.c.l.b16 %v400
      %v769 = vunpack.c.l.b16 %v401
      %v770 = vunpack.c.l.b16 %v402
      %v771 = vunpack.c.l.b16 %v403
      %v772 = vunpack.c.l.b16 %v404
      %v773 = vunpack.c.l.b16 %v405
      %v774 = vunpack.c.l.b16 %v406
      %v775 = vunpack.c.l.b16 %v407
      %v776 = vunpack.c.l.b16 %v408
      %v777 = vunpack.c.l.b16 %v409
      %v778 = vunpack.c.l.b16 %v410
      %v779 = vunpack.c.l.b16 %v411
      %v780 = vunpack.c.l.b16 %v412
      %v781 = vunpack.c.l.b16 %v413
      %v782 = vunpack.c.l.b16 %v414
      %v783 = vunpack.c.l.b16 %v415
      %v784 = vunpack.c.l.b16 %v416
      %v785 = vunpack.c.l.b16 %v417
      %v786 = vunpack.c.l.b16 %v418
      %v787 = vunpack.c.l.b16 %v419
      %v788 = vunpack.c.l.b16 %v420
      %v789 = vunpack.c.l.b16 %v421
      %v790 = vunpack.c.l.b16 %v422
      %v791 = vunpack.c.l.b16 %v423
      %v792 = vunpack.c.l.b16 %v424
      %v793 = vunpack.c.l.b16 %v425
      %v794 = vunpack.c.l.b16 %v426
      %v795 = vunpack.c.l.b16 %v427
      %v796 = vunpack.c.l.b16 %v428
      %v797 = vunpack.c.l.b16 %v429
      %v798 = vunpack.c.l.b16 %v430
      %v799 = vunpack.c.l.b16 %v431
      %v800 = vunpack.c.l.b16 %v432
      %v801 = vunpack.c.l.b16 %v433
      %v802 = vpack.c.b16 %v723, %v722
      %v803 = vpack.c.b16 %v725, %v724
      %v804 = vpack.c.b16 %v727, %v726
      %v805 = vpack.c.b16 %v729, %v728
      %v806 = vpack.c.b16 %v731, %v730
      %v807 = vpack.c.b16 %v733, %v732
      %v808 = vpack.c.b16 %v735, %v734
      %v809 = vpack.c.b16 %v737, %v736
      %v810 = vpack.c.b16 %v739, %v738
      %v811 = vpack.c.b16 %v741, %v740
      %v812 = vpack.c.b16 %v743, %v742
      %v813 = vpack.c.b16 %v745, %v744
      %v814 = vpack.c.b16 %v747, %v746
      %v815 = vpack.c.b16 %v749, %v748
      %v816 = vpack.c.b16 %v751, %v750
      %v817 = vpack.c.b16 %v753, %v752
      %v818 = vpack.c.b16 %v755, %v754
      %v819 = vpack.c.b16 %v757, %v756
      %v820 = vpack.c.b16 %v759, %v758
      %v821 = vpack.c.b16 %v761, %v760
      %v822 = vpack.c.b16 %v763, %v762
      %v823 = vpack.c.b16 %v765, %v764
      %v824 = vpack.c.b16 %v767, %v766
      %v825 = vpack.c.b16 %v769, %v768
      %v826 = vpack.c.b16 %v771, %v770
      %v827 = vpack.c.b16 %v773, %v772
      %v828 = vpack.c.b16 %v775, %v774
      %v829 = vpack.c.b16 %v777, %v776
      %v830 = vpack.c.b16 %v779, %v778
      %v831 = vpack.c.b16 %v781, %v780
      %v832 = vpack.c.b16 %v783, %v782
      %v833 = vpack.c.b16 %v785, %v784
      %v834 = vpack.c.b16 %v787, %v786
      %v835 = vpack.c.b16 %v789, %v788
      %v836 = vpack.c.b16 %v791, %v790
      %v837 = vpack.c.b16 %v793, %v792
      %v838 = vpack.c.b16 %v795, %v794
      %v839 = vpack.c.b16 %v797, %v796
      %v840 = vpack.c.b16 %v799, %v798
      %v841 = vpack.c.b16 %v801, %v800
      %882 = vmatpush.bf16.msra.mxu0 %v809
      %883 = vmatpush.bf16.msra.mxu0 %v808
      %884 = vmatpush.bf16.msra.mxu0 %v807
      %885 = vmatpush.bf16.msra.mxu0 %v806
      %886 = vmatpush.bf16.msra.mxu0 %v805
      %887 = vmatpush.bf16.msra.mxu0 %v804
      %888 = vmatpush.bf16.msra.mxu0 %v803
      %889 = vmatpush.bf16.msra.mxu0 %v802
      %890 = vmatmul.bf16.gmra.mxu0 %v562
      %v891 = vpop.f32.mrf.mxu0
      %v892 = vadd.f32 0.0, %v891
      %v893 = vpop.f32.mrf.mxu0
      %v894 = vadd.f32 0.0, %v893
      %895 = vmatmul.bf16.gmra.mxu0 %v567
      %v896 = vpop.f32.mrf.mxu0
      %v897 = vadd.f32 0.0, %v896
      %v898 = vpop.f32.mrf.mxu0
      %v899 = vadd.f32 0.0, %v898
      %900 = vmatmul.bf16.gmra.mxu0 %v572
      %v901 = vpop.f32.mrf.mxu0
      %v902 = vadd.f32 0.0, %v901
      %v903 = vpop.f32.mrf.mxu0
      %v904 = vadd.f32 0.0, %v903
      %905 = vmatmul.bf16.gmra.mxu0 %v577
      %v906 = vpop.f32.mrf.mxu0
      %v907 = vadd.f32 0.0, %v906
      %v908 = vpop.f32.mrf.mxu0
      %v909 = vadd.f32 0.0, %v908
      %910 = vmatmul.bf16.gmra.mxu0 %v582
      %v911 = vpop.f32.mrf.mxu0
      %v912 = vadd.f32 0.0, %v911
      %v913 = vpop.f32.mrf.mxu0
      %v914 = vadd.f32 0.0, %v913
      %915 = vmatmul.bf16.gmra.mxu0 %v587
      %v916 = vpop.f32.mrf.mxu0
      %v917 = vadd.f32 0.0, %v916
      %v918 = vpop.f32.mrf.mxu0
      %v919 = vadd.f32 0.0, %v918
      %920 = vmatmul.bf16.gmra.mxu0 %v592
      %v921 = vpop.f32.mrf.mxu0
      %v922 = vadd.f32 0.0, %v921
      %v923 = vpop.f32.mrf.mxu0
      %v924 = vadd.f32 0.0, %v923
      %925 = vmatmul.bf16.gmra.mxu0 %v597
      %v926 = vpop.f32.mrf.mxu0
      %v927 = vadd.f32 0.0, %v926
      %v928 = vpop.f32.mrf.mxu0
      %v929 = vadd.f32 0.0, %v928
      %930 = vdwg.mxu0
      %931 = vmatpush.bf16.msra.mxu0 %v817
      %932 = vmatpush.bf16.msra.mxu0 %v816
      %933 = vmatpush.bf16.msra.mxu0 %v815
      %934 = vmatpush.bf16.msra.mxu0 %v814
      %935 = vmatpush.bf16.msra.mxu0 %v813
      %936 = vmatpush.bf16.msra.mxu0 %v812
      %937 = vmatpush.bf16.msra.mxu0 %v811
      %938 = vmatpush.bf16.msra.mxu0 %v810
      %939 = vmatmul.bf16.gmra.mxu0 %v563
      %v940 = vpop.f32.mrf.mxu0
      %v941 = vadd.f32 %v892, %v940
      %v942 = vpop.f32.mrf.mxu0
      %v943 = vadd.f32 %v894, %v942
      %944 = vmatmul.bf16.gmra.mxu0 %v568
      %v945 = vpop.f32.mrf.mxu0
      %v946 = vadd.f32 %v897, %v945
      %v947 = vpop.f32.mrf.mxu0
      %v948 = vadd.f32 %v899, %v947
      %949 = vmatmul.bf16.gmra.mxu0 %v573
      %v950 = vpop.f32.mrf.mxu0
      %v951 = vadd.f32 %v902, %v950
      %v952 = vpop.f32.mrf.mxu0
      %v953 = vadd.f32 %v904, %v952
      %954 = vmatmul.bf16.gmra.mxu0 %v578
      %v955 = vpop.f32.mrf.mxu0
      %v956 = vadd.f32 %v907, %v955
      %v957 = vpop.f32.mrf.mxu0
      %v958 = vadd.f32 %v909, %v957
      %959 = vmatmul.bf16.gmra.mxu0 %v583
      %v960 = vpop.f32.mrf.mxu0
      %v961 = vadd.f32 %v912, %v960
      %v962 = vpop.f32.mrf.mxu0
      %v963 = vadd.f32 %v914, %v962
      %964 = vmatmul.bf16.gmra.mxu0 %v588
      %v965 = vpop.f32.mrf.mxu0
      %v966 = vadd.f32 %v917, %v965
      %v967 = vpop.f32.mrf.mxu0
      %v968 = vadd.f32 %v919, %v967
      %969 = vmatmul.bf16.gmra.mxu0 %v593
      %v970 = vpop.f32.mrf.mxu0
      %v971 = vadd.f32 %v922, %v970
      %v972 = vpop.f32.mrf.mxu0
      %v973 = vadd.f32 %v924, %v972
      %974 = vmatmul.bf16.gmra.mxu0 %v598
      %v975 = vpop.f32.mrf.mxu0
      %v976 = vadd.f32 %v927, %v975
      %v977 = vpop.f32.mrf.mxu0
      %v978 = vadd.f32 %v929, %v977
      %979 = vdwg.mxu0
      %980 = vmatpush.bf16.msra.mxu0 %v825
      %981 = vmatpush.bf16.msra.mxu0 %v824
      %982 = vmatpush.bf16.msra.mxu0 %v823
      %983 = vmatpush.bf16.msra.mxu0 %v822
      %984 = vmatpush.bf16.msra.mxu0 %v821
      %985 = vmatpush.bf16.msra.mxu0 %v820
      %986 = vmatpush.bf16.msra.mxu0 %v819
      %987 = vmatpush.bf16.msra.mxu0 %v818
      %988 = vmatmul.bf16.gmra.mxu0 %v564
      %v989 = vpop.f32.mrf.mxu0
      %v990 = vadd.f32 %v941, %v989
      %v991 = vpop.f32.mrf.mxu0
      %v992 = vadd.f32 %v943, %v991
      %993 = vmatmul.bf16.gmra.mxu0 %v569
      %v994 = vpop.f32.mrf.mxu0
      %v995 = vadd.f32 %v946, %v994
      %v996 = vpop.f32.mrf.mxu0
      %v997 = vadd.f32 %v948, %v996
      %998 = vmatmul.bf16.gmra.mxu0 %v574
      %v999 = vpop.f32.mrf.mxu0
      %v1000 = vadd.f32 %v951, %v999
      %v1001 = vpop.f32.mrf.mxu0
      %v1002 = vadd.f32 %v953, %v1001
      %1003 = vmatmul.bf16.gmra.mxu0 %v579
      %v1004 = vpop.f32.mrf.mxu0
      %v1005 = vadd.f32 %v956, %v1004
      %v1006 = vpop.f32.mrf.mxu0
      %v1007 = vadd.f32 %v958, %v1006
      %1008 = vmatmul.bf16.gmra.mxu0 %v584
      %v1009 = vpop.f32.mrf.mxu0
      %v1010 = vadd.f32 %v961, %v1009
      %v1011 = vpop.f32.mrf.mxu0
      %v1012 = vadd.f32 %v963, %v1011
      %1013 = vmatmul.bf16.gmra.mxu0 %v589
      %v1014 = vpop.f32.mrf.mxu0
      %v1015 = vadd.f32 %v966, %v1014
      %v1016 = vpop.f32.mrf.mxu0
      %v1017 = vadd.f32 %v968, %v1016
      %1018 = vmatmul.bf16.gmra.mxu0 %v594
      %v1019 = vpop.f32.mrf.mxu0
      %v1020 = vadd.f32 %v971, %v1019
      %v1021 = vpop.f32.mrf.mxu0
      %v1022 = vadd.f32 %v973, %v1021
      %1023 = vmatmul.bf16.gmra.mxu0 %v599
      %v1024 = vpop.f32.mrf.mxu0
      %v1025 = vadd.f32 %v976, %v1024
      %v1026 = vpop.f32.mrf.mxu0
      %v1027 = vadd.f32 %v978, %v1026
      %1028 = vdwg.mxu0
      %1029 = vmatpush.bf16.msra.mxu0 %v833
      %1030 = vmatpush.bf16.msra.mxu0 %v832
      %1031 = vmatpush.bf16.msra.mxu0 %v831
      %1032 = vmatpush.bf16.msra.mxu0 %v830
      %1033 = vmatpush.bf16.msra.mxu0 %v829
      %1034 = vmatpush.bf16.msra.mxu0 %v828
      %1035 = vmatpush.bf16.msra.mxu0 %v827
      %1036 = vmatpush.bf16.msra.mxu0 %v826
      %1037 = vmatmul.bf16.gmra.mxu0 %v565
      %v1038 = vpop.f32.mrf.mxu0
      %v1039 = vadd.f32 %v990, %v1038
      %v1040 = vpop.f32.mrf.mxu0
      %v1041 = vadd.f32 %v992, %v1040
      %1042 = vmatmul.bf16.gmra.mxu0 %v570
      %v1043 = vpop.f32.mrf.mxu0
      %v1044 = vadd.f32 %v995, %v1043
      %v1045 = vpop.f32.mrf.mxu0
      %v1046 = vadd.f32 %v997, %v1045
      %1047 = vmatmul.bf16.gmra.mxu0 %v575
      %v1048 = vpop.f32.mrf.mxu0
      %v1049 = vadd.f32 %v1000, %v1048
      %v1050 = vpop.f32.mrf.mxu0
      %v1051 = vadd.f32 %v1002, %v1050
      %1052 = vmatmul.bf16.gmra.mxu0 %v580
      %v1053 = vpop.f32.mrf.mxu0
      %v1054 = vadd.f32 %v1005, %v1053
      %v1055 = vpop.f32.mrf.mxu0
      %v1056 = vadd.f32 %v1007, %v1055
      %1057 = vmatmul.bf16.gmra.mxu0 %v585
      %v1058 = vpop.f32.mrf.mxu0
      %v1059 = vadd.f32 %v1010, %v1058
      %v1060 = vpop.f32.mrf.mxu0
      %v1061 = vadd.f32 %v1012, %v1060
      %1062 = vmatmul.bf16.gmra.mxu0 %v590
      %v1063 = vpop.f32.mrf.mxu0
      %v1064 = vadd.f32 %v1015, %v1063
      %v1065 = vpop.f32.mrf.mxu0
      %v1066 = vadd.f32 %v1017, %v1065
      %1067 = vmatmul.bf16.gmra.mxu0 %v595
      %v1068 = vpop.f32.mrf.mxu0
      %v1069 = vadd.f32 %v1020, %v1068
      %v1070 = vpop.f32.mrf.mxu0
      %v1071 = vadd.f32 %v1022, %v1070
      %1072 = vmatmul.bf16.gmra.mxu0 %v600
      %v1073 = vpop.f32.mrf.mxu0
      %v1074 = vadd.f32 %v1025, %v1073
      %v1075 = vpop.f32.mrf.mxu0
      %v1076 = vadd.f32 %v1027, %v1075
      %1077 = vdwg.mxu0
      %1078 = vmatpush.bf16.msra.mxu0 %v841
      %1079 = vmatpush.bf16.msra.mxu0 %v840
      %1080 = vmatpush.bf16.msra.mxu0 %v839
      %1081 = vmatpush.bf16.msra.mxu0 %v838
      %1082 = vmatpush.bf16.msra.mxu0 %v837
      %1083 = vmatpush.bf16.msra.mxu0 %v836
      %1084 = vmatpush.bf16.msra.mxu0 %v835
      %1085 = vmatpush.bf16.msra.mxu0 %v834
      %1086 = vmatmul.bf16.gmra.mxu0 %v566
      %v1087 = vpop.f32.mrf.mxu0
      %v1088 = vadd.f32 %v1039, %v1087
      %v1089 = vpop.f32.mrf.mxu0
      %v1090 = vadd.f32 %v1041, %v1089
      %1091 = vmatmul.bf16.gmra.mxu0 %v571
      %v1092 = vpop.f32.mrf.mxu0
      %v1093 = vadd.f32 %v1044, %v1092
      %v1094 = vpop.f32.mrf.mxu0
      %v1095 = vadd.f32 %v1046, %v1094
      %1096 = vmatmul.bf16.gmra.mxu0 %v576
      %v1097 = vpop.f32.mrf.mxu0
      %v1098 = vadd.f32 %v1049, %v1097
      %v1099 = vpop.f32.mrf.mxu0
      %v1100 = vadd.f32 %v1051, %v1099
      %1101 = vmatmul.bf16.gmra.mxu0 %v581
      %v1102 = vpop.f32.mrf.mxu0
      %v1103 = vadd.f32 %v1054, %v1102
      %v1104 = vpop.f32.mrf.mxu0
      %v1105 = vadd.f32 %v1056, %v1104
      %1106 = vmatmul.bf16.gmra.mxu0 %v586
      %v1107 = vpop.f32.mrf.mxu0
      %v1108 = vadd.f32 %v1059, %v1107
      %v1109 = vpop.f32.mrf.mxu0
      %v1110 = vadd.f32 %v1061, %v1109
      %1111 = vmatmul.bf16.gmra.mxu0 %v591
      %v1112 = vpop.f32.mrf.mxu0
      %v1113 = vadd.f32 %v1064, %v1112
      %v1114 = vpop.f32.mrf.mxu0
      %v1115 = vadd.f32 %v1066, %v1114
      %1116 = vmatmul.bf16.gmra.mxu0 %v596
      %v1117 = vpop.f32.mrf.mxu0
      %v1118 = vadd.f32 %v1069, %v1117
      %v1119 = vpop.f32.mrf.mxu0
      %v1120 = vadd.f32 %v1071, %v1119
      %1121 = vmatmul.bf16.gmra.mxu0 %v601
      %v1122 = vpop.f32.mrf.mxu0
      %v1123 = vadd.f32 %v1074, %v1122
      %v1124 = vpop.f32.mrf.mxu0
      %v1125 = vadd.f32 %v1076, %v1124
      %1126 = vdwg.mxu0
      %v1127 = vadd.f32 %v290, %v1088
      %v1128 = vadd.f32 %v291, %v1090
      %v1129 = vadd.f32 %v292, %v1093
      %v1130 = vadd.f32 %v293, %v1095
      %v1131 = vadd.f32 %v294, %v1098
      %v1132 = vadd.f32 %v295, %v1100
      %v1133 = vadd.f32 %v296, %v1103
      %v1134 = vadd.f32 %v297, %v1105
      %v1135 = vadd.f32 %v298, %v1108
      %v1136 = vadd.f32 %v299, %v1110
      %v1137 = vadd.f32 %v300, %v1113
      %v1138 = vadd.f32 %v301, %v1115
      %v1139 = vadd.f32 %v302, %v1118
      %v1140 = vadd.f32 %v303, %v1120
      %v1141 = vadd.f32 %v304, %v1123
      %v1142 = vadd.f32 %v305, %v1125
      %1143 = vst [vmem:[#allocation2] sm:$0xff] %v1127
      %1144 = vst [vmem:[#allocation2 + $0x8] sm:$0xff] %v1128
      %1145 = vst [vmem:[#allocation2 + $0x10] sm:$0xff] %v1129
      %1146 = vst [vmem:[#allocation2 + $0x18] sm:$0xff] %v1130
      %1147 = vst [vmem:[#allocation2 + $0x20] sm:$0xff] %v1131
      %1148 = vst [vmem:[#allocation2 + $0x28] sm:$0xff] %v1132
      %1149 = vst [vmem:[#allocation2 + $0x30] sm:$0xff] %v1133
      %1150 = vst [vmem:[#allocation2 + $0x38] sm:$0xff] %v1134
      %1151 = vst [vmem:[#allocation2 + $0x40] sm:$0xff] %v1135
      %1152 = vst [vmem:[#allocation2 + $0x48] sm:$0xff] %v1136
      %1153 = vst [vmem:[#allocation2 + $0x50] sm:$0xff] %v1137
      %1154 = vst [vmem:[#allocation2 + $0x58] sm:$0xff] %v1138
      %1155 = vst [vmem:[#allocation2 + $0x60] sm:$0xff] %v1139
      %1156 = vst [vmem:[#allocation2 + $0x68] sm:$0xff] %v1140
      %1157 = vst [vmem:[#allocation2 + $0x70] sm:$0xff] %v1141
      %1158 = vst [vmem:[#allocation2 + $0x78] sm:$0xff] %v1142
      // Predicated region
      $region37: #{inception_b_forward.6} parent=31 // pred_check
        %p1159 = pneg %p270
      $region38: #{inception_b_forward.6} parent=31 // pred_check_branch
        %1161 = sbr.rel (%p1159) target = $region40
      $region39: #{inception_b_forward.6} parent=31 // pred_region
        %v1162 = vld [vmem:[#allocation2] sm:$0xff]
        %v1163 = vld [vmem:[#allocation2 + $0x8] sm:$0xff]
        %v1164 = vld [vmem:[#allocation2 + $0x10] sm:$0xff]
        %v1165 = vld [vmem:[#allocation2 + $0x18] sm:$0xff]
        %v1166 = vld [vmem:[#allocation2 + $0x20] sm:$0xff]
        %v1167 = vld [vmem:[#allocation2 + $0x28] sm:$0xff]
        %v1168 = vld [vmem:[#allocation2 + $0x30] sm:$0xff]
        %v1169 = vld [vmem:[#allocation2 + $0x38] sm:$0xff]
        %v1170 = vld [vmem:[#allocation2 + $0x40] sm:$0xff]
        %v1171 = vld [vmem:[#allocation2 + $0x48] sm:$0xff]
        %v1172 = vld [vmem:[#allocation2 + $0x50] sm:$0xff]
        %v1173 = vld [vmem:[#allocation2 + $0x58] sm:$0xff]
        %v1174 = vld [vmem:[#allocation2 + $0x60] sm:$0xff]
        %v1175 = vld [vmem:[#allocation2 + $0x68] sm:$0xff]
        %v1176 = vld [vmem:[#allocation2 + $0x70] sm:$0xff]
        %v1177 = vld [vmem:[#allocation2 + $0x78] sm:$0xff]
        %v1178 = vld [vmem:[%s260] sm:$0x1]
        %v1179 = vperm.slane %v1178, 0
        %v1180 = vmul.f32 %v1162, %v1179
        %v1181 = vmul.f32 %v1163, %v1179
        %v1182 = vmul.f32 %v1164, %v1179
        %v1183 = vmul.f32 %v1165, %v1179
        %v1184 = vmul.f32 %v1166, %v1179
        %v1185 = vmul.f32 %v1167, %v1179
        %v1186 = vmul.f32 %v1168, %v1179
        %v1187 = vmul.f32 %v1169, %v1179
        %v1188 = vmul.f32 %v1170, %v1179
        %v1189 = vmul.f32 %v1171, %v1179
        %v1190 = vmul.f32 %v1172, %v1179
        %v1191 = vmul.f32 %v1173, %v1179
        %v1192 = vmul.f32 %v1174, %v1179
        %v1193 = vmul.f32 %v1175, %v1179
        %v1194 = vmul.f32 %v1176, %v1179
        %v1195 = vmul.f32 %v1177, %v1179
        %v1196 = vld [vmem:[%s260 + $0x1] sm:$0x1]
        %v1197 = vperm.slane %v1196, 0
        %v1198 = vadd.f32 %v1180, %v1197
        %v1199 = vadd.f32 %v1181, %v1197
        %v1200 = vadd.f32 %v1182, %v1197
        %v1201 = vadd.f32 %v1183, %v1197
        %v1202 = vadd.f32 %v1184, %v1197
        %v1203 = vadd.f32 %v1185, %v1197
        %v1204 = vadd.f32 %v1186, %v1197
        %v1205 = vadd.f32 %v1187, %v1197
        %v1206 = vadd.f32 %v1188, %v1197
        %v1207 = vadd.f32 %v1189, %v1197
        %v1208 = vadd.f32 %v1190, %v1197
        %v1209 = vadd.f32 %v1191, %v1197
        %v1210 = vadd.f32 %v1192, %v1197
        %v1211 = vadd.f32 %v1193, %v1197
        %v1212 = vadd.f32 %v1194, %v1197
        %v1213 = vadd.f32 %v1195, %v1197
        %v1214 = vmax.f32 %v1198, 0.0
        %v1215 = vmax.f32 %v1199, 0.0
        %v1216 = vmax.f32 %v1200, 0.0
        %v1217 = vmax.f32 %v1201, 0.0
        %v1218 = vmax.f32 %v1202, 0.0
        %v1219 = vmax.f32 %v1203, 0.0
        %v1220 = vmax.f32 %v1204, 0.0
        %v1221 = vmax.f32 %v1205, 0.0
        %v1222 = vmax.f32 %v1206, 0.0
        %v1223 = vmax.f32 %v1207, 0.0
        %v1224 = vmax.f32 %v1208, 0.0
        %v1225 = vmax.f32 %v1209, 0.0
        %v1226 = vmax.f32 %v1210, 0.0
        %v1227 = vmax.f32 %v1211, 0.0
        %v1228 = vmax.f32 %v1212, 0.0
        %v1229 = vmax.f32 %v1213, 0.0
        %v1230 = vpack.c.bf16 %v1214, %v1214
        %v1231 = vpack.c.bf16 %v1215, %v1215
        %v1232 = vpack.c.bf16 %v1216, %v1216
        %v1233 = vpack.c.bf16 %v1217, %v1217
        %v1234 = vpack.c.bf16 %v1218, %v1218
        %v1235 = vpack.c.bf16 %v1219, %v1219
        %v1236 = vpack.c.bf16 %v1220, %v1220
        %v1237 = vpack.c.bf16 %v1221, %v1221
        %v1238 = vpack.c.bf16 %v1222, %v1222
        %v1239 = vpack.c.bf16 %v1223, %v1223
        %v1240 = vpack.c.bf16 %v1224, %v1224
        %v1241 = vpack.c.bf16 %v1225, %v1225
        %v1242 = vpack.c.bf16 %v1226, %v1226
        %v1243 = vpack.c.bf16 %v1227, %v1227
        %v1244 = vpack.c.bf16 %v1228, %v1228
        %v1245 = vpack.c.bf16 %v1229, %v1229
        %1246 = vst [vmem:[%s268] sm:$0xf] %v1230
        %1247 = vst [vmem:[%s268 + $0x4] sm:$0xf] %v1231
        %1248 = vst [vmem:[%s268 + $0x8] sm:$0xf] %v1232
        %1249 = vst [vmem:[%s268 + $0xc] sm:$0xf] %v1233
        %1250 = vst [vmem:[%s268 + $0x10] sm:$0xf] %v1234
        %1251 = vst [vmem:[%s268 + $0x14] sm:$0xf] %v1235
        %1252 = vst [vmem:[%s268 + $0x18] sm:$0xf] %v1236
        %1253 = vst [vmem:[%s268 + $0x1c] sm:$0xf] %v1237
        %1254 = vst [vmem:[%s268 + $0x20] sm:$0xf] %v1238
        %1255 = vst [vmem:[%s268 + $0x24] sm:$0xf] %v1239
        %1256 = vst [vmem:[%s268 + $0x28] sm:$0xf] %v1240
        %1257 = vst [vmem:[%s268 + $0x2c] sm:$0xf] %v1241
        %1258 = vst [vmem:[%s268 + $0x30] sm:$0xf] %v1242
        %1259 = vst [vmem:[%s268 + $0x34] sm:$0xf] %v1243
        %1260 = vst [vmem:[%s268 + $0x38] sm:$0xf] %v1244
        %1261 = vst [vmem:[%s268 + $0x3c] sm:$0xf] %v1245
      $region40: #{inception_b_forward.6} parent=31 // pred_fallthru
        _
      %s1262 = smul.u32 16, %s19
      %p1263 = scmp.lt.s32.totalorder %s1262, 63
      %s1264 = scalar_select %p1263, %s1262, 63
      %p1265 = scmp.lt.s32.totalorder %s20, 0
      %s1266 = scalar_select %p1265, %s20, 0
      %s1267 = sadd.s32 %s1266, %s1264
      %s1268 = smul.addr %s1267, 4
      %s1269 = scalar_lea.vmem %s3, %s1268
      // Predicated region
      $region41: #{inception_b_forward.6} parent=31 // pred_check
        %p1270 = pneg %p135
      $region42: #{inception_b_forward.6} parent=31 // pred_check_branch
        %1272 = sbr.rel (%p1270) target = $region44
      $region43: #{inception_b_forward.6} parent=31 // pred_region
        %s1273 = smul.u32 16, %s19
      $region44: #{inception_b_forward.6} parent=31 // pred_fallthru
        _
    $region32: #{inception_b_forward.6} parent=5 // pred_fallthru
      _
    %p1274 = scmp.le.s32.totalorder 2, %s9
    // Predicated region
    $region45: #{inception_b_forward.6} parent=5 // pred_check
      %p1275 = pneg %p1274
    $region46: #{inception_b_forward.6} parent=5 // pred_check_branch
      %1277 = sbr.rel (%p1275) target = $region48
    $region47: #{inception_b_forward.6} parent=5 // pred_region
      %s1278 = ssub.s32 %s9, 2
      // Predicated region
      $region49: #{inception_b_forward.6} parent=47 // pred_check
        %p1279 = pneg %p141
      $region50: #{inception_b_forward.6} parent=47 // pred_check_branch
        %1281 = sbr.rel (%p1279) target = $region52
      $region51: #{inception_b_forward.6} parent=47 // pred_region
        %s1282 = smul.u32 16, %s22
        %p1283 = scmp.lt.s32.totalorder %s1282, 63
        %s1284 = scalar_select %p1283, %s1282, 63
        %p1285 = scmp.lt.s32.totalorder %s23, 0
        %s1286 = scalar_select %p1285, %s23, 0
        %s1287 = sadd.s32 %s1286, %s1284
        %s1288 = smul.addr %s1287, 4
        %s1289 = scalar_lea.vmem %s3, %s1288
      $region52: #{inception_b_forward.6} parent=47 // pred_fallthru
        _
    $region48: #{inception_b_forward.6} parent=5 // pred_fallthru
      _
  $region6: #{inception_b_forward.6} parent=0 // loop_footer
    %s13 = sadd.s32 1, %s9
  $region7: #{inception_b_forward.6} parent=0 // loop_footer_branch
    %8 = sbr.rel target = $region3
  $region8: #{inception_b_forward.6} parent=0 // loop_exit
    _

// kernel: inception_b_forward.7
$region0: #{inception_b_forward.7}
  #allocation0 [shape = 'u32[]', space=smem, size = 0x4, offset = 0x4, fixed_abs, tag = 'smem constant byte address 0x4 - core index']
  #allocation1 [shape = 'u32[72,128]{1,0:T(1,128)}', space=vmem, size = 0x9000, scoped, tag = 'internal scratch']
  #allocation2 [shape = 'f32[104,128]{1,0:T(8,128)}', space=vmem, size = 0xd000, scoped, tag = 'scratch operand']
  %s0 = inlined_call_operand.vmem [shape: bf16[104,896], index: 0, kind: input, shape index: {}]
  %s1 = inlined_call_operand.vmem [shape: bf16[896,128], index: 1, kind: input, shape index: {}]
  %s2 = inlined_call_operand.vmem [shape: f32[2,128], index: 2, kind: input, shape index: {}]
  %s3 = inlined_call_operand.vmem [shape: f32[104,128], index: 3, kind: output, shape index: {}]
  %s4 = sld [smem:[#allocation0]]
  $region30: #{inception_b_forward.7} parent=0
    _
  %s6 = ssub.s32 1, %s4
  %s7 = scalar_select 0, %s6, %s4
  // Predicated region
  $region2: #{inception_b_forward.7} parent=0 // pred_check
    _
  $region3: #{inception_b_forward.7} parent=0 // pred_check_branch
    %9 = sbr.rel (0) target = $region5
  $region4: #{inception_b_forward.7} parent=0 // pred_region
    _
  $region5: #{inception_b_forward.7} parent=0 // pred_fallthru
    _
  // Predicated region
  $region6: #{inception_b_forward.7} parent=0 // pred_check
    _
  $region7: #{inception_b_forward.7} parent=0 // pred_check_branch
    %11 = sbr.rel (0) target = $region9
  $region8: #{inception_b_forward.7} parent=0 // pred_region
    _
  $region9: #{inception_b_forward.7} parent=0 // pred_fallthru
    _
  // Predicated region
  $region10: #{inception_b_forward.7} parent=0 // pred_check
    _
  $region11: #{inception_b_forward.7} parent=0 // pred_check_branch
    %13 = sbr.rel (0) target = $region13
  $region12: #{inception_b_forward.7} parent=0 // pred_region
    _
  $region13: #{inception_b_forward.7} parent=0 // pred_fallthru
    _
  %p14 = scmp.eq.s32.totalorder 0, 0
  // Predicated region
  $region14: #{inception_b_forward.7} parent=0 // pred_check
    %p15 = pneg %p14
  $region15: #{inception_b_forward.7} parent=0 // pred_check_branch
    %17 = sbr.rel (%p15) target = $region17
  $region16: #{inception_b_forward.7} parent=0 // pred_region
    %18 = vst [vmem:[#allocation2] sm:$0xff] 0.0
    %19 = vst [vmem:[#allocation2 + $0x8] sm:$0xff] 0.0
    %20 = vst [vmem:[#allocation2 + $0x10] sm:$0xff] 0.0
    %21 = vst [vmem:[#allocation2 + $0x18] sm:$0xff] 0.0
    %22 = vst [vmem:[#allocation2 + $0x20] sm:$0xff] 0.0
    %23 = vst [vmem:[#allocation2 + $0x28] sm:$0xff] 0.0
    %24 = vst [vmem:[#allocation2 + $0x30] sm:$0xff] 0.0
    %25 = vst [vmem:[#allocation2 + $0x38] sm:$0xff] 0.0
    %26 = vst [vmem:[#allocation2 + $0x40] sm:$0xff] 0.0
    %27 = vst [vmem:[#allocation2 + $0x48] sm:$0xff] 0.0
    %28 = vst [vmem:[#allocation2 + $0x50] sm:$0xff] 0.0
    %29 = vst [vmem:[#allocation2 + $0x58] sm:$0xff] 0.0
    %30 = vst [vmem:[#allocation2 + $0x60] sm:$0xff] 0.0
  $region17: #{inception_b_forward.7} parent=0 // pred_fallthru
    _
  %v31 = vld [vmem:[#allocation2] sm:$0xff]
  %v32 = vld [vmem:[#allocation2 + $0x8] sm:$0xff]
  %v33 = vld [vmem:[#allocation2 + $0x10] sm:$0xff]
  %v34 = vld [vmem:[#allocation2 + $0x18] sm:$0xff]
  %v35 = vld [vmem:[#allocation2 + $0x20] sm:$0xff]
  %v36 = vld [vmem:[#allocation2 + $0x28] sm:$0xff]
  %v37 = vld [vmem:[#allocation2 + $0x30] sm:$0xff]
  %v38 = vld [vmem:[#allocation2 + $0x38] sm:$0xff]
  %v39 = vld [vmem:[#allocation2 + $0x40] sm:$0xff]
  %v40 = vld [vmem:[#allocation2 + $0x48] sm:$0xff]
  %v41 = vld [vmem:[#allocation2 + $0x50] sm:$0xff]
  %v42 = vld [vmem:[#allocation2 + $0x58] sm:$0xff]
  %v43 = vld [vmem:[#allocation2 + $0x60] sm:$0xff]
  %v44 = vld [vmem:[%s0] sm:$0xff]
  %v45 = vld [vmem:[%s0 + $0x8] sm:$0xff]
  %v46 = vld [vmem:[%s0 + $0x10] sm:$0xff]
  %v47 = vld [vmem:[%s0 + $0x18] sm:$0xf]
  %v48 = vld [vmem:[%s0 + $0x1c] sm:$0xff]
  %v49 = vld [vmem:[%s0 + $0x24] sm:$0xff]
  %v50 = vld [vmem:[%s0 + $0x2c] sm:$0xff]
  %v51 = vld [vmem:[%s0 + $0x34] sm:$0xf]
  %v52 = vld [vmem:[%s0 + $0x38] sm:$0xff]
  %v53 = vld [vmem:[%s0 + $0x40] sm:$0xff]
  %v54 = vld [vmem:[%s0 + $0x48] sm:$0xff]
  %v55 = vld [vmem:[%s0 + $0x50] sm:$0xf]
  %v56 = vld [vmem:[%s0 + $0x54] sm:$0xff]
  %v57 = vld [vmem:[%s0 + $0x5c] sm:$0xff]
  %v58 = vld [vmem:[%s0 + $0x64] sm:$0xff]
  %v59 = vld [vmem:[%s0 + $0x6c] sm:$0xf]
  %v60 = vld [vmem:[%s0 + $0x70] sm:$0xff]
  %v61 = vld [vmem:[%s0 + $0x78] sm:$0xff]
  %v62 = vld [vmem:[%s0 + $0x80] sm:$0xff]
  %v63 = vld [vmem:[%s0 + $0x88] sm:$0xf]
  %v64 = vld [vmem:[%s0 + $0x8c] sm:$0xff]
  %v65 = vld [vmem:[%s0 + $0x94] sm:$0xff]
  %v66 = vld [vmem:[%s0 + $0x9c] sm:$0xff]
  %v67 = vld [vmem:[%s0 + $0xa4] sm:$0xf]
  %v68 = vld [vmem:[%s0 + $0xa8] sm:$0xff]
  %v69 = vld [vmem:[%s0 + $0xb0] sm:$0xff]
  %v70 = vld [vmem:[%s0 + $0xb8] sm:$0xff]
  %v71 = vld [vmem:[%s0 + $0xc0] sm:$0xf]
  %v72 = vld [vmem:[%s0 + $0xc4] sm:$0xff]
  %v73 = vld [vmem:[%s0 + $0xcc] sm:$0xff]
  %v74 = vld [vmem:[%s0 + $0xd4] sm:$0xff]
  %v75 = vld [vmem:[%s0 + $0xdc] sm:$0xf]
  %v76 = vld [vmem:[%s0 + $0xe0] sm:$0xff]
  %v77 = vld [vmem:[%s0 + $0xe8] sm:$0xff]
  %v78 = vld [vmem:[%s0 + $0xf0] sm:$0xff]
  %v79 = vld [vmem:[%s0 + $0xf8] sm:$0xf]
  %v80 = vld [vmem:[%s0 + $0xfc] sm:$0xff]
  %v81 = vld [vmem:[%s0 + $0x104] sm:$0xff]
  %v82 = vld [vmem:[%s0 + $0x10c] sm:$0xff]
  %v83 = vld [vmem:[%s0 + $0x114] sm:$0xf]
  %v84 = vld [vmem:[%s0 + $0x118] sm:$0xff]
  %v85 = vld [vmem:[%s0 + $0x120] sm:$0xff]
  %v86 = vld [vmem:[%s0 + $0x128] sm:$0xff]
  %v87 = vld [vmem:[%s0 + $0x130] sm:$0xf]
  %v88 = vld [vmem:[%s0 + $0x134] sm:$0xff]
  %v89 = vld [vmem:[%s0 + $0x13c] sm:$0xff]
  %v90 = vld [vmem:[%s0 + $0x144] sm:$0xff]
  %v91 = vld [vmem:[%s0 + $0x14c] sm:$0xf]
  %v92 = vld [vmem:[%s0 + $0x150] sm:$0xff]
  %v93 = vld [vmem:[%s0 + $0x158] sm:$0xff]
  %v94 = vld [vmem:[%s0 + $0x160] sm:$0xff]
  %v95 = vld [vmem:[%s0 + $0x168] sm:$0xf]
  %v96 = vld [vmem:[%s1] sm:$0xf]
  %v97 = vld [vmem:[%s1 + $0x4] sm:$0xf]
  %v98 = vld [vmem:[%s1 + $0x8] sm:$0xf]
  %v99 = vld [vmem:[%s1 + $0xc] sm:$0xf]
  %v100 = vld [vmem:[%s1 + $0x10] sm:$0xf]
  %v101 = vld [vmem:[%s1 + $0x14] sm:$0xf]
  %v102 = vld [vmem:[%s1 + $0x18] sm:$0xf]
  %v103 = vld [vmem:[%s1 + $0x1c] sm:$0xf]
  %v104 = vld [vmem:[%s1 + $0x20] sm:$0xf]
  %v105 = vld [vmem:[%s1 + $0x24] sm:$0xf]
  %v106 = vld [vmem:[%s1 + $0x28] sm:$0xf]
  %v107 = vld [vmem:[%s1 + $0x2c] sm:$0xf]
  %v108 = vld [vmem:[%s1 + $0x30] sm:$0xf]
  %v109 = vld [vmem:[%s1 + $0x34] sm:$0xf]
  %v110 = vld [vmem:[%s1 + $0x38] sm:$0xf]
  %v111 = vld [vmem:[%s1 + $0x3c] sm:$0xf]
  %v112 = vld [vmem:[%s1 + $0x40] sm:$0xf]
  %v113 = vld [vmem:[%s1 + $0x44] sm:$0xf]
  %v114 = vld [vmem:[%s1 + $0x48] sm:$0xf]
  %v115 = vld [vmem:[%s1 + $0x4c] sm:$0xf]
  %v116 = vld [vmem:[%s1 + $0x50] sm:$0xf]
  %v117 = vld [vmem:[%s1 + $0x54] sm:$0xf]
  %v118 = vld [vmem:[%s1 + $0x58] sm:$0xf]
  %v119 = vld [vmem:[%s1 + $0x5c] sm:$0xf]
  %v120 = vld [vmem:[%s1 + $0x60] sm:$0xf]
  %v121 = vld [vmem:[%s1 + $0x64] sm:$0xf]
  %v122 = vld [vmem:[%s1 + $0x68] sm:$0xf]
  %v123 = vld [vmem:[%s1 + $0x6c] sm:$0xf]
  %v124 = vld [vmem:[%s1 + $0x70] sm:$0xf]
  %v125 = vld [vmem:[%s1 + $0x74] sm:$0xf]
  %v126 = vld [vmem:[%s1 + $0x78] sm:$0xf]
  %v127 = vld [vmem:[%s1 + $0x7c] sm:$0xf]
  %v128 = vld [vmem:[%s1 + $0x80] sm:$0xf]
  %v129 = vld [vmem:[%s1 + $0x84] sm:$0xf]
  %v130 = vld [vmem:[%s1 + $0x88] sm:$0xf]
  %v131 = vld [vmem:[%s1 + $0x8c] sm:$0xf]
  %v132 = vld [vmem:[%s1 + $0x90] sm:$0xf]
  %v133 = vld [vmem:[%s1 + $0x94] sm:$0xf]
  %v134 = vld [vmem:[%s1 + $0x98] sm:$0xf]
  %v135 = vld [vmem:[%s1 + $0x9c] sm:$0xf]
  %v136 = vld [vmem:[%s1 + $0xa0] sm:$0xf]
  %v137 = vld [vmem:[%s1 + $0xa4] sm:$0xf]
  %v138 = vld [vmem:[%s1 + $0xa8] sm:$0xf]
  %v139 = vld [vmem:[%s1 + $0xac] sm:$0xf]
  %v140 = vld [vmem:[%s1 + $0xb0] sm:$0xf]
  %v141 = vld [vmem:[%s1 + $0xb4] sm:$0xf]
  %v142 = vld [vmem:[%s1 + $0xb8] sm:$0xf]
  %v143 = vld [vmem:[%s1 + $0xbc] sm:$0xf]
  %v144 = vld [vmem:[%s1 + $0xc0] sm:$0xf]
  %v145 = vld [vmem:[%s1 + $0xc4] sm:$0xf]
  %v146 = vld [vmem:[%s1 + $0xc8] sm:$0xf]
  %v147 = vld [vmem:[%s1 + $0xcc] sm:$0xf]
  %v148 = vld [vmem:[%s1 + $0xd0] sm:$0xf]
  %v149 = vld [vmem:[%s1 + $0xd4] sm:$0xf]
  %v150 = vld [vmem:[%s1 + $0xd8] sm:$0xf]
  %v151 = vld [vmem:[%s1 + $0xdc] sm:$0xf]
  %v152 = vld [vmem:[%s1 + $0xe0] sm:$0xf]
  %v153 = vld [vmem:[%s1 + $0xe4] sm:$0xf]
  %v154 = vld [vmem:[%s1 + $0xe8] sm:$0xf]
  %v155 = vld [vmem:[%s1 + $0xec] sm:$0xf]
  %v156 = vld [vmem:[%s1 + $0xf0] sm:$0xf]
  %v157 = vld [vmem:[%s1 + $0xf4] sm:$0xf]
  %v158 = vld [vmem:[%s1 + $0xf8] sm:$0xf]
  %v159 = vld [vmem:[%s1 + $0xfc] sm:$0xf]
  %v160 = vld [vmem:[%s1 + $0x100] sm:$0xf]
  %v161 = vld [vmem:[%s1 + $0x104] sm:$0xf]
  %v162 = vld [vmem:[%s1 + $0x108] sm:$0xf]
  %v163 = vld [vmem:[%s1 + $0x10c] sm:$0xf]
  %v164 = vld [vmem:[%s1 + $0x110] sm:$0xf]
  %v165 = vld [vmem:[%s1 + $0x114] sm:$0xf]
  %v166 = vld [vmem:[%s1 + $0x118] sm:$0xf]
  %v167 = vld [vmem:[%s1 + $0x11c] sm:$0xf]
  %v168 = vld [vmem:[%s1 + $0x120] sm:$0xf]
  %v169 = vld [vmem:[%s1 + $0x124] sm:$0xf]
  %v170 = vld [vmem:[%s1 + $0x128] sm:$0xf]
  %v171 = vld [vmem:[%s1 + $0x12c] sm:$0xf]
  %v172 = vld [vmem:[%s1 + $0x130] sm:$0xf]
  %v173 = vld [vmem:[%s1 + $0x134] sm:$0xf]
  %v174 = vld [vmem:[%s1 + $0x138] sm:$0xf]
  %v175 = vld [vmem:[%s1 + $0x13c] sm:$0xf]
  %v176 = vld [vmem:[%s1 + $0x140] sm:$0xf]
  %v177 = vld [vmem:[%s1 + $0x144] sm:$0xf]
  %v178 = vld [vmem:[%s1 + $0x148] sm:$0xf]
  %v179 = vld [vmem:[%s1 + $0x14c] sm:$0xf]
  %v180 = vld [vmem:[%s1 + $0x150] sm:$0xf]
  %v181 = vld [vmem:[%s1 + $0x154] sm:$0xf]
  %v182 = vld [vmem:[%s1 + $0x158] sm:$0xf]
  %v183 = vld [vmem:[%s1 + $0x15c] sm:$0xf]
  %v184 = vld [vmem:[%s1 + $0x160] sm:$0xf]
  %v185 = vld [vmem:[%s1 + $0x164] sm:$0xf]
  %v186 = vld [vmem:[%s1 + $0x168] sm:$0xf]
  %v187 = vld [vmem:[%s1 + $0x16c] sm:$0xf]
  %v188 = vld [vmem:[%s1 + $0x170] sm:$0xf]
  %v189 = vld [vmem:[%s1 + $0x174] sm:$0xf]
  %v190 = vld [vmem:[%s1 + $0x178] sm:$0xf]
  %v191 = vld [vmem:[%s1 + $0x17c] sm:$0xf]
  %v192 = vld [vmem:[%s1 + $0x180] sm:$0xf]
  %v193 = vld [vmem:[%s1 + $0x184] sm:$0xf]
  %v194 = vld [vmem:[%s1 + $0x188] sm:$0xf]
  %v195 = vld [vmem:[%s1 + $0x18c] sm:$0xf]
  %v196 = vld [vmem:[%s1 + $0x190] sm:$0xf]
  %v197 = vld [vmem:[%s1 + $0x194] sm:$0xf]
  %v198 = vld [vmem:[%s1 + $0x198] sm:$0xf]
  %v199 = vld [vmem:[%s1 + $0x19c] sm:$0xf]
  %v200 = vld [vmem:[%s1 + $0x1a0] sm:$0xf]
  %v201 = vld [vmem:[%s1 + $0x1a4] sm:$0xf]
  %v202 = vld [vmem:[%s1 + $0x1a8] sm:$0xf]
  %v203 = vld [vmem:[%s1 + $0x1ac] sm:$0xf]
  %v204 = vld [vmem:[%s1 + $0x1b0] sm:$0xf]
  %v205 = vld [vmem:[%s1 + $0x1b4] sm:$0xf]
  %v206 = vld [vmem:[%s1 + $0x1b8] sm:$0xf]
  %v207 = vld [vmem:[%s1 + $0x1bc] sm:$0xf]
  %v260 = vunpack.c.l.b16 %v44
  %v261 = vunpack.c.h.b16 %v44
  %v262 = vunpack.c.l.b16 %v45
  %v263 = vunpack.c.h.b16 %v45
  %v264 = vunpack.c.l.b16 %v46
  %v265 = vunpack.c.h.b16 %v46
  %v266 = vunpack.c.l.b16 %v47
  %v267 = vunpack.c.l.b16 %v48
  %v268 = vunpack.c.h.b16 %v48
  %v269 = vunpack.c.l.b16 %v49
  %v270 = vunpack.c.h.b16 %v49
  %v271 = vunpack.c.l.b16 %v50
  %v272 = vunpack.c.h.b16 %v50
  %v273 = vunpack.c.l.b16 %v51
  %v274 = vunpack.c.l.b16 %v52
  %v275 = vunpack.c.h.b16 %v52
  %v276 = vunpack.c.l.b16 %v53
  %v277 = vunpack.c.h.b16 %v53
  %v278 = vunpack.c.l.b16 %v54
  %v279 = vunpack.c.h.b16 %v54
  %v280 = vunpack.c.l.b16 %v55
  %v281 = vunpack.c.l.b16 %v56
  %v282 = vunpack.c.h.b16 %v56
  %v283 = vunpack.c.l.b16 %v57
  %v284 = vunpack.c.h.b16 %v57
  %v285 = vunpack.c.l.b16 %v58
  %v286 = vunpack.c.h.b16 %v58
  %v287 = vunpack.c.l.b16 %v59
  %v288 = vunpack.c.l.b16 %v60
  %v289 = vunpack.c.h.b16 %v60
  %v290 = vunpack.c.l.b16 %v61
  %v291 = vunpack.c.h.b16 %v61
  %v292 = vunpack.c.l.b16 %v62
  %v293 = vunpack.c.h.b16 %v62
  %v294 = vunpack.c.l.b16 %v63
  %v295 = vunpack.c.l.b16 %v64
  %v296 = vunpack.c.h.b16 %v64
  %v297 = vunpack.c.l.b16 %v65
  %v298 = vunpack.c.h.b16 %v65
  %v299 = vunpack.c.l.b16 %v66
  %v300 = vunpack.c.h.b16 %v66
  %v301 = vunpack.c.l.b16 %v67
  %v302 = vunpack.c.l.b16 %v68
  %v303 = vunpack.c.h.b16 %v68
  %v304 = vunpack.c.l.b16 %v69
  %v305 = vunpack.c.h.b16 %v69
  %v306 = vunpack.c.l.b16 %v70
  %v307 = vunpack.c.h.b16 %v70
  %v308 = vunpack.c.l.b16 %v71
  %v309 = vunpack.c.l.b16 %v72
  %v310 = vunpack.c.h.b16 %v72
  %v311 = vunpack.c.l.b16 %v73
  %v312 = vunpack.c.h.b16 %v73
  %v313 = vunpack.c.l.b16 %v74
  %v314 = vunpack.c.h.b16 %v74
  %v315 = vunpack.c.l.b16 %v75
  %v316 = vunpack.c.l.b16 %v76
  %v317 = vunpack.c.h.b16 %v76
  %v318 = vunpack.c.l.b16 %v77
  %v319 = vunpack.c.h.b16 %v77
  %v320 = vunpack.c.l.b16 %v78
  %v321 = vunpack.c.h.b16 %v78
  %v322 = vunpack.c.l.b16 %v79
  %v323 = vunpack.c.l.b16 %v80
  %v324 = vunpack.c.h.b16 %v80
  %v325 = vunpack.c.l.b16 %v81
  %v326 = vunpack.c.h.b16 %v81
  %v327 = vunpack.c.l.b16 %v82
  %v328 = vunpack.c.h.b16 %v82
  %v329 = vunpack.c.l.b16 %v83
  %v330 = vunpack.c.l.b16 %v84
  %v331 = vunpack.c.h.b16 %v84
  %v332 = vunpack.c.l.b16 %v85
  %v333 = vunpack.c.h.b16 %v85
  %v334 = vunpack.c.l.b16 %v86
  %v335 = vunpack.c.h.b16 %v86
  %v336 = vunpack.c.l.b16 %v87
  %v337 = vunpack.c.l.b16 %v88
  %v338 = vunpack.c.h.b16 %v88
  %v339 = vunpack.c.l.b16 %v89
  %v340 = vunpack.c.h.b16 %v89
  %v341 = vunpack.c.l.b16 %v90
  %v342 = vunpack.c.h.b16 %v90
  %v343 = vunpack.c.l.b16 %v91
  %v344 = vunpack.c.l.b16 %v92
  %v345 = vunpack.c.h.b16 %v92
  %v346 = vunpack.c.l.b16 %v93
  %v347 = vunpack.c.h.b16 %v93
  %v348 = vunpack.c.l.b16 %v94
  %v349 = vunpack.c.h.b16 %v94
  %v350 = vunpack.c.l.b16 %v95
  %v351 = vpack.c.b16 %v267, %v260
  %v352 = vpack.c.b16 %v268, %v261
  %v353 = vpack.c.b16 %v269, %v262
  %v354 = vpack.c.b16 %v270, %v263
  %v355 = vpack.c.b16 %v271, %v264
  %v356 = vpack.c.b16 %v272, %v265
  %v357 = vpack.c.b16 %v273, %v266
  %v358 = vpack.c.b16 %v281, %v274
  %v359 = vpack.c.b16 %v282, %v275
  %v360 = vpack.c.b16 %v283, %v276
  %v361 = vpack.c.b16 %v284, %v277
  %v362 = vpack.c.b16 %v285, %v278
  %v363 = vpack.c.b16 %v286, %v279
  %v364 = vpack.c.b16 %v287, %v280
  %v365 = vpack.c.b16 %v295, %v288
  %v366 = vpack.c.b16 %v296, %v289
  %v367 = vpack.c.b16 %v297, %v290
  %v368 = vpack.c.b16 %v298, %v291
  %v369 = vpack.c.b16 %v299, %v292
  %v370 = vpack.c.b16 %v300, %v293
  %v371 = vpack.c.b16 %v301, %v294
  %v372 = vpack.c.b16 %v309, %v302
  %v373 = vpack.c.b16 %v310, %v303
  %v374 = vpack.c.b16 %v311, %v304
  %v375 = vpack.c.b16 %v312, %v305
  %v376 = vpack.c.b16 %v313, %v306
  %v377 = vpack.c.b16 %v314, %v307
  %v378 = vpack.c.b16 %v315, %v308
  %v379 = vpack.c.b16 %v323, %v316
  %v380 = vpack.c.b16 %v324, %v317
  %v381 = vpack.c.b16 %v325, %v318
  %v382 = vpack.c.b16 %v326, %v319
  %v383 = vpack.c.b16 %v327, %v320
  %v384 = vpack.c.b16 %v328, %v321
  %v385 = vpack.c.b16 %v329, %v322
  %v386 = vpack.c.b16 %v337, %v330
  %v387 = vpack.c.b16 %v338, %v331
  %v388 = vpack.c.b16 %v339, %v332
  %v389 = vpack.c.b16 %v340, %v333
  %v390 = vpack.c.b16 %v341, %v334
  %v391 = vpack.c.b16 %v342, %v335
  %v392 = vpack.c.b16 %v343, %v336
  %v393 = vpack.c.b16 %v344, %v344
  %v394 = vpack.c.b16 %v345, %v345
  %v395 = vpack.c.b16 %v346, %v346
  %v396 = vpack.c.b16 %v347, %v347
  %v397 = vpack.c.b16 %v348, %v348
  %v398 = vpack.c.b16 %v349, %v349
  %v399 = vpack.c.b16 %v350, %v350
  %v561 = vunpack.c.l.b16 %v96
  %v562 = vunpack.c.l.b16 %v97
  %v563 = vunpack.c.l.b16 %v98
  %v564 = vunpack.c.l.b16 %v99
  %v565 = vunpack.c.l.b16 %v100
  %v566 = vunpack.c.l.b16 %v101
  %v567 = vunpack.c.l.b16 %v102
  %v568 = vunpack.c.l.b16 %v103
  %v569 = vunpack.c.l.b16 %v104
  %v570 = vunpack.c.l.b16 %v105
  %v571 = vunpack.c.l.b16 %v106
  %v572 = vunpack.c.l.b16 %v107
  %v573 = vunpack.c.l.b16 %v108
  %v574 = vunpack.c.l.b16 %v109
  %v575 = vunpack.c.l.b16 %v110
  %v576 = vunpack.c.l.b16 %v111
  %v577 = vunpack.c.l.b16 %v112
  %v578 = vunpack.c.l.b16 %v113
  %v579 = vunpack.c.l.b16 %v114
  %v580 = vunpack.c.l.b16 %v115
  %v581 = vunpack.c.l.b16 %v116
  %v582 = vunpack.c.l.b16 %v117
  %v583 = vunpack.c.l.b16 %v118
  %v584 = vunpack.c.l.b16 %v119
  %v585 = vunpack.c.l.b16 %v120
  %v586 = vunpack.c.l.b16 %v121
  %v587 = vunpack.c.l.b16 %v122
  %v588 = vunpack.c.l.b16 %v123
  %v589 = vunpack.c.l.b16 %v124
  %v590 = vunpack.c.l.b16 %v125
  %v591 = vunpack.c.l.b16 %v126
  %v592 = vunpack.c.l.b16 %v127
  %v593 = vunpack.c.l.b16 %v128
  %v594 = vunpack.c.l.b16 %v129
  %v595 = vunpack.c.l.b16 %v130
  %v596 = vunpack.c.l.b16 %v131
  %v597 = vunpack.c.l.b16 %v132
  %v598 = vunpack.c.l.b16 %v133
  %v599 = vunpack.c.l.b16 %v134
  %v600 = vunpack.c.l.b16 %v135
  %v601 = vunpack.c.l.b16 %v136
  %v602 = vunpack.c.l.b16 %v137
  %v603 = vunpack.c.l.b16 %v138
  %v604 = vunpack.c.l.b16 %v139
  %v605 = vunpack.c.l.b16 %v140
  %v606 = vunpack.c.l.b16 %v141
  %v607 = vunpack.c.l.b16 %v142
  %v608 = vunpack.c.l.b16 %v143
  %v609 = vunpack.c.l.b16 %v144
  %v610 = vunpack.c.l.b16 %v145
  %v611 = vunpack.c.l.b16 %v146
  %v612 = vunpack.c.l.b16 %v147
  %v613 = vunpack.c.l.b16 %v148
  %v614 = vunpack.c.l.b16 %v149
  %v615 = vunpack.c.l.b16 %v150
  %v616 = vunpack.c.l.b16 %v151
  %v617 = vunpack.c.l.b16 %v152
  %v618 = vunpack.c.l.b16 %v153
  %v619 = vunpack.c.l.b16 %v154
  %v620 = vunpack.c.l.b16 %v155
  %v621 = vunpack.c.l.b16 %v156
  %v622 = vunpack.c.l.b16 %v157
  %v623 = vunpack.c.l.b16 %v158
  %v624 = vunpack.c.l.b16 %v159
  %v625 = vunpack.c.l.b16 %v160
  %v626 = vunpack.c.l.b16 %v161
  %v627 = vunpack.c.l.b16 %v162
  %v628 = vunpack.c.l.b16 %v163
  %v629 = vunpack.c.l.b16 %v164
  %v630 = vunpack.c.l.b16 %v165
  %v631 = vunpack.c.l.b16 %v166
  %v632 = vunpack.c.l.b16 %v167
  %v633 = vunpack.c.l.b16 %v168
  %v634 = vunpack.c.l.b16 %v169
  %v635 = vunpack.c.l.b16 %v170
  %v636 = vunpack.c.l.b16 %v171
  %v637 = vunpack.c.l.b16 %v172
  %v638 = vunpack.c.l.b16 %v173
  %v639 = vunpack.c.l.b16 %v174
  %v640 = vunpack.c.l.b16 %v175
  %v641 = vunpack.c.l.b16 %v176
  %v642 = vunpack.c.l.b16 %v177
  %v643 = vunpack.c.l.b16 %v178
  %v644 = vunpack.c.l.b16 %v179
  %v645 = vunpack.c.l.b16 %v180
  %v646 = vunpack.c.l.b16 %v181
  %v647 = vunpack.c.l.b16 %v182
  %v648 = vunpack.c.l.b16 %v183
  %v649 = vunpack.c.l.b16 %v184
  %v650 = vunpack.c.l.b16 %v185
  %v651 = vunpack.c.l.b16 %v186
  %v652 = vunpack.c.l.b16 %v187
  %v653 = vunpack.c.l.b16 %v188
  %v654 = vunpack.c.l.b16 %v189
  %v655 = vunpack.c.l.b16 %v190
  %v656 = vunpack.c.l.b16 %v191
  %v657 = vunpack.c.l.b16 %v192
  %v658 = vunpack.c.l.b16 %v193
  %v659 = vunpack.c.l.b16 %v194
  %v660 = vunpack.c.l.b16 %v195
  %v661 = vunpack.c.l.b16 %v196
  %v662 = vunpack.c.l.b16 %v197
  %v663 = vunpack.c.l.b16 %v198
  %v664 = vunpack.c.l.b16 %v199
  %v665 = vunpack.c.l.b16 %v200
  %v666 = vunpack.c.l.b16 %v201
  %v667 = vunpack.c.l.b16 %v202
  %v668 = vunpack.c.l.b16 %v203
  %v669 = vunpack.c.l.b16 %v204
  %v670 = vunpack.c.l.b16 %v205
  %v671 = vunpack.c.l.b16 %v206
  %v672 = vunpack.c.l.b16 %v207
  %v673 = vpack.c.b16 %v562, %v561
  %v674 = vpack.c.b16 %v564, %v563
  %v675 = vpack.c.b16 %v566, %v565
  %v676 = vpack.c.b16 %v568, %v567
  %v677 = vpack.c.b16 %v570, %v569
  %v678 = vpack.c.b16 %v572, %v571
  %v679 = vpack.c.b16 %v574, %v573
  %v680 = vpack.c.b16 %v576, %v575
  %v681 = vpack.c.b16 %v578, %v577
  %v682 = vpack.c.b16 %v580, %v579
  %v683 = vpack.c.b16 %v582, %v581
  %v684 = vpack.c.b16 %v584, %v583
  %v685 = vpack.c.b16 %v586, %v585
  %v686 = vpack.c.b16 %v588, %v587
  %v687 = vpack.c.b16 %v590, %v589
  %v688 = vpack.c.b16 %v592, %v591
  %v689 = vpack.c.b16 %v594, %v593
  %v690 = vpack.c.b16 %v596, %v595
  %v691 = vpack.c.b16 %v598, %v597
  %v692 = vpack.c.b16 %v600, %v599
  %v693 = vpack.c.b16 %v602, %v601
  %v694 = vpack.c.b16 %v604, %v603
  %v695 = vpack.c.b16 %v606, %v605
  %v696 = vpack.c.b16 %v608, %v607
  %v697 = vpack.c.b16 %v610, %v609
  %v698 = vpack.c.b16 %v612, %v611
  %v699 = vpack.c.b16 %v614, %v613
  %v700 = vpack.c.b16 %v616, %v615
  %v701 = vpack.c.b16 %v618, %v617
  %v702 = vpack.c.b16 %v620, %v619
  %v703 = vpack.c.b16 %v622, %v621
  %v704 = vpack.c.b16 %v624, %v623
  %v705 = vpack.c.b16 %v626, %v625
  %v706 = vpack.c.b16 %v628, %v627
  %v707 = vpack.c.b16 %v630, %v629
  %v708 = vpack.c.b16 %v632, %v631
  %v709 = vpack.c.b16 %v634, %v633
  %v710 = vpack.c.b16 %v636, %v635
  %v711 = vpack.c.b16 %v638, %v637
  %v712 = vpack.c.b16 %v640, %v639
  %v713 = vpack.c.b16 %v642, %v641
  %v714 = vpack.c.b16 %v644, %v643
  %v715 = vpack.c.b16 %v646, %v645
  %v716 = vpack.c.b16 %v648, %v647
  %v717 = vpack.c.b16 %v650, %v649
  %v718 = vpack.c.b16 %v652, %v651
  %v719 = vpack.c.b16 %v654, %v653
  %v720 = vpack.c.b16 %v656, %v655
  %v721 = vpack.c.b16 %v658, %v657
  %v722 = vpack.c.b16 %v660, %v659
  %v723 = vpack.c.b16 %v662, %v661
  %v724 = vpack.c.b16 %v664, %v663
  %v725 = vpack.c.b16 %v666, %v665
  %v726 = vpack.c.b16 %v668, %v667
  %v727 = vpack.c.b16 %v670, %v669
  %v728 = vpack.c.b16 %v672, %v671
  %785 = vmatpush.bf16.msra.mxu0 %v680
  %786 = vmatpush.bf16.msra.mxu0 %v679
  %787 = vmatpush.bf16.msra.mxu0 %v678
  %788 = vmatpush.bf16.msra.mxu0 %v677
  %789 = vmatpush.bf16.msra.mxu0 %v676
  %790 = vmatpush.bf16.msra.mxu0 %v675
  %791 = vmatpush.bf16.msra.mxu0 %v674
  %792 = vmatpush.bf16.msra.mxu0 %v673
  %793 = vmatmul.bf16.gmra.mxu0 %v351
  %v794 = vpop.f32.mrf.mxu0
  %v795 = vadd.f32 0.0, %v794
  %v796 = vpop.f32.mrf.mxu0
  %v797 = vadd.f32 0.0, %v796
  %798 = vmatmul.bf16.gmra.mxu0 %v358
  %v799 = vpop.f32.mrf.mxu0
  %v800 = vadd.f32 0.0, %v799
  %v801 = vpop.f32.mrf.mxu0
  %v802 = vadd.f32 0.0, %v801
  %803 = vmatmul.bf16.gmra.mxu0 %v365
  %v804 = vpop.f32.mrf.mxu0
  %v805 = vadd.f32 0.0, %v804
  %v806 = vpop.f32.mrf.mxu0
  %v807 = vadd.f32 0.0, %v806
  %808 = vmatmul.bf16.gmra.mxu0 %v372
  %v809 = vpop.f32.mrf.mxu0
  %v810 = vadd.f32 0.0, %v809
  %v811 = vpop.f32.mrf.mxu0
  %v812 = vadd.f32 0.0, %v811
  %813 = vmatmul.bf16.gmra.mxu0 %v379
  %v814 = vpop.f32.mrf.mxu0
  %v815 = vadd.f32 0.0, %v814
  %v816 = vpop.f32.mrf.mxu0
  %v817 = vadd.f32 0.0, %v816
  %818 = vmatmul.bf16.gmra.mxu0 %v386
  %v819 = vpop.f32.mrf.mxu0
  %v820 = vadd.f32 0.0, %v819
  %v821 = vpop.f32.mrf.mxu0
  %v822 = vadd.f32 0.0, %v821
  %823 = vmatmul.bf16.gmra.mxu0 %v393
  %v824 = vpop.f32.mrf.mxu0
  %v825 = vadd.f32 0.0, %v824
  %v826 = vpop.f32.mrf.mxu0
  %827 = vdwg.mxu0
  %828 = vmatpush.bf16.msra.mxu0 %v688
  %829 = vmatpush.bf16.msra.mxu0 %v687
  %830 = vmatpush.bf16.msra.mxu0 %v686
  %831 = vmatpush.bf16.msra.mxu0 %v685
  %832 = vmatpush.bf16.msra.mxu0 %v684
  %833 = vmatpush.bf16.msra.mxu0 %v683
  %834 = vmatpush.bf16.msra.mxu0 %v682
  %835 = vmatpush.bf16.msra.mxu0 %v681
  %836 = vmatmul.bf16.gmra.mxu0 %v352
  %v837 = vpop.f32.mrf.mxu0
  %v838 = vadd.f32 %v795, %v837
  %v839 = vpop.f32.mrf.mxu0
  %v840 = vadd.f32 %v797, %v839
  %841 = vmatmul.bf16.gmra.mxu0 %v359
  %v842 = vpop.f32.mrf.mxu0
  %v843 = vadd.f32 %v800, %v842
  %v844 = vpop.f32.mrf.mxu0
  %v845 = vadd.f32 %v802, %v844
  %846 = vmatmul.bf16.gmra.mxu0 %v366
  %v847 = vpop.f32.mrf.mxu0
  %v848 = vadd.f32 %v805, %v847
  %v849 = vpop.f32.mrf.mxu0
  %v850 = vadd.f32 %v807, %v849
  %851 = vmatmul.bf16.gmra.mxu0 %v373
  %v852 = vpop.f32.mrf.mxu0
  %v853 = vadd.f32 %v810, %v852
  %v854 = vpop.f32.mrf.mxu0
  %v855 = vadd.f32 %v812, %v854
  %856 = vmatmul.bf16.gmra.mxu0 %v380
  %v857 = vpop.f32.mrf.mxu0
  %v858 = vadd.f32 %v815, %v857
  %v859 = vpop.f32.mrf.mxu0
  %v860 = vadd.f32 %v817, %v859
  %861 = vmatmul.bf16.gmra.mxu0 %v387
  %v862 = vpop.f32.mrf.mxu0
  %v863 = vadd.f32 %v820, %v862
  %v864 = vpop.f32.mrf.mxu0
  %v865 = vadd.f32 %v822, %v864
  %866 = vmatmul.bf16.gmra.mxu0 %v394
  %v867 = vpop.f32.mrf.mxu0
  %v868 = vadd.f32 %v825, %v867
  %v869 = vpop.f32.mrf.mxu0
  %870 = vdwg.mxu0
  %871 = vmatpush.bf16.msra.mxu0 %v696
  %872 = vmatpush.bf16.msra.mxu0 %v695
  %873 = vmatpush.bf16.msra.mxu0 %v694
  %874 = vmatpush.bf16.msra.mxu0 %v693
  %875 = vmatpush.bf16.msra.mxu0 %v692
  %876 = vmatpush.bf16.msra.mxu0 %v691
  %877 = vmatpush.bf16.msra.mxu0 %v690
  %878 = vmatpush.bf16.msra.mxu0 %v689
  %879 = vmatmul.bf16.gmra.mxu0 %v353
  %v880 = vpop.f32.mrf.mxu0
  %v881 = vadd.f32 %v838, %v880
  %v882 = vpop.f32.mrf.mxu0
  %v883 = vadd.f32 %v840, %v882
  %884 = vmatmul.bf16.gmra.mxu0 %v360
  %v885 = vpop.f32.mrf.mxu0
  %v886 = vadd.f32 %v843, %v885
  %v887 = vpop.f32.mrf.mxu0
  %v888 = vadd.f32 %v845, %v887
  %889 = vmatmul.bf16.gmra.mxu0 %v367
  %v890 = vpop.f32.mrf.mxu0
  %v891 = vadd.f32 %v848, %v890
  %v892 = vpop.f32.mrf.mxu0
  %v893 = vadd.f32 %v850, %v892
  %894 = vmatmul.bf16.gmra.mxu0 %v374
  %v895 = vpop.f32.mrf.mxu0
  %v896 = vadd.f32 %v853, %v895
  %v897 = vpop.f32.mrf.mxu0
  %v898 = vadd.f32 %v855, %v897
  %899 = vmatmul.bf16.gmra.mxu0 %v381
  %v900 = vpop.f32.mrf.mxu0
  %v901 = vadd.f32 %v858, %v900
  %v902 = vpop.f32.mrf.mxu0
  %v903 = vadd.f32 %v860, %v902
  %904 = vmatmul.bf16.gmra.mxu0 %v388
  %v905 = vpop.f32.mrf.mxu0
  %v906 = vadd.f32 %v863, %v905
  %v907 = vpop.f32.mrf.mxu0
  %v908 = vadd.f32 %v865, %v907
  %909 = vmatmul.bf16.gmra.mxu0 %v395
  %v910 = vpop.f32.mrf.mxu0
  %v911 = vadd.f32 %v868, %v910
  %v912 = vpop.f32.mrf.mxu0
  %913 = vdwg.mxu0
  %914 = vmatpush.bf16.msra.mxu0 %v704
  %915 = vmatpush.bf16.msra.mxu0 %v703
  %916 = vmatpush.bf16.msra.mxu0 %v702
  %917 = vmatpush.bf16.msra.mxu0 %v701
  %918 = vmatpush.bf16.msra.mxu0 %v700
  %919 = vmatpush.bf16.msra.mxu0 %v699
  %920 = vmatpush.bf16.msra.mxu0 %v698
  %921 = vmatpush.bf16.msra.mxu0 %v697
  %922 = vmatmul.bf16.gmra.mxu0 %v354
  %v923 = vpop.f32.mrf.mxu0
  %v924 = vadd.f32 %v881, %v923
  %v925 = vpop.f32.mrf.mxu0
  %v926 = vadd.f32 %v883, %v925
  %927 = vmatmul.bf16.gmra.mxu0 %v361
  %v928 = vpop.f32.mrf.mxu0
  %v929 = vadd.f32 %v886, %v928
  %v930 = vpop.f32.mrf.mxu0
  %v931 = vadd.f32 %v888, %v930
  %932 = vmatmul.bf16.gmra.mxu0 %v368
  %v933 = vpop.f32.mrf.mxu0
  %v934 = vadd.f32 %v891, %v933
  %v935 = vpop.f32.mrf.mxu0
  %v936 = vadd.f32 %v893, %v935
  %937 = vmatmul.bf16.gmra.mxu0 %v375
  %v938 = vpop.f32.mrf.mxu0
  %v939 = vadd.f32 %v896, %v938
  %v940 = vpop.f32.mrf.mxu0
  %v941 = vadd.f32 %v898, %v940
  %942 = vmatmul.bf16.gmra.mxu0 %v382
  %v943 = vpop.f32.mrf.mxu0
  %v944 = vadd.f32 %v901, %v943
  %v945 = vpop.f32.mrf.mxu0
  %v946 = vadd.f32 %v903, %v945
  %947 = vmatmul.bf16.gmra.mxu0 %v389
  %v948 = vpop.f32.mrf.mxu0
  %v949 = vadd.f32 %v906, %v948
  %v950 = vpop.f32.mrf.mxu0
  %v951 = vadd.f32 %v908, %v950
  %952 = vmatmul.bf16.gmra.mxu0 %v396
  %v953 = vpop.f32.mrf.mxu0
  %v954 = vadd.f32 %v911, %v953
  %v955 = vpop.f32.mrf.mxu0
  %956 = vdwg.mxu0
  %957 = vmatpush.bf16.msra.mxu0 %v712
  %958 = vmatpush.bf16.msra.mxu0 %v711
  %959 = vmatpush.bf16.msra.mxu0 %v710
  %960 = vmatpush.bf16.msra.mxu0 %v709
  %961 = vmatpush.bf16.msra.mxu0 %v708
  %962 = vmatpush.bf16.msra.mxu0 %v707
  %963 = vmatpush.bf16.msra.mxu0 %v706
  %964 = vmatpush.bf16.msra.mxu0 %v705
  %965 = vmatmul.bf16.gmra.mxu0 %v355
  %v966 = vpop.f32.mrf.mxu0
  %v967 = vadd.f32 %v924, %v966
  %v968 = vpop.f32.mrf.mxu0
  %v969 = vadd.f32 %v926, %v968
  %970 = vmatmul.bf16.gmra.mxu0 %v362
  %v971 = vpop.f32.mrf.mxu0
  %v972 = vadd.f32 %v929, %v971
  %v973 = vpop.f32.mrf.mxu0
  %v974 = vadd.f32 %v931, %v973
  %975 = vmatmul.bf16.gmra.mxu0 %v369
  %v976 = vpop.f32.mrf.mxu0
  %v977 = vadd.f32 %v934, %v976
  %v978 = vpop.f32.mrf.mxu0
  %v979 = vadd.f32 %v936, %v978
  %980 = vmatmul.bf16.gmra.mxu0 %v376
  %v981 = vpop.f32.mrf.mxu0
  %v982 = vadd.f32 %v939, %v981
  %v983 = vpop.f32.mrf.mxu0
  %v984 = vadd.f32 %v941, %v983
  %985 = vmatmul.bf16.gmra.mxu0 %v383
  %v986 = vpop.f32.mrf.mxu0
  %v987 = vadd.f32 %v944, %v986
  %v988 = vpop.f32.mrf.mxu0
  %v989 = vadd.f32 %v946, %v988
  %990 = vmatmul.bf16.gmra.mxu0 %v390
  %v991 = vpop.f32.mrf.mxu0
  %v992 = vadd.f32 %v949, %v991
  %v993 = vpop.f32.mrf.mxu0
  %v994 = vadd.f32 %v951, %v993
  %995 = vmatmul.bf16.gmra.mxu0 %v397
  %v996 = vpop.f32.mrf.mxu0
  %v997 = vadd.f32 %v954, %v996
  %v998 = vpop.f32.mrf.mxu0
  %999 = vdwg.mxu0
  %1000 = vmatpush.bf16.msra.mxu0 %v720
  %1001 = vmatpush.bf16.msra.mxu0 %v719
  %1002 = vmatpush.bf16.msra.mxu0 %v718
  %1003 = vmatpush.bf16.msra.mxu0 %v717
  %1004 = vmatpush.bf16.msra.mxu0 %v716
  %1005 = vmatpush.bf16.msra.mxu0 %v715
  %1006 = vmatpush.bf16.msra.mxu0 %v714
  %1007 = vmatpush.bf16.msra.mxu0 %v713
  %1008 = vmatmul.bf16.gmra.mxu0 %v356
  %v1009 = vpop.f32.mrf.mxu0
  %v1010 = vadd.f32 %v967, %v1009
  %v1011 = vpop.f32.mrf.mxu0
  %v1012 = vadd.f32 %v969, %v1011
  %1013 = vmatmul.bf16.gmra.mxu0 %v363
  %v1014 = vpop.f32.mrf.mxu0
  %v1015 = vadd.f32 %v972, %v1014
  %v1016 = vpop.f32.mrf.mxu0
  %v1017 = vadd.f32 %v974, %v1016
  %1018 = vmatmul.bf16.gmra.mxu0 %v370
  %v1019 = vpop.f32.mrf.mxu0
  %v1020 = vadd.f32 %v977, %v1019
  %v1021 = vpop.f32.mrf.mxu0
  %v1022 = vadd.f32 %v979, %v1021
  %1023 = vmatmul.bf16.gmra.mxu0 %v377
  %v1024 = vpop.f32.mrf.mxu0
  %v1025 = vadd.f32 %v982, %v1024
  %v1026 = vpop.f32.mrf.mxu0
  %v1027 = vadd.f32 %v984, %v1026
  %1028 = vmatmul.bf16.gmra.mxu0 %v384
  %v1029 = vpop.f32.mrf.mxu0
  %v1030 = vadd.f32 %v987, %v1029
  %v1031 = vpop.f32.mrf.mxu0
  %v1032 = vadd.f32 %v989, %v1031
  %1033 = vmatmul.bf16.gmra.mxu0 %v391
  %v1034 = vpop.f32.mrf.mxu0
  %v1035 = vadd.f32 %v992, %v1034
  %v1036 = vpop.f32.mrf.mxu0
  %v1037 = vadd.f32 %v994, %v1036
  %1038 = vmatmul.bf16.gmra.mxu0 %v398
  %v1039 = vpop.f32.mrf.mxu0
  %v1040 = vadd.f32 %v997, %v1039
  %v1041 = vpop.f32.mrf.mxu0
  %1042 = vdwg.mxu0
  %1043 = vmatpush.bf16.msra.mxu0 %v728
  %1044 = vmatpush.bf16.msra.mxu0 %v727
  %1045 = vmatpush.bf16.msra.mxu0 %v726
  %1046 = vmatpush.bf16.msra.mxu0 %v725
  %1047 = vmatpush.bf16.msra.mxu0 %v724
  %1048 = vmatpush.bf16.msra.mxu0 %v723
  %1049 = vmatpush.bf16.msra.mxu0 %v722
  %1050 = vmatpush.bf16.msra.mxu0 %v721
  %1051 = vmatmul.bf16.gmra.mxu0 %v357
  %v1052 = vpop.f32.mrf.mxu0
  %v1053 = vadd.f32 %v1010, %v1052
  %v1054 = vpop.f32.mrf.mxu0
  %v1055 = vadd.f32 %v1012, %v1054
  %1056 = vmatmul.bf16.gmra.mxu0 %v364
  %v1057 = vpop.f32.mrf.mxu0
  %v1058 = vadd.f32 %v1015, %v1057
  %v1059 = vpop.f32.mrf.mxu0
  %v1060 = vadd.f32 %v1017, %v1059
  %1061 = vmatmul.bf16.gmra.mxu0 %v371
  %v1062 = vpop.f32.mrf.mxu0
  %v1063 = vadd.f32 %v1020, %v1062
  %v1064 = vpop.f32.mrf.mxu0
  %v1065 = vadd.f32 %v1022, %v1064
  %1066 = vmatmul.bf16.gmra.mxu0 %v378
  %v1067 = vpop.f32.mrf.mxu0
  %v1068 = vadd.f32 %v1025, %v1067
  %v1069 = vpop.f32.mrf.mxu0
  %v1070 = vadd.f32 %v1027, %v1069
  %1071 = vmatmul.bf16.gmra.mxu0 %v385
  %v1072 = vpop.f32.mrf.mxu0
  %v1073 = vadd.f32 %v1030, %v1072
  %v1074 = vpop.f32.mrf.mxu0
  %v1075 = vadd.f32 %v1032, %v1074
  %1076 = vmatmul.bf16.gmra.mxu0 %v392
  %v1077 = vpop.f32.mrf.mxu0
  %v1078 = vadd.f32 %v1035, %v1077
  %v1079 = vpop.f32.mrf.mxu0
  %v1080 = vadd.f32 %v1037, %v1079
  %1081 = vmatmul.bf16.gmra.mxu0 %v399
  %v1082 = vpop.f32.mrf.mxu0
  %v1083 = vadd.f32 %v1040, %v1082
  %v1084 = vpop.f32.mrf.mxu0
  %1085 = vdwg.mxu0
  %v1086 = vadd.f32 %v31, %v1053
  %v1087 = vadd.f32 %v32, %v1055
  %v1088 = vadd.f32 %v33, %v1058
  %v1089 = vadd.f32 %v34, %v1060
  %v1090 = vadd.f32 %v35, %v1063
  %v1091 = vadd.f32 %v36, %v1065
  %v1092 = vadd.f32 %v37, %v1068
  %v1093 = vadd.f32 %v38, %v1070
  %v1094 = vadd.f32 %v39, %v1073
  %v1095 = vadd.f32 %v40, %v1075
  %v1096 = vadd.f32 %v41, %v1078
  %v1097 = vadd.f32 %v42, %v1080
  %v1098 = vadd.f32 %v43, %v1083
  %1099 = vst [vmem:[#allocation2] sm:$0xff] %v1086
  %1100 = vst [vmem:[#allocation2 + $0x8] sm:$0xff] %v1087
  %1101 = vst [vmem:[#allocation2 + $0x10] sm:$0xff] %v1088
  %1102 = vst [vmem:[#allocation2 + $0x18] sm:$0xff] %v1089
  %1103 = vst [vmem:[#allocation2 + $0x20] sm:$0xff] %v1090
  %1104 = vst [vmem:[#allocation2 + $0x28] sm:$0xff] %v1091
  %1105 = vst [vmem:[#allocation2 + $0x30] sm:$0xff] %v1092
  %1106 = vst [vmem:[#allocation2 + $0x38] sm:$0xff] %v1093
  %1107 = vst [vmem:[#allocation2 + $0x40] sm:$0xff] %v1094
  %1108 = vst [vmem:[#allocation2 + $0x48] sm:$0xff] %v1095
  %1109 = vst [vmem:[#allocation2 + $0x50] sm:$0xff] %v1096
  %1110 = vst [vmem:[#allocation2 + $0x58] sm:$0xff] %v1097
  %1111 = vst [vmem:[#allocation2 + $0x60] sm:$0xff] %v1098
  // Predicated region
  $region18: #{inception_b_forward.7} parent=0 // pred_check
    %p1112 = pneg %p14
  $region19: #{inception_b_forward.7} parent=0 // pred_check_branch
    %1114 = sbr.rel (%p1112) target = $region21
  $region20: #{inception_b_forward.7} parent=0 // pred_region
    %v1115 = vld [vmem:[#allocation2] sm:$0xff]
    %v1116 = vld [vmem:[#allocation2 + $0x8] sm:$0xff]
    %v1117 = vld [vmem:[#allocation2 + $0x10] sm:$0xff]
    %v1118 = vld [vmem:[#allocation2 + $0x18] sm:$0xff]
    %v1119 = vld [vmem:[#allocation2 + $0x20] sm:$0xff]
    %v1120 = vld [vmem:[#allocation2 + $0x28] sm:$0xff]
    %v1121 = vld [vmem:[#allocation2 + $0x30] sm:$0xff]
    %v1122 = vld [vmem:[#allocation2 + $0x38] sm:$0xff]
    %v1123 = vld [vmem:[#allocation2 + $0x40] sm:$0xff]
    %v1124 = vld [vmem:[#allocation2 + $0x48] sm:$0xff]
    %v1125 = vld [vmem:[#allocation2 + $0x50] sm:$0xff]
    %v1126 = vld [vmem:[#allocation2 + $0x58] sm:$0xff]
    %v1127 = vld [vmem:[#allocation2 + $0x60] sm:$0xff]
    %v1128 = vld [vmem:[%s2] sm:$0x1]
    %v1129 = vperm.slane %v1128, 0
    %v1130 = vmul.f32 %v1115, %v1129
    %v1131 = vmul.f32 %v1116, %v1129
    %v1132 = vmul.f32 %v1117, %v1129
    %v1133 = vmul.f32 %v1118, %v1129
    %v1134 = vmul.f32 %v1119, %v1129
    %v1135 = vmul.f32 %v1120, %v1129
    %v1136 = vmul.f32 %v1121, %v1129
    %v1137 = vmul.f32 %v1122, %v1129
    %v1138 = vmul.f32 %v1123, %v1129
    %v1139 = vmul.f32 %v1124, %v1129
    %v1140 = vmul.f32 %v1125, %v1129
    %v1141 = vmul.f32 %v1126, %v1129
    %v1142 = vmul.f32 %v1127, %v1129
    %v1143 = vld [vmem:[%s2 + $0x1] sm:$0x1]
    %v1144 = vperm.slane %v1143, 0
    %v1145 = vadd.f32 %v1130, %v1144
    %v1146 = vadd.f32 %v1131, %v1144
    %v1147 = vadd.f32 %v1132, %v1144
    %v1148 = vadd.f32 %v1133, %v1144
    %v1149 = vadd.f32 %v1134, %v1144
    %v1150 = vadd.f32 %v1135, %v1144
    %v1151 = vadd.f32 %v1136, %v1144
    %v1152 = vadd.f32 %v1137, %v1144
    %v1153 = vadd.f32 %v1138, %v1144
    %v1154 = vadd.f32 %v1139, %v1144
    %v1155 = vadd.f32 %v1140, %v1144
    %v1156 = vadd.f32 %v1141, %v1144
    %v1157 = vadd.f32 %v1142, %v1144
    %v1158 = vmax.f32 %v1145, 0.0
    %v1159 = vmax.f32 %v1146, 0.0
    %v1160 = vmax.f32 %v1147, 0.0
    %v1161 = vmax.f32 %v1148, 0.0
    %v1162 = vmax.f32 %v1149, 0.0
    %v1163 = vmax.f32 %v1150, 0.0
    %v1164 = vmax.f32 %v1151, 0.0
    %v1165 = vmax.f32 %v1152, 0.0
    %v1166 = vmax.f32 %v1153, 0.0
    %v1167 = vmax.f32 %v1154, 0.0
    %v1168 = vmax.f32 %v1155, 0.0
    %v1169 = vmax.f32 %v1156, 0.0
    %v1170 = vmax.f32 %v1157, 0.0
    %1171 = vst [vmem:[%s3] sm:$0xff] %v1158
    %1172 = vst [vmem:[%s3 + $0x8] sm:$0xff] %v1159
    %1173 = vst [vmem:[%s3 + $0x10] sm:$0xff] %v1160
    %1174 = vst [vmem:[%s3 + $0x18] sm:$0xff] %v1161
    %1175 = vst [vmem:[%s3 + $0x20] sm:$0xff] %v1162
    %1176 = vst [vmem:[%s3 + $0x28] sm:$0xff] %v1163
    %1177 = vst [vmem:[%s3 + $0x30] sm:$0xff] %v1164
    %1178 = vst [vmem:[%s3 + $0x38] sm:$0xff] %v1165
    %1179 = vst [vmem:[%s3 + $0x40] sm:$0xff] %v1166
    %1180 = vst [vmem:[%s3 + $0x48] sm:$0xff] %v1167
    %1181 = vst [vmem:[%s3 + $0x50] sm:$0xff] %v1168
    %1182 = vst [vmem:[%s3 + $0x58] sm:$0xff] %v1169
    %1183 = vst [vmem:[%s3 + $0x60] sm:$0xff] %v1170
  $region21: #{inception_b_forward.7} parent=0 // pred_fallthru
    _
  // Predicated region
  $region22: #{inception_b_forward.7} parent=0 // pred_check
    _
  $region23: #{inception_b_forward.7} parent=0 // pred_check_branch
    %1185 = sbr.rel (0) target = $region25
  $region24: #{inception_b_forward.7} parent=0 // pred_region
    _
  $region25: #{inception_b_forward.7} parent=0 // pred_fallthru
    _
  // Predicated region
  $region26: #{inception_b_forward.7} parent=0 // pred_check
    _
  $region27: #{inception_b_forward.7} parent=0 // pred_check_branch
    %1187 = sbr.rel (0) target = $region29
  $region28: #{inception_b_forward.7} parent=0 // pred_region
    _
  $region29: #{inception_b_forward.7} parent=0 // pred_fallthru
    _

// kernel: inception_b_forward.4
$region0: #{inception_b_forward.4}
  #allocation0 [shape = 'u32[]', space=smem, size = 0x4, offset = 0x4, fixed_abs, tag = 'smem constant byte address 0x4 - core index']
  #allocation1 [shape = 'u32[72,128]{1,0:T(1,128)}', space=vmem, size = 0x9000, scoped, tag = 'internal scratch']
  #allocation2 [shape = 'f32[104,128]{1,0:T(8,128)}', space=vmem, size = 0xd000, scoped, tag = 'scratch operand']
  %s0 = inlined_call_operand.vmem [shape: bf16[104,128], index: 0, kind: input, shape index: {}]
  %s1 = inlined_call_operand.vmem [shape: bf16[128,384], index: 1, kind: input, shape index: {}]
  %s2 = inlined_call_operand.vmem [shape: f32[2,384], index: 2, kind: input, shape index: {}]
  %s3 = inlined_call_operand.vmem [shape: f32[104,384], index: 3, kind: output, shape index: {}]
  %s4 = sld [smem:[#allocation0]]
  $region128: #{inception_b_forward.4} parent=0
    _
  %s6 = ssub.s32 1, %s4
  %s7 = scalar_select 0, %s6, %s4
  $region1: #{inception_b_forward.4} parent=0
    #allocation3 [shape = 'u8[65536]{0}', space=vmem, size = 0x10000, scoped, tag = 'input window, operand 1']
    #allocation4 [shape = 'u8[106496]{0}', space=vmem, size = 0x1a000, scoped, tag = 'output window, operand 0']
    loop: start=0, step=1, limit=5
    $region2: #{inception_b_forward.4} parent=1 // loop_pre_header
      _
    $region3: #{inception_b_forward.4} parent=1 // loop_header
      %s9 = sphi 0, %s13
      %p10 = scmp.ge.s32.totalorder %s9, 5
      %s16 = sphi 0, %s35
      %s17 = sphi 0, %s31
      %s18 = sphi 0, %s27
      %s19 = sphi 0, %s16
      %s20 = sphi 0, %s17
      %s21 = sphi 0, %s18
      %s22 = sphi 0, %s19
      %s23 = sphi 0, %s20
      %s24 = sphi 0, %s21
      %s40 = sphi 0, %s42
      %s43 = sphi 0, %s40
      %s44 = sphi 0, %s43
      %s60 = sphi 0, %s44
      %s68 = sphi 0, %s70
      %s71 = sphi 0, %s68
      %s72 = sphi 0, %s71
      %s88 = sphi 0, %s72
      %s94 = sphi 0, %s96
      %s97 = sphi 0, %s94
      %s98 = sphi 0, %s97
      %s114 = sphi 0, %s98
      %s122 = sphi 0, %s124
      %s125 = sphi 0, %s122
      %s126 = sphi 0, %s125
      %s142 = sphi 0, %s126
    $region4: #{inception_b_forward.4} parent=1 // loop_header_branch
      %12 = sbr.rel (%p10) target = $region8
    $region5: #{inception_b_forward.4} parent=1 // loop_body
      %s14 = ssub.s32 %s9, 1
      %s15 = ssub.s32 %s9, 2
      %s25 = sadd.s32 1, %s18
      %p26 = scmp.ge.s32.totalorder %s25, 1
      %s27 = scalar_select %p26, 0, %s25
      %s28 = sadd.s32 1, %s17
      %s29 = scalar_select %p26, %s28, %s17
      %p30 = scmp.ge.s32.totalorder %s29, 3
      %s31 = scalar_select %p30, 0, %s29
      %s32 = sadd.s32 1, %s16
      %s33 = scalar_select %p30, %s32, %s16
      %p34 = scmp.ge.s32.totalorder %s33, 1
      %s35 = scalar_select %p34, 0, %s33
      %s36 = ssub.s32 %s16, %s35
      %s37 = ssub.s32 %s18, %s27
      %s38 = sor.u32 %s36, %s37
      %p39 = scmp.eq.s32.totalorder %s38, 0
      %s41 = sadd.s32 %s40, 1
      %s42 = scalar_select %p39, %s40, %s41
      %p45 = pneg %p39
      %p46 = scmp.eq.s32.totalorder %s9, 2
      %p47 = por %p45, %p46
      %p48 = scmp.ne.s32.totalorder %s40, %s43
      %p49 = scmp.eq.s32.totalorder %s9, 0
      %p50 = por %p48, %p49
      %p51 = scmp.ne.s32.totalorder %s40, %s43
      %p52 = scmp.eq.s32.totalorder %s14, 2
      %p53 = por %p51, %p52
      %p54 = scmp.ne.s32.totalorder %s43, %s44
      %p55 = scmp.eq.s32.totalorder %s14, 0
      %p56 = por %p54, %p55
      %p57 = scmp.ne.s32.totalorder %s43, %s44
      %p58 = scmp.eq.s32.totalorder %s15, 2
      %p59 = por %p57, %p58
      %p61 = scmp.ne.s32.totalorder %s44, %s60
      %p62 = scmp.eq.s32.totalorder %s15, 0
      %p63 = por %p61, %p62
      %s64 = ssub.s32 %s18, %s27
      %s65 = ssub.s32 %s17, %s31
      %s66 = sor.u32 %s64, %s65
      %p67 = scmp.eq.s32.totalorder %s66, 0
      %s69 = sadd.s32 %s68, 1
      %s70 = scalar_select %p67, %s68, %s69
      %p73 = pneg %p67
      %p74 = scmp.eq.s32.totalorder %s9, 2
      %p75 = por %p73, %p74
      %p76 = scmp.ne.s32.totalorder %s68, %s71
      %p77 = scmp.eq.s32.totalorder %s9, 0
      %p78 = por %p76, %p77
      %p79 = scmp.ne.s32.totalorder %s68, %s71
      %p80 = scmp.eq.s32.totalorder %s14, 2
      %p81 = por %p79, %p80
      %p82 = scmp.ne.s32.totalorder %s71, %s72
      %p83 = scmp.eq.s32.totalorder %s14, 0
      %p84 = por %p82, %p83
      %p85 = scmp.ne.s32.totalorder %s71, %s72
      %p86 = scmp.eq.s32.totalorder %s15, 2
      %p87 = por %p85, %p86
      %p89 = scmp.ne.s32.totalorder %s72, %s88
      %p90 = scmp.eq.s32.totalorder %s15, 0
      %p91 = por %p89, %p90
      %s92 = ssub.s32 %s17, %s31
      %p93 = scmp.eq.s32.totalorder %s92, 0
      %s95 = sadd.s32 %s94, 1
      %s96 = scalar_select %p93, %s94, %s95
      %p99 = pneg %p93
      %p100 = scmp.eq.s32.totalorder %s9, 2
      %p101 = por %p99, %p100
      %p102 = scmp.ne.s32.totalorder %s94, %s97
      %p103 = scmp.eq.s32.totalorder %s9, 0
      %p104 = por %p102, %p103
      %p105 = scmp.ne.s32.totalorder %s94, %s97
      %p106 = scmp.eq.s32.totalorder %s14, 2
      %p107 = por %p105, %p106
      %p108 = scmp.ne.s32.totalorder %s97, %s98
      %p109 = scmp.eq.s32.totalorder %s14, 0
      %p110 = por %p108, %p109
      %p111 = scmp.ne.s32.totalorder %s97, %s98
      %p112 = scmp.eq.s32.totalorder %s15, 2
      %p113 = por %p111, %p112
      %p115 = scmp.ne.s32.totalorder %s98, %s114
      %p116 = scmp.eq.s32.totalorder %s15, 0
      %p117 = por %p115, %p116
      %s118 = ssub.s32 %s16, %s35
      %s119 = ssub.s32 %s17, %s31
      %s120 = sor.u32 %s118, %s119
      %p121 = scmp.eq.s32.totalorder %s120, 0
      %s123 = sadd.s32 %s122, 1
      %s124 = scalar_select %p121, %s122, %s123
      %p127 = pneg %p121
      %p128 = scmp.eq.s32.totalorder %s9, 2
      %p129 = por %p127, %p128
      %p130 = scmp.ne.s32.totalorder %s122, %s125
      %p131 = scmp.eq.s32.totalorder %s9, 0
      %p132 = por %p130, %p131
      %p133 = scmp.ne.s32.totalorder %s122, %s125
      %p134 = scmp.eq.s32.totalorder %s14, 2
      %p135 = por %p133, %p134
      %p136 = scmp.ne.s32.totalorder %s125, %s126
      %p137 = scmp.eq.s32.totalorder %s14, 0
      %p138 = por %p136, %p137
      %p139 = scmp.ne.s32.totalorder %s125, %s126
      %p140 = scmp.eq.s32.totalorder %s15, 2
      %p141 = por %p139, %p140
      %p143 = scmp.ne.s32.totalorder %s126, %s142
      %p144 = scmp.eq.s32.totalorder %s15, 0
      %p145 = por %p143, %p144
      %p146 = scmp.le.s32.totalorder 1, %s9
      %p147 = scmp.lt.s32.totalorder %s9, 4
      %p148 = pnand %p146, %p147
      %p149 = pneg %p148
      // Predicated region
      $region9: #{inception_b_forward.4} parent=5 // pred_check
        _
      $region10: #{inception_b_forward.4} parent=5 // pred_check_branch
        %151 = sbr.rel (%p148) target = $region12
      $region11: #{inception_b_forward.4} parent=5 // pred_region
        %s152 = ssub.s32 %s9, 1
        // Predicated region
        $region13: #{inception_b_forward.4} parent=11 // pred_check
          %p153 = pneg %p56
        $region14: #{inception_b_forward.4} parent=11 // pred_check_branch
          %155 = sbr.rel (%p153) target = $region16
        $region15: #{inception_b_forward.4} parent=11 // pred_region
          %s156 = smul.u32 13, %s19
          %p157 = scmp.lt.s32.totalorder %s156, 12
          %s158 = scalar_select %p157, %s156, 12
          %p159 = scmp.lt.s32.totalorder %s21, 0
          %s160 = scalar_select %p159, %s21, 0
          %s161 = sadd.s32 %s160, %s158
          %s162 = smul.addr %s161, 4
          %s163 = scalar_lea.vmem %s0, %s162
          %s164 = smul.u32 13, %s19
        $region16: #{inception_b_forward.4} parent=11 // pred_fallthru
          _
      $region12: #{inception_b_forward.4} parent=5 // pred_fallthru
        _
      %p165 = scmp.lt.s32.totalorder %s9, 3
      // Predicated region
      $region17: #{inception_b_forward.4} parent=5 // pred_check
        %p166 = pneg %p165
      $region18: #{inception_b_forward.4} parent=5 // pred_check_branch
        %168 = sbr.rel (%p166) target = $region20
      $region19: #{inception_b_forward.4} parent=5 // pred_region
        // Predicated region
        $region21: #{inception_b_forward.4} parent=19 // pred_check
          %p169 = pneg %p78
        $region22: #{inception_b_forward.4} parent=19 // pred_check_branch
          %171 = sbr.rel (%p169) target = $region24
        $region23: #{inception_b_forward.4} parent=19 // pred_region
          %s172 = sand.u32 %s68, 1
          %s173 = sand.u32 %s68, 1
          %s174 = smul.addr %s173, 64
          %s175 = scalar_lea.vmem [#allocation3], %s174
          %s176 = smul.u32 16, %s18
          %s177 = smul.addr %s176, 3
          %s178 = sadd.s32 %s17, %s177
          %s179 = smul.addr %s178, 4
          %s180 = scalar_lea.vmem %s1, %s179
          // Predicated region
          $region25: #{inception_b_forward.4} parent=23 // pred_check
            _
          $region26: #{inception_b_forward.4} parent=23 // pred_check_branch
            %182 = sbr.rel (0) target = $region28
          $region27: #{inception_b_forward.4} parent=23 // pred_region
            // Predicated region
            $region29: #{inception_b_forward.4} parent=27 // pred_check
              _
            $region30: #{inception_b_forward.4} parent=27 // pred_check_branch
              %184 = sbr.rel target = $region32
            $region31: #{inception_b_forward.4} parent=27 // pred_region
              // Predicated region
              $region44: #{inception_b_forward.4} parent=31 // pred_check
                _
              $region45: #{inception_b_forward.4} parent=31 // pred_check_branch
                %230 = sbr.rel (0) target = $region47
              $region46: #{inception_b_forward.4} parent=31 // pred_region
                loop: start=0, step=1, limit=1
                $region48: #{inception_b_forward.4} parent=46 // loop_pre_header
                  _
                $region49: #{inception_b_forward.4} parent=46 // loop_header
                  %s232 = sphi 0, %s236
                  %p233 = scmp.ge.s32.totalorder %s232, 1
                  %s237 = sphi %s180, %s180
                  %s238 = sphi %s175, %s175
                $region50: #{inception_b_forward.4} parent=46 // loop_header_branch
                  %235 = sbr.rel (%p233) target = $region54
                $region51: #{inception_b_forward.4} parent=46 // loop_body
                  _
                $region52: #{inception_b_forward.4} parent=46 // loop_footer
                  %s236 = sadd.s32 1, %s232
                $region53: #{inception_b_forward.4} parent=46 // loop_footer_branch
                  %231 = sbr.rel target = $region49
                $region54: #{inception_b_forward.4} parent=46 // loop_exit
                  _
                %s240 = ssub.s32 16, 1
                loop: start=0, step=1, limit=1
                $region55: #{inception_b_forward.4} parent=46 // loop_pre_header
                  _
                $region56: #{inception_b_forward.4} parent=46 // loop_header
                  %s242 = sphi 0, %s246
                  %p243 = scmp.ge.s32.totalorder %s242, 1
                  %s247 = sphi %s180, %s180
                  %s248 = sphi %s175, %s175
                $region57: #{inception_b_forward.4} parent=46 // loop_header_branch
                  %245 = sbr.rel (%p243) target = $region61
                $region58: #{inception_b_forward.4} parent=46 // loop_body
                  %v249 = vld [vmem:[%s247] sm:%s240]
                  %250 = vst [vmem:[%s248] sm:%s240] %v249
                  %v251 = vld [vmem:[%s247 + $0xc] sm:%s240]
                  %252 = vst [vmem:[%s248 + $0x4] sm:%s240] %v251
                  %v253 = vld [vmem:[%s247 + $0x18] sm:%s240]
                  %254 = vst [vmem:[%s248 + $0x8] sm:%s240] %v253
                  %v255 = vld [vmem:[%s247 + $0x24] sm:%s240]
                  %256 = vst [vmem:[%s248 + $0xc] sm:%s240] %v255
                  %v257 = vld [vmem:[%s247 + $0x30] sm:%s240]
                  %258 = vst [vmem:[%s248 + $0x10] sm:%s240] %v257
                  %v259 = vld [vmem:[%s247 + $0x3c] sm:%s240]
                  %260 = vst [vmem:[%s248 + $0x14] sm:%s240] %v259
                  %v261 = vld [vmem:[%s247 + $0x48] sm:%s240]
                  %262 = vst [vmem:[%s248 + $0x18] sm:%s240] %v261
                  %v263 = vld [vmem:[%s247 + $0x54] sm:%s240]
                  %264 = vst [vmem:[%s248 + $0x1c] sm:%s240] %v263
                  %v265 = vld [vmem:[%s247 + $0x60] sm:%s240]
                  %266 = vst [vmem:[%s248 + $0x20] sm:%s240] %v265
                  %v267 = vld [vmem:[%s247 + $0x6c] sm:%s240]
                  %268 = vst [vmem:[%s248 + $0x24] sm:%s240] %v267
                  %v269 = vld [vmem:[%s247 + $0x78] sm:%s240]
                  %270 = vst [vmem:[%s248 + $0x28] sm:%s240] %v269
                  %v271 = vld [vmem:[%s247 + $0x84] sm:%s240]
                  %272 = vst [vmem:[%s248 + $0x2c] sm:%s240] %v271
                  %v273 = vld [vmem:[%s247 + $0x90] sm:%s240]
                  %274 = vst [vmem:[%s248 + $0x30] sm:%s240] %v273
                  %v275 = vld [vmem:[%s247 + $0x9c] sm:%s240]
                  %276 = vst [vmem:[%s248 + $0x34] sm:%s240] %v275
                  %v277 = vld [vmem:[%s247 + $0xa8] sm:%s240]
                  %278 = vst [vmem:[%s248 + $0x38] sm:%s240] %v277
                  %v279 = vld [vmem:[%s247 + $0xb4] sm:%s240]
                  %280 = vst [vmem:[%s248 + $0x3c] sm:%s240] %v279
                $region59: #{inception_b_forward.4} parent=46 // loop_footer
                  %s246 = sadd.s32 1, %s242
                $region60: #{inception_b_forward.4} parent=46 // loop_footer_branch
                  %241 = sbr.rel target = $region56
                $region61: #{inception_b_forward.4} parent=46 // loop_exit
                  _
              $region47: #{inception_b_forward.4} parent=31 // pred_fallthru
                _
            $region32: #{inception_b_forward.4} parent=27 // pred_fallthru
              _
            // Predicated region
            $region33: #{inception_b_forward.4} parent=27 // pred_check
              _
            $region34: #{inception_b_forward.4} parent=27 // pred_check_branch
              %186 = sbr.rel (0) target = $region36
            $region35: #{inception_b_forward.4} parent=27 // pred_region
              %s188 = ssub.s32 16, 1
              loop: start=0, step=1, limit=1
              $region37: #{inception_b_forward.4} parent=35 // loop_pre_header
                _
              $region38: #{inception_b_forward.4} parent=35 // loop_header
                %s190 = sphi 0, %s194
                %p191 = scmp.ge.s32.totalorder %s190, 1
                %s195 = sphi %s180, %s180
                %s196 = sphi %s175, %s175
              $region39: #{inception_b_forward.4} parent=35 // loop_header_branch
                %193 = sbr.rel (%p191) target = $region43
              $region40: #{inception_b_forward.4} parent=35 // loop_body
                %v197 = vld [vmem:[%s195] sm:%s188]
                %198 = vst [vmem:[%s196] sm:%s188] %v197
                %v199 = vld [vmem:[%s195 + $0xc] sm:%s188]
                %200 = vst [vmem:[%s196 + $0x4] sm:%s188] %v199
                %v201 = vld [vmem:[%s195 + $0x18] sm:%s188]
                %202 = vst [vmem:[%s196 + $0x8] sm:%s188] %v201
                %v203 = vld [vmem:[%s195 + $0x24] sm:%s188]
                %204 = vst [vmem:[%s196 + $0xc] sm:%s188] %v203
                %v205 = vld [vmem:[%s195 + $0x30] sm:%s188]
                %206 = vst [vmem:[%s196 + $0x10] sm:%s188] %v205
                %v207 = vld [vmem:[%s195 + $0x3c] sm:%s188]
                %208 = vst [vmem:[%s196 + $0x14] sm:%s188] %v207
                %v209 = vld [vmem:[%s195 + $0x48] sm:%s188]
                %210 = vst [vmem:[%s196 + $0x18] sm:%s188] %v209
                %v211 = vld [vmem:[%s195 + $0x54] sm:%s188]
                %212 = vst [vmem:[%s196 + $0x1c] sm:%s188] %v211
                %v213 = vld [vmem:[%s195 + $0x60] sm:%s188]
                %214 = vst [vmem:[%s196 + $0x20] sm:%s188] %v213
                %v215 = vld [vmem:[%s195 + $0x6c] sm:%s188]
                %216 = vst [vmem:[%s196 + $0x24] sm:%s188] %v215
                %v217 = vld [vmem:[%s195 + $0x78] sm:%s188]
                %218 = vst [vmem:[%s196 + $0x28] sm:%s188] %v217
                %v219 = vld [vmem:[%s195 + $0x84] sm:%s188]
                %220 = vst [vmem:[%s196 + $0x2c] sm:%s188] %v219
                %v221 = vld [vmem:[%s195 + $0x90] sm:%s188]
                %222 = vst [vmem:[%s196 + $0x30] sm:%s188] %v221
                %v223 = vld [vmem:[%s195 + $0x9c] sm:%s188]
                %224 = vst [vmem:[%s196 + $0x34] sm:%s188] %v223
                %v225 = vld [vmem:[%s195 + $0xa8] sm:%s188]
                %226 = vst [vmem:[%s196 + $0x38] sm:%s188] %v225
                %v227 = vld [vmem:[%s195 + $0xb4] sm:%s188]
                %228 = vst [vmem:[%s196 + $0x3c] sm:%s188] %v227
              $region41: #{inception_b_forward.4} parent=35 // loop_footer
                %s194 = sadd.s32 1, %s190
              $region42: #{inception_b_forward.4} parent=35 // loop_footer_branch
                %189 = sbr.rel target = $region38
              $region43: #{inception_b_forward.4} parent=35 // loop_exit
                _
            $region36: #{inception_b_forward.4} parent=27 // pred_fallthru
              _
          $region28: #{inception_b_forward.4} parent=23 // pred_fallthru
            _
          %281 = vnop
        $region24: #{inception_b_forward.4} parent=19 // pred_fallthru
          _
        // Predicated region
        $region62: #{inception_b_forward.4} parent=19 // pred_check
          %p282 = pneg %p104
        $region63: #{inception_b_forward.4} parent=19 // pred_check_branch
          %284 = sbr.rel (%p282) target = $region65
        $region64: #{inception_b_forward.4} parent=19 // pred_region
          %p285 = scmp.lt.s32.totalorder %s17, 2
          %s286 = scalar_select %p285, %s17, 2
          %s287 = smul.addr %s286, 2
          %s288 = scalar_lea.vmem %s2, %s287
        $region65: #{inception_b_forward.4} parent=19 // pred_fallthru
          _
      $region20: #{inception_b_forward.4} parent=5 // pred_fallthru
        _
      %p289 = scmp.le.s32.totalorder 1, %s9
      %p290 = scmp.lt.s32.totalorder %s9, 4
      %p291 = pnand %p289, %p290
      %p292 = pneg %p291
      // Predicated region
      $region66: #{inception_b_forward.4} parent=5 // pred_check
        _
      $region67: #{inception_b_forward.4} parent=5 // pred_check_branch
        %294 = sbr.rel (%p291) target = $region69
      $region68: #{inception_b_forward.4} parent=5 // pred_region
        %s295 = ssub.s32 %s9, 1
        %s296 = sand.u32 %s71, 1
        %s297 = sand.u32 %s71, 1
        %s298 = smul.addr %s297, 64
        %s299 = scalar_lea.vmem [#allocation3], %s298
        // Predicated region
        $region70: #{inception_b_forward.4} parent=68 // pred_check
          %p300 = pneg %p84
        $region71: #{inception_b_forward.4} parent=68 // pred_check_branch
          %302 = sbr.rel (%p300) target = $region73
        $region72: #{inception_b_forward.4} parent=68 // pred_region
          _
        $region73: #{inception_b_forward.4} parent=68 // pred_fallthru
          _
        %s303 = smul.u32 13, %s19
        %p304 = scmp.lt.s32.totalorder %s303, 12
        %s305 = scalar_select %p304, %s303, 12
        %p306 = scmp.lt.s32.totalorder %s21, 0
        %s307 = scalar_select %p306, %s21, 0
        %s308 = sadd.s32 %s307, %s305
        %s309 = smul.addr %s308, 4
        %s310 = scalar_lea.vmem %s0, %s309
        %p311 = pneg %p56
        %p312 = pneg %p53
        %s313 = sand.u32 %s71, 1
        %s314 = sand.u32 %s71, 1
        %s315 = smul.addr %s314, 64
        %s316 = scalar_lea.vmem [#allocation3], %s315
        %p317 = pneg %p84
        %p318 = pneg %p81
        %p319 = scmp.lt.s32.totalorder %s20, 2
        %s320 = scalar_select %p319, %s20, 2
        %s321 = smul.addr %s320, 2
        %s322 = scalar_lea.vmem %s2, %s321
        %p323 = pneg %p110
        %p324 = pneg %p107
        %p325 = pneg %p138
        %p326 = pneg %p135
        %s327 = sand.u32 %s125, 1
        %s328 = sand.u32 %s125, 1
        %s329 = smul.addr %s328, 104
        %s330 = scalar_lea.vmem [#allocation4], %s329
        %s331 = smul.u32 13, %s19
        %p332 = scmp.lt.s32.totalorder %s331, 12
        %s333 = scalar_select %p332, %s331, 12
        %p334 = scmp.lt.s32.totalorder %s21, 0
        %s335 = scalar_select %p334, %s21, 0
        %s336 = sadd.s32 %s335, %s333
        %s337 = smul.addr %s336, 4
        %s338 = scalar_lea.vmem %s0, %s337
        %s339 = smul.u32 13, %s19
        %s340 = smul.u32 16, %s21
        %p341 = scmp.lt.s32.totalorder %s20, 2
        %s342 = scalar_select %p341, %s20, 2
        %s343 = smul.addr %s342, 2
        %s344 = scalar_lea.vmem %s2, %s343
        %s345 = smul.u32 13, %s19
        %p346 = scmp.eq.s32.totalorder %s21, 0
        // Predicated region
        $region74: #{inception_b_forward.4} parent=68 // pred_check
          %p347 = pneg %p346
        $region75: #{inception_b_forward.4} parent=68 // pred_check_branch
          %349 = sbr.rel (%p347) target = $region77
        $region76: #{inception_b_forward.4} parent=68 // pred_region
          %350 = vst [vmem:[#allocation2] sm:$0xff] 0.0
          %351 = vst [vmem:[#allocation2 + $0x8] sm:$0xff] 0.0
          %352 = vst [vmem:[#allocation2 + $0x10] sm:$0xff] 0.0
          %353 = vst [vmem:[#allocation2 + $0x18] sm:$0xff] 0.0
          %354 = vst [vmem:[#allocation2 + $0x20] sm:$0xff] 0.0
          %355 = vst [vmem:[#allocation2 + $0x28] sm:$0xff] 0.0
          %356 = vst [vmem:[#allocation2 + $0x30] sm:$0xff] 0.0
          %357 = vst [vmem:[#allocation2 + $0x38] sm:$0xff] 0.0
          %358 = vst [vmem:[#allocation2 + $0x40] sm:$0xff] 0.0
          %359 = vst [vmem:[#allocation2 + $0x48] sm:$0xff] 0.0
          %360 = vst [vmem:[#allocation2 + $0x50] sm:$0xff] 0.0
          %361 = vst [vmem:[#allocation2 + $0x58] sm:$0xff] 0.0
          %362 = vst [vmem:[#allocation2 + $0x60] sm:$0xff] 0.0
        $region77: #{inception_b_forward.4} parent=68 // pred_fallthru
          _
        %v363 = vld [vmem:[#allocation2] sm:$0xff]
        %v364 = vld [vmem:[#allocation2 + $0x8] sm:$0xff]
        %v365 = vld [vmem:[#allocation2 + $0x10] sm:$0xff]
        %v366 = vld [vmem:[#allocation2 + $0x18] sm:$0xff]
        %v367 = vld [vmem:[#allocation2 + $0x20] sm:$0xff]
        %v368 = vld [vmem:[#allocation2 + $0x28] sm:$0xff]
        %v369 = vld [vmem:[#allocation2 + $0x30] sm:$0xff]
        %v370 = vld [vmem:[#allocation2 + $0x38] sm:$0xff]
        %v371 = vld [vmem:[#allocation2 + $0x40] sm:$0xff]
        %v372 = vld [vmem:[#allocation2 + $0x48] sm:$0xff]
        %v373 = vld [vmem:[#allocation2 + $0x50] sm:$0xff]
        %v374 = vld [vmem:[#allocation2 + $0x58] sm:$0xff]
        %v375 = vld [vmem:[#allocation2 + $0x60] sm:$0xff]
        %v376 = vld [vmem:[%s338] sm:$0xf]
        %v377 = vld [vmem:[%s338 + $0x4] sm:$0xf]
        %v378 = vld [vmem:[%s338 + $0x8] sm:$0xf]
        %v379 = vld [vmem:[%s338 + $0xc] sm:$0xf]
        %v380 = vld [vmem:[%s338 + $0x10] sm:$0xf]
        %v381 = vld [vmem:[%s338 + $0x14] sm:$0xf]
        %v382 = vld [vmem:[%s338 + $0x18] sm:$0xf]
        %v383 = vld [vmem:[%s338 + $0x1c] sm:$0xf]
        %v384 = vld [vmem:[%s338 + $0x20] sm:$0xf]
        %v385 = vld [vmem:[%s338 + $0x24] sm:$0xf]
        %v386 = vld [vmem:[%s338 + $0x28] sm:$0xf]
        %v387 = vld [vmem:[%s338 + $0x2c] sm:$0xf]
        %v388 = vld [vmem:[%s338 + $0x30] sm:$0xf]
        %v389 = vld [vmem:[%s299] sm:$0xf]
        %v390 = vld [vmem:[%s299 + $0x4] sm:$0xf]
        %v391 = vld [vmem:[%s299 + $0x8] sm:$0xf]
        %v392 = vld [vmem:[%s299 + $0xc] sm:$0xf]
        %v393 = vld [vmem:[%s299 + $0x10] sm:$0xf]
        %v394 = vld [vmem:[%s299 + $0x14] sm:$0xf]
        %v395 = vld [vmem:[%s299 + $0x18] sm:$0xf]
        %v396 = vld [vmem:[%s299 + $0x1c] sm:$0xf]
        %v397 = vld [vmem:[%s299 + $0x20] sm:$0xf]
        %v398 = vld [vmem:[%s299 + $0x24] sm:$0xf]
        %v399 = vld [vmem:[%s299 + $0x28] sm:$0xf]
        %v400 = vld [vmem:[%s299 + $0x2c] sm:$0xf]
        %v401 = vld [vmem:[%s299 + $0x30] sm:$0xf]
        %v402 = vld [vmem:[%s299 + $0x34] sm:$0xf]
        %v403 = vld [vmem:[%s299 + $0x38] sm:$0xf]
        %v404 = vld [vmem:[%s299 + $0x3c] sm:$0xf]
        %v418 = vunpack.c.l.b16 %v376
        %v419 = vunpack.c.l.b16 %v377
        %v420 = vunpack.c.l.b16 %v378
        %v421 = vunpack.c.l.b16 %v379
        %v422 = vunpack.c.l.b16 %v380
        %v423 = vunpack.c.l.b16 %v381
        %v424 = vunpack.c.l.b16 %v382
        %v425 = vunpack.c.l.b16 %v383
        %v426 = vunpack.c.l.b16 %v384
        %v427 = vunpack.c.l.b16 %v385
        %v428 = vunpack.c.l.b16 %v386
        %v429 = vunpack.c.l.b16 %v387
        %v430 = vunpack.c.l.b16 %v388
        %v431 = vpack.c.b16 %v419, %v418
        %v432 = vpack.c.b16 %v421, %v420
        %v433 = vpack.c.b16 %v423, %v422
        %v434 = vpack.c.b16 %v425, %v424
        %v435 = vpack.c.b16 %v427, %v426
        %v436 = vpack.c.b16 %v429, %v428
        %v437 = vpack.c.b16 %v430, %v430
        %v461 = vunpack.c.l.b16 %v389
        %v462 = vunpack.c.l.b16 %v390
        %v463 = vunpack.c.l.b16 %v391
        %v464 = vunpack.c.l.b16 %v392
        %v465 = vunpack.c.l.b16 %v393
        %v466 = vunpack.c.l.b16 %v394
        %v467 = vunpack.c.l.b16 %v395
        %v468 = vunpack.c.l.b16 %v396
        %v469 = vunpack.c.l.b16 %v397
        %v470 = vunpack.c.l.b16 %v398
        %v471 = vunpack.c.l.b16 %v399
        %v472 = vunpack.c.l.b16 %v400
        %v473 = vunpack.c.l.b16 %v401
        %v474 = vunpack.c.l.b16 %v402
        %v475 = vunpack.c.l.b16 %v403
        %v476 = vunpack.c.l.b16 %v404
        %v477 = vpack.c.b16 %v462, %v461
        %v478 = vpack.c.b16 %v464, %v463
        %v479 = vpack.c.b16 %v466, %v465
        %v480 = vpack.c.b16 %v468, %v467
        %v481 = vpack.c.b16 %v470, %v469
        %v482 = vpack.c.b16 %v472, %v471
        %v483 = vpack.c.b16 %v474, %v473
        %v484 = vpack.c.b16 %v476, %v475
        %493 = vmatpush.bf16.msra.mxu0 %v484
        %494 = vmatpush.bf16.msra.mxu0 %v483
        %495 = vmatpush.bf16.msra.mxu0 %v482
        %496 = vmatpush.bf16.msra.mxu0 %v481
        %497 = vmatpush.bf16.msra.mxu0 %v480
        %498 = vmatpush.bf16.msra.mxu0 %v479
        %499 = vmatpush.bf16.msra.mxu0 %v478
        %500 = vmatpush.bf16.msra.mxu0 %v477
        %501 = vmatmul.bf16.gmra.mxu0 %v431
        %v502 = vpop.f32.mrf.mxu0
        %v503 = vadd.f32 0.0, %v502
        %v504 = vpop.f32.mrf.mxu0
        %v505 = vadd.f32 0.0, %v504
        %506 = vmatmul.bf16.gmra.mxu0 %v432
        %v507 = vpop.f32.mrf.mxu0
        %v508 = vadd.f32 0.0, %v507
        %v509 = vpop.f32.mrf.mxu0
        %v510 = vadd.f32 0.0, %v509
        %511 = vmatmul.bf16.gmra.mxu0 %v433
        %v512 = vpop.f32.mrf.mxu0
        %v513 = vadd.f32 0.0, %v512
        %v514 = vpop.f32.mrf.mxu0
        %v515 = vadd.f32 0.0, %v514
        %516 = vmatmul.bf16.gmra.mxu0 %v434
        %v517 = vpop.f32.mrf.mxu0
        %v518 = vadd.f32 0.0, %v517
        %v519 = vpop.f32.mrf.mxu0
        %v520 = vadd.f32 0.0, %v519
        %521 = vmatmul.bf16.gmra.mxu0 %v435
        %v522 = vpop.f32.mrf.mxu0
        %v523 = vadd.f32 0.0, %v522
        %v524 = vpop.f32.mrf.mxu0
        %v525 = vadd.f32 0.0, %v524
        %526 = vmatmul.bf16.gmra.mxu0 %v436
        %v527 = vpop.f32.mrf.mxu0
        %v528 = vadd.f32 0.0, %v527
        %v529 = vpop.f32.mrf.mxu0
        %v530 = vadd.f32 0.0, %v529
        %531 = vmatmul.bf16.gmra.mxu0 %v437
        %v532 = vpop.f32.mrf.mxu0
        %v533 = vadd.f32 0.0, %v532
        %v534 = vpop.f32.mrf.mxu0
        %535 = vdwg.mxu0
        %v536 = vadd.f32 %v363, %v503
        %v537 = vadd.f32 %v364, %v505
        %v538 = vadd.f32 %v365, %v508
        %v539 = vadd.f32 %v366, %v510
        %v540 = vadd.f32 %v367, %v513
        %v541 = vadd.f32 %v368, %v515
        %v542 = vadd.f32 %v369, %v518
        %v543 = vadd.f32 %v370, %v520
        %v544 = vadd.f32 %v371, %v523
        %v545 = vadd.f32 %v372, %v525
        %v546 = vadd.f32 %v373, %v528
        %v547 = vadd.f32 %v374, %v530
        %v548 = vadd.f32 %v375, %v533
        %549 = vst [vmem:[#allocation2] sm:$0xff] %v536
        %550 = vst [vmem:[#allocation2 + $0x8] sm:$0xff] %v537
        %551 = vst [vmem:[#allocation2 + $0x10] sm:$0xff] %v538
        %552 = vst [vmem:[#allocation2 + $0x18] sm:$0xff] %v539
        %553 = vst [vmem:[#allocation2 + $0x20] sm:$0xff] %v540
        %554 = vst [vmem:[#allocation2 + $0x28] sm:$0xff] %v541
        %555 = vst [vmem:[#allocation2 + $0x30] sm:$0xff] %v542
        %556 = vst [vmem:[#allocation2 + $0x38] sm:$0xff] %v543
        %557 = vst [vmem:[#allocation2 + $0x40] sm:$0xff] %v544
        %558 = vst [vmem:[#allocation2 + $0x48] sm:$0xff] %v545
        %559 = vst [vmem:[#allocation2 + $0x50] sm:$0xff] %v546
        %560 = vst [vmem:[#allocation2 + $0x58] sm:$0xff] %v547
        %561 = vst [vmem:[#allocation2 + $0x60] sm:$0xff] %v548
        // Predicated region
        $region78: #{inception_b_forward.4} parent=68 // pred_check
          %p562 = pneg %p346
        $region79: #{inception_b_forward.4} parent=68 // pred_check_branch
          %564 = sbr.rel (%p562) target = $region81
        $region80: #{inception_b_forward.4} parent=68 // pred_region
          %v565 = vld [vmem:[#allocation2] sm:$0xff]
          %v566 = vld [vmem:[#allocation2 + $0x8] sm:$0xff]
          %v567 = vld [vmem:[#allocation2 + $0x10] sm:$0xff]
          %v568 = vld [vmem:[#allocation2 + $0x18] sm:$0xff]
          %v569 = vld [vmem:[#allocation2 + $0x20] sm:$0xff]
          %v570 = vld [vmem:[#allocation2 + $0x28] sm:$0xff]
          %v571 = vld [vmem:[#allocation2 + $0x30] sm:$0xff]
          %v572 = vld [vmem:[#allocation2 + $0x38] sm:$0xff]
          %v573 = vld [vmem:[#allocation2 + $0x40] sm:$0xff]
          %v574 = vld [vmem:[#allocation2 + $0x48] sm:$0xff]
          %v575 = vld [vmem:[#allocation2 + $0x50] sm:$0xff]
          %v576 = vld [vmem:[#allocation2 + $0x58] sm:$0xff]
          %v577 = vld [vmem:[#allocation2 + $0x60] sm:$0xff]
          %v578 = vld [vmem:[%s344] sm:$0x1]
          %v579 = vperm.slane %v578, 0
          %v580 = vmul.f32 %v565, %v579
          %v581 = vmul.f32 %v566, %v579
          %v582 = vmul.f32 %v567, %v579
          %v583 = vmul.f32 %v568, %v579
          %v584 = vmul.f32 %v569, %v579
          %v585 = vmul.f32 %v570, %v579
          %v586 = vmul.f32 %v571, %v579
          %v587 = vmul.f32 %v572, %v579
          %v588 = vmul.f32 %v573, %v579
          %v589 = vmul.f32 %v574, %v579
          %v590 = vmul.f32 %v575, %v579
          %v591 = vmul.f32 %v576, %v579
          %v592 = vmul.f32 %v577, %v579
          %v593 = vld [vmem:[%s344 + $0x1] sm:$0x1]
          %v594 = vperm.slane %v593, 0
          %v595 = vadd.f32 %v580, %v594
          %v596 = vadd.f32 %v581, %v594
          %v597 = vadd.f32 %v582, %v594
          %v598 = vadd.f32 %v583, %v594
          %v599 = vadd.f32 %v584, %v594
          %v600 = vadd.f32 %v585, %v594
          %v601 = vadd.f32 %v586, %v594
          %v602 = vadd.f32 %v587, %v594
          %v603 = vadd.f32 %v588, %v594
          %v604 = vadd.f32 %v589, %v594
          %v605 = vadd.f32 %v590, %v594
          %v606 = vadd.f32 %v591, %v594
          %v607 = vadd.f32 %v592, %v594
          %v608 = vmax.f32 %v595, 0.0
          %v609 = vmax.f32 %v596, 0.0
          %v610 = vmax.f32 %v597, 0.0
          %v611 = vmax.f32 %v598, 0.0
          %v612 = vmax.f32 %v599, 0.0
          %v613 = vmax.f32 %v600, 0.0
          %v614 = vmax.f32 %v601, 0.0
          %v615 = vmax.f32 %v602, 0.0
          %v616 = vmax.f32 %v603, 0.0
          %v617 = vmax.f32 %v604, 0.0
          %v618 = vmax.f32 %v605, 0.0
          %v619 = vmax.f32 %v606, 0.0
          %v620 = vmax.f32 %v607, 0.0
          %621 = vst [vmem:[%s330] sm:$0xff] %v608
          %622 = vst [vmem:[%s330 + $0x8] sm:$0xff] %v609
          %623 = vst [vmem:[%s330 + $0x10] sm:$0xff] %v610
          %624 = vst [vmem:[%s330 + $0x18] sm:$0xff] %v611
          %625 = vst [vmem:[%s330 + $0x20] sm:$0xff] %v612
          %626 = vst [vmem:[%s330 + $0x28] sm:$0xff] %v613
          %627 = vst [vmem:[%s330 + $0x30] sm:$0xff] %v614
          %628 = vst [vmem:[%s330 + $0x38] sm:$0xff] %v615
          %629 = vst [vmem:[%s330 + $0x40] sm:$0xff] %v616
          %630 = vst [vmem:[%s330 + $0x48] sm:$0xff] %v617
          %631 = vst [vmem:[%s330 + $0x50] sm:$0xff] %v618
          %632 = vst [vmem:[%s330 + $0x58] sm:$0xff] %v619
          %633 = vst [vmem:[%s330 + $0x60] sm:$0xff] %v620
        $region81: #{inception_b_forward.4} parent=68 // pred_fallthru
          _
        %s634 = sand.u32 %s125, 1
        %s635 = sand.u32 %s125, 1
        %s636 = smul.addr %s635, 104
        %s637 = scalar_lea.vmem [#allocation4], %s636
        // Predicated region
        $region82: #{inception_b_forward.4} parent=68 // pred_check
          %p638 = pneg %p135
        $region83: #{inception_b_forward.4} parent=68 // pred_check_branch
          %640 = sbr.rel (%p638) target = $region85
        $region84: #{inception_b_forward.4} parent=68 // pred_region
          %s641 = smul.u32 13, %s19
          %s642 = smul.addr %s641, 3
          %s643 = sadd.s32 %s20, %s642
          %s644 = smul.addr %s643, 8
          %s645 = scalar_lea.vmem %s3, %s644
          // Predicated region
          $region86: #{inception_b_forward.4} parent=84 // pred_check
            _
          $region87: #{inception_b_forward.4} parent=84 // pred_check_branch
            %647 = sbr.rel (0) target = $region89
          $region88: #{inception_b_forward.4} parent=84 // pred_region
            // Predicated region
            $region90: #{inception_b_forward.4} parent=88 // pred_check
              _
            $region91: #{inception_b_forward.4} parent=88 // pred_check_branch
              %649 = sbr.rel (0) target = $region93
            $region92: #{inception_b_forward.4} parent=88 // pred_region
              // Predicated region
              $region105: #{inception_b_forward.4} parent=92 // pred_check
                _
              $region106: #{inception_b_forward.4} parent=92 // pred_check_branch
                %689 = sbr.rel (0) target = $region108
              $region107: #{inception_b_forward.4} parent=92 // pred_region
                loop: start=0, step=1, limit=1
                $region109: #{inception_b_forward.4} parent=107 // loop_pre_header
                  _
                $region110: #{inception_b_forward.4} parent=107 // loop_header
                  %s691 = sphi 0, %s695
                  %p692 = scmp.ge.s32.totalorder %s691, 1
                  %s696 = sphi %s637, %s637
                  %s697 = sphi %s645, %s645
                $region111: #{inception_b_forward.4} parent=107 // loop_header_branch
                  %694 = sbr.rel (%p692) target = $region115
                $region112: #{inception_b_forward.4} parent=107 // loop_body
                  %v698 = vld [vmem:[%s696] sm:$0xff]
                  %699 = vst [vmem:[%s697] sm:$0xff] %v698
                  %v700 = vld [vmem:[%s696 + $0x8] sm:$0xff]
                  %701 = vst [vmem:[%s697 + $0x18] sm:$0xff] %v700
                  %v702 = vld [vmem:[%s696 + $0x10] sm:$0xff]
                  %703 = vst [vmem:[%s697 + $0x30] sm:$0xff] %v702
                  %v704 = vld [vmem:[%s696 + $0x18] sm:$0xff]
                  %705 = vst [vmem:[%s697 + $0x48] sm:$0xff] %v704
                  %v706 = vld [vmem:[%s696 + $0x20] sm:$0xff]
                  %707 = vst [vmem:[%s697 + $0x60] sm:$0xff] %v706
                  %v708 = vld [vmem:[%s696 + $0x28] sm:$0xff]
                  %709 = vst [vmem:[%s697 + $0x78] sm:$0xff] %v708
                  %v710 = vld [vmem:[%s696 + $0x30] sm:$0xff]
                  %711 = vst [vmem:[%s697 + $0x90] sm:$0xff] %v710
                  %v712 = vld [vmem:[%s696 + $0x38] sm:$0xff]
                  %713 = vst [vmem:[%s697 + $0xa8] sm:$0xff] %v712
                  %v714 = vld [vmem:[%s696 + $0x40] sm:$0xff]
                  %715 = vst [vmem:[%s697 + $0xc0] sm:$0xff] %v714
                  %v716 = vld [vmem:[%s696 + $0x48] sm:$0xff]
                  %717 = vst [vmem:[%s697 + $0xd8] sm:$0xff] %v716
                  %v718 = vld [vmem:[%s696 + $0x50] sm:$0xff]
                  %719 = vst [vmem:[%s697 + $0xf0] sm:$0xff] %v718
                  %v720 = vld [vmem:[%s696 + $0x58] sm:$0xff]
                  %721 = vst [vmem:[%s697 + $0x108] sm:$0xff] %v720
                  %v722 = vld [vmem:[%s696 + $0x60] sm:$0xff]
                  %723 = vst [vmem:[%s697 + $0x120] sm:$0xff] %v722
                $region113: #{inception_b_forward.4} parent=107 // loop_footer
                  %s695 = sadd.s32 1, %s691
                $region114: #{inception_b_forward.4} parent=107 // loop_footer_branch
                  %690 = sbr.rel target = $region110
                $region115: #{inception_b_forward.4} parent=107 // loop_exit
                  _
              $region108: #{inception_b_forward.4} parent=92 // pred_fallthru
                _
              // Predicated region
              $region116: #{inception_b_forward.4} parent=92 // pred_check
                _
              $region117: #{inception_b_forward.4} parent=92 // pred_check_branch
                %725 = sbr.rel target = $region119
              $region118: #{inception_b_forward.4} parent=92 // pred_region
                _
              $region119: #{inception_b_forward.4} parent=92 // pred_fallthru
                _
            $region93: #{inception_b_forward.4} parent=88 // pred_fallthru
              _
            // Predicated region
            $region94: #{inception_b_forward.4} parent=88 // pred_check
              _
            $region95: #{inception_b_forward.4} parent=88 // pred_check_branch
              %651 = sbr.rel target = $region97
            $region96: #{inception_b_forward.4} parent=88 // pred_region
              %s653 = ssub.s32 256, 1
              loop: start=0, step=1, limit=1
              $region98: #{inception_b_forward.4} parent=96 // loop_pre_header
                _
              $region99: #{inception_b_forward.4} parent=96 // loop_header
                %s655 = sphi 0, %s659
                %p656 = scmp.ge.s32.totalorder %s655, 1
                %s660 = sphi %s637, %s637
                %s661 = sphi %s645, %s645
              $region100: #{inception_b_forward.4} parent=96 // loop_header_branch
                %658 = sbr.rel (%p656) target = $region104
              $region101: #{inception_b_forward.4} parent=96 // loop_body
                %v662 = vld [vmem:[%s660] sm:%s653]
                %663 = vst [vmem:[%s661] sm:%s653] %v662
                %v664 = vld [vmem:[%s660 + $0x8] sm:%s653]
                %665 = vst [vmem:[%s661 + $0x18] sm:%s653] %v664
                %v666 = vld [vmem:[%s660 + $0x10] sm:%s653]
                %667 = vst [vmem:[%s661 + $0x30] sm:%s653] %v666
                %v668 = vld [vmem:[%s660 + $0x18] sm:%s653]
                %669 = vst [vmem:[%s661 + $0x48] sm:%s653] %v668
                %v670 = vld [vmem:[%s660 + $0x20] sm:%s653]
                %671 = vst [vmem:[%s661 + $0x60] sm:%s653] %v670
                %v672 = vld [vmem:[%s660 + $0x28] sm:%s653]
                %673 = vst [vmem:[%s661 + $0x78] sm:%s653] %v672
                %v674 = vld [vmem:[%s660 + $0x30] sm:%s653]
                %675 = vst [vmem:[%s661 + $0x90] sm:%s653] %v674
                %v676 = vld [vmem:[%s660 + $0x38] sm:%s653]
                %677 = vst [vmem:[%s661 + $0xa8] sm:%s653] %v676
                %v678 = vld [vmem:[%s660 + $0x40] sm:%s653]
                %679 = vst [vmem:[%s661 + $0xc0] sm:%s653] %v678
                %v680 = vld [vmem:[%s660 + $0x48] sm:%s653]
                %681 = vst [vmem:[%s661 + $0xd8] sm:%s653] %v680
                %v682 = vld [vmem:[%s660 + $0x50] sm:%s653]
                %683 = vst [vmem:[%s661 + $0xf0] sm:%s653] %v682
                %v684 = vld [vmem:[%s660 + $0x58] sm:%s653]
                %685 = vst [vmem:[%s661 + $0x108] sm:%s653] %v684
                %v686 = vld [vmem:[%s660 + $0x60] sm:%s653]
                %687 = vst [vmem:[%s661 + $0x120] sm:%s653] %v686
              $region102: #{inception_b_forward.4} parent=96 // loop_footer
                %s659 = sadd.s32 1, %s655
              $region103: #{inception_b_forward.4} parent=96 // loop_footer_branch
                %654 = sbr.rel target = $region99
              $region104: #{inception_b_forward.4} parent=96 // loop_exit
                _
            $region97: #{inception_b_forward.4} parent=88 // pred_fallthru
              _
          $region89: #{inception_b_forward.4} parent=84 // pred_fallthru
            _
          %726 = vnop
        $region85: #{inception_b_forward.4} parent=68 // pred_fallthru
          _
      $region69: #{inception_b_forward.4} parent=5 // pred_fallthru
        _
      %p727 = scmp.le.s32.totalorder 2, %s9
      // Predicated region
      $region120: #{inception_b_forward.4} parent=5 // pred_check
        %p728 = pneg %p727
      $region121: #{inception_b_forward.4} parent=5 // pred_check_branch
        %730 = sbr.rel (%p728) target = $region123
      $region122: #{inception_b_forward.4} parent=5 // pred_region
        %s731 = ssub.s32 %s9, 2
        // Predicated region
        $region124: #{inception_b_forward.4} parent=122 // pred_check
          %p732 = pneg %p141
        $region125: #{inception_b_forward.4} parent=122 // pred_check_branch
          %734 = sbr.rel (%p732) target = $region127
        $region126: #{inception_b_forward.4} parent=122 // pred_region
          %s735 = sand.u32 %s126, 1
          %s736 = sand.u32 %s126, 1
          %s737 = smul.addr %s736, 104
          %s738 = scalar_lea.vmem [#allocation4], %s737
        $region127: #{inception_b_forward.4} parent=122 // pred_fallthru
          _
      $region123: #{inception_b_forward.4} parent=5 // pred_fallthru
        _
    $region6: #{inception_b_forward.4} parent=1 // loop_footer
      %s13 = sadd.s32 1, %s9
    $region7: #{inception_b_forward.4} parent=1 // loop_footer_branch
      %8 = sbr.rel target = $region3
    $region8: #{inception_b_forward.4} parent=1 // loop_exit
      _

</llo_original>
